<compile_context>
chip_gen: v7x
topology: tpu7x:2x2x1
jax: 0.10.0
libtpu: 0.0.40
codegen_flags: <defaults>
</compile_context>

<pallas_src>
import functools
import math

import numpy as np
import jax
import jax.numpy as jnp
from jax.experimental import pallas as pl
from jax.experimental.pallas import tpu as pltpu

NEG_INF = -1e18


def _layer_norm(y, gamma, beta, eps=1e-6):
    # c2nl LayerNorm: a_2 * (x - mean) / (std + eps) + b_2; torch.std is unbiased (N-1).
    # (Intentionally NOT sqrt(var + eps) — matches the reference module, not nn.LayerNorm.)
    mean = jnp.mean(y, axis=-1, keepdims=True)
    var = jnp.sum((y - mean) ** 2, axis=-1, keepdims=True) / (y.shape[-1] - 1)
    std = jnp.sqrt(var)
    return gamma * (y - mean) / (std + eps) + beta


def encoder_layer_kernel(x_ref, mask_ref,
                         wq_ref, bq_ref, wkv_ref, bkv_ref, wo_ref, bo_ref,
                         g1_ref, be1_ref, w1_ref, b1_ref,
                         w2_ref, b2_ref, g2_ref, be2_ref,
                         out_ref, *rest,
                         heads, d_k, d_v, tq, return_attn):
    if return_attn:
        attn_ref, kbuf, vbuf = rest
    else:
        attn_ref = None
        kbuf, vbuf = rest

    qi = pl.program_id(1)
    row0 = pl.multiple_of(qi * tq, tq)
    hdk = heads * d_k
    hdv = heads * d_v

    # --- K/V projection: once per batch element, reused by every query tile. ---
    @pl.when(qi == 0)
    def _():
        x_all_b = x_ref[0].astype(jnp.bfloat16)                      # (L, D)
        kv = jnp.dot(x_all_b, wkv_ref[...],
                     preferred_element_type=jnp.float32) + bkv_ref[...]
        kbuf[...] = kv[:, :hdk].astype(jnp.bfloat16)
        vbuf[...] = kv[:, hdk:].astype(jnp.bfloat16)

    # --- Q projection for this query tile only. ---
    x_q = x_ref[0, pl.ds(row0, tq), :]                               # (TQ, D) f32 residual
    q = jnp.dot(x_q.astype(jnp.bfloat16), wq_ref[...],
                preferred_element_type=jnp.float32) + bq_ref[...]
    q = (q * (1.0 / math.sqrt(d_k))).astype(jnp.bfloat16)            # cast once, slice per head
    k = kbuf[...]                                                    # (L, H*d_k) bf16
    v = vbuf[...]                                                    # (L, H*d_v) bf16

    mask = mask_ref[0]                                               # (H, TQ, L) int8

    # --- Per-head attention; heads is small & static -> unrolled.  Scores contract the
    #     last dims directly (no kh.T relayout).  Head contexts are concatenated and fed
    #     through ONE output projection (contraction dim H*d_v). ---
    ctx_heads = []
    for h in range(heads):
        qh = q[:, h * d_k:(h + 1) * d_k]
        kh = k[:, h * d_k:(h + 1) * d_k]
        vh = v[:, h * d_v:(h + 1) * d_v]
        s = jax.lax.dot_general(qh, kh, (((1,), (1,)), ((), ())),
                                preferred_element_type=jnp.float32)  # (TQ, L) f32
        s = jnp.where(mask[h] != 0, NEG_INF, s)                      # bias built in-kernel
        m = jnp.max(s, axis=-1, keepdims=True)
        e = jnp.exp(s - m)
        # NOTE: fully-masked rows give uniform attention (matches reference softmax of all
        # -1e18).  approx reciprocal (EUP) has ~1e-3 rel error on the returned probs.
        a = e * pl.reciprocal(jnp.sum(e, axis=-1, keepdims=True), approx=True)
        if attn_ref is not None:
            attn_ref[0, h] = a.astype(attn_ref.dtype)
        ctx_heads.append(jnp.dot(a.astype(jnp.bfloat16), vh,
                                 preferred_element_type=jnp.float32))
    ctx_cat = jnp.concatenate(ctx_heads, axis=-1).astype(jnp.bfloat16)   # (TQ, H*d_v)
    ctx = jnp.dot(ctx_cat, wo_ref[...],
                  preferred_element_type=jnp.float32) + bo_ref[...]

    # TODO(synk): dropout layers are treated as identity (eval mode).
    out1 = _layer_norm(ctx + x_q, g1_ref[...], be1_ref[...])

    # --- PositionwiseFeedForward: w2(relu(w1(LN(out1)))) + out1 ---
    h1 = _layer_norm(out1, g2_ref[...], be2_ref[...])
    inter = jnp.maximum(
        jnp.dot(h1.astype(jnp.bfloat16), w1_ref[...],
                preferred_element_type=jnp.float32) + b1_ref[...], 0.0)
    ffn = jnp.dot(inter.astype(jnp.bfloat16), w2_ref[...],
                  preferred_element_type=jnp.float32) + b2_ref[...]
    out_ref[0] = (ffn + out1).astype(out_ref.dtype)


def _const_spec(w, single_buffer):
    # Grid-invariant weights: constant index map -> DMA'd only once; optionally
    # single-buffered to halve their VMEM footprint (matters most on v7x's 64 MiB).
    n = w.ndim

    def idx(b, q, _n=n):
        return (0,) * _n

    if single_buffer:
        return pl.BlockSpec(w.shape, idx, pipeline_mode=pl.Buffered(1))
    return pl.BlockSpec(w.shape, idx)


def _vmem_limit_bytes():
    # Generation-aware VMEM budget: ~80% of physical (v5e/v6e ~102 MiB, v7x ~51 MiB).
    try:
        cap = getattr(pltpu.get_tpu_info(), "vmem_capacity_bytes", None)
        if cap:
            return int(cap * 0.8)
    except Exception:
        pass
    return 48 * 1024 * 1024   # conservative fallback, valid on every generation


def _pick_query_tile(L, tq):
    if tq is not None:
        assert L % tq == 0 and (tq % 8 == 0 or tq == L)
        return tq
    # Keep the MXU M dimension filled: prefer 256, then 128; short sequences use full L.
    for cand in (256, 128):
        if L % cand == 0:
            return cand
    return L


def transformer_encoder_layer(x, head_mask, params, *, tq=None, return_attn=True,
                              attn_dtype=jnp.float32):
    """head_mask: int8/bool [B, H, L, L], nonzero where attention is disallowed."""
    B, L, D = x.shape
    H = head_mask.shape[1]
    d_k = params["wq"].shape[1] // H
    d_v = params["wv"].shape[1] // H
    TQ = _pick_query_tile(L, tq)
    NQ = L // TQ
    hdk, hdv = H * d_k, H * d_v

    bf16 = jnp.bfloat16
    weights = [
        params["wq"].astype(bf16), params["bq"],
        jnp.concatenate([params["wk"], params["wv"]], axis=1).astype(bf16),
        jnp.concatenate([params["bk"], params["bv"]], axis=1),
        params["wo"].astype(bf16), params["bo"],
        params["g1"], params["be1"],
        params["w1"].astype(bf16), params["b1"],
        params["w2"].astype(bf16), params["b2"],
        params["g2"], params["be2"],
    ]
    head_mask = head_mask.astype(jnp.int8)

    # x block is the full sequence for this batch element; its index map is constant in q,
    # so Pallas DMAs it only once per batch element.
    x_spec = pl.BlockSpec((1, L, D), lambda b, q: (b, 0, 0))
    mask_spec = pl.BlockSpec((1, H, TQ, L), lambda b, q: (b, 0, q, 0))
    # TODO(synk): for large L, pass pad + per-type structural masks via
    # PrefetchScalarGridSpec and a head->type table instead of the dense [B,H,L,L] mask.

    out_specs = [pl.BlockSpec((1, TQ, D), lambda b, q: (b, q, 0))]
    out_shape = [jax.ShapeDtypeStruct((B, L, D), x.dtype)]
    if return_attn:
        # On bandwidth-starved parts (v5e) pass attn_dtype=jnp.bfloat16 or return_attn=False.
        out_specs.append(pl.BlockSpec((1, H, TQ, L), lambda b, q: (b, 0, q, 0)))
        out_shape.append(jax.ShapeDtypeStruct((B, H, L, L), attn_dtype))

    scratch_shapes = [pltpu.VMEM((L, hdk), bf16),    # K for the whole sequence
                      pltpu.VMEM((L, hdv), bf16)]    # V for the whole sequence

    kern = functools.partial(encoder_layer_kernel, heads=H, d_k=d_k, d_v=d_v,
                             tq=TQ, return_attn=return_attn)

    def build(single_buffer):
        in_specs = [x_spec, mask_spec] + [_const_spec(w, single_buffer) for w in weights]
        return pl.pallas_call(
            kern,
            grid=(B, NQ),
            in_specs=in_specs,
            out_specs=tuple(out_specs),
            out_shape=tuple(out_shape),
            scratch_shapes=scratch_shapes,
            compiler_params=pltpu.CompilerParams(
                # batch axis parallel (megacore shards it on v7x); q axis MUST stay
                # "arbitrary": the K/V scratch is carried across query tiles.
                dimension_semantics=("parallel", "arbitrary"),
                vmem_limit_bytes=_vmem_limit_bytes()),
        )

    try:
        res = build(single_buffer=True)(x, head_mask, *weights)
    except Exception:
        # Fallback if this JAX/Mosaic build rejects pipeline_mode=pl.Buffered(1).
        res = build(single_buffer=False)(x, head_mask, *weights)
    return res if return_attn else res[0]


def init_params(key, d_model, heads, d_k, d_v, d_ff):
    ks = jax.random.split(key, 12)

    def w(k, shape):
        return (0.05 * jax.random.normal(k, shape)).astype(jnp.float32)

    return dict(
        wq=w(ks[0], (d_model, heads * d_k)), bq=w(ks[1], (1, heads * d_k)),
        wk=w(ks[2], (d_model, heads * d_k)), bk=w(ks[3], (1, heads * d_k)),
        wv=w(ks[4], (d_model, heads * d_v)), bv=w(ks[5], (1, heads * d_v)),
        wo=w(ks[6], (heads * d_v, d_model)), bo=w(ks[7], (1, d_model)),
        g1=jnp.ones((1, d_model), jnp.float32), be1=jnp.zeros((1, d_model), jnp.float32),
        w1=w(ks[8], (d_model, d_ff)), b1=w(ks[9], (1, d_ff)),
        w2=w(ks[10], (d_ff, d_model)), b2=w(ks[11], (1, d_model)),
        g2=jnp.ones((1, d_model), jnp.float32), be2=jnp.zeros((1, d_model), jnp.float32),
    )


def build_head_mask(mask, structs, heads_type):
    # mask: bool [B, L, L], True = padding-masked.  Structural code masks are 0/1 adjacency
    # matrices applied per head according to heads_type.  A compact int8 boolean mask is
    # returned; the -1e18 bias is applied inside the Pallas kernel.
    # TODO(synk): exact per-head structural masking of the original MultiHeadedAttention is
    # approximated as hard masks (masked_fill with -1e18) for non-'global' heads.
    pad = mask.astype(bool)
    per_head = []
    for t in heads_type:
        per_head.append(pad if t == "global" else jnp.logical_or(pad, structs[t] == 0))
    return jnp.stack(per_head, axis=1).astype(jnp.int8)   # [B, H, L, L]


def reference(x, head_mask, p):
    B, L, D = x.shape
    H = head_mask.shape[1]
    q = x @ p["wq"] + p["bq"]
    k = x @ p["wk"] + p["bk"]
    v = x @ p["wv"] + p["bv"]
    dk = q.shape[-1] // H
    dv = v.shape[-1] // H
    q = q.reshape(B, L, H, dk).transpose(0, 2, 1, 3) / math.sqrt(dk)
    k = k.reshape(B, L, H, dk).transpose(0, 2, 1, 3)
    v = v.reshape(B, L, H, dv).transpose(0, 2, 1, 3)
    s = jnp.where(head_mask != 0, NEG_INF, q @ k.transpose(0, 1, 3, 2))
    a = jax.nn.softmax(s, axis=-1)
    ctx = (a @ v).transpose(0, 2, 1, 3).reshape(B, L, H * dv)
    ctx = ctx @ p["wo"] + p["bo"]
    out1 = _layer_norm(ctx + x, p["g1"], p["be1"])
    inter = jax.nn.relu(_layer_norm(out1, p["g2"], p["be2"]) @ p["w1"] + p["b1"])
    out = inter @ p["w2"] + p["b2"] + out1
    return out, a


def _run_case(B, L, d_model, heads, d_k, d_v, d_ff, lengths, tq):
    key = jax.random.PRNGKey(0)
    k_in, k_par, *k_struct = jax.random.split(key, 8)

    inputs = jax.random.normal(k_in, (B, L, d_model), dtype=jnp.float32)

    lengths = jnp.array(lengths)
    key_pad = jnp.arange(L)[None, :] >= lengths[:, None]           # [B, L]
    mask = jnp.broadcast_to(key_pad[:, None, :], (B, L, L))         # [B, L, L]

    struct_names = ["keyword", "intoken", "instatement", "dataflow", "controlflow"]
    structs = {}
    for name, ks in zip(struct_names, k_struct):
        m = jax.random.bernoulli(ks, 0.5, (B, L, L)).astype(jnp.int32)
        m = m.at[:, :, 0].set(1)   # keep at least one attendable key per row
        structs[name] = m

    heads_type = ["global", "keyword", "dataflow", "controlflow"]

    params = init_params(k_par, d_model, heads, d_k, d_v, d_ff)
    head_mask = build_head_mask(mask, structs, heads_type)

    out, attn_per_head = transformer_encoder_layer(inputs, head_mask, params, tq=tq)
    jax.block_until_ready((out, attn_per_head))

    ref_out, ref_attn = reference(inputs, head_mask, params)
    assert np.allclose(np.asarray(out), np.asarray(ref_out), atol=1e-2, rtol=1e-2)
    assert np.allclose(np.asarray(attn_per_head), np.asarray(ref_attn), atol=1e-2, rtol=1e-2)
    assert np.isfinite(np.asarray(out)).all()

    # Bandwidth-optimized path: skip the O(H*L^2) attention-probability write entirely.
    out_fast = transformer_encoder_layer(inputs, head_mask, params, tq=tq, return_attn=False)
    jax.block_until_ready(out_fast)
    assert np.allclose(np.asarray(out_fast), np.asarray(ref_out), atol=1e-2, rtol=1e-2)


if __name__ == "__main__":
    d_model, heads, d_k, d_v, d_ff = 32, 4, 8, 8, 64

    # Case 1: single query tile (TQ == L).
    _run_case(B=2, L=8, d_model=d_model, heads=heads, d_k=d_k, d_v=d_v, d_ff=d_ff,
              lengths=[8, 6], tq=None)
    # Case 2: multiple query tiles -> exercises the once-per-batch K/V scratch reuse.
    _run_case(B=2, L=16, d_model=d_model, heads=heads, d_k=d_k, d_v=d_v, d_ff=d_ff,
              lengths=[16, 12], tq=8)

    print("KERNEL_OK")
</pallas_src>

<mosaic_0001>
module attributes {stable_mosaic.version = 11 : i64} {
  func.func @encoder_layer_kernel(%arg0: i32, %arg1: i32, %arg2: memref<1x8x32xf32, #tpu.memory_space<vmem>>, %arg3: memref<1x4x8x8xi8, #tpu.memory_space<vmem>>, %arg4: memref<32x32xbf16, #tpu.memory_space<vmem>>, %arg5: memref<1x32xf32, #tpu.memory_space<vmem>>, %arg6: memref<32x64xbf16, #tpu.memory_space<vmem>>, %arg7: memref<1x64xf32, #tpu.memory_space<vmem>>, %arg8: memref<32x32xbf16, #tpu.memory_space<vmem>>, %arg9: memref<1x32xf32, #tpu.memory_space<vmem>>, %arg10: memref<1x32xf32, #tpu.memory_space<vmem>>, %arg11: memref<1x32xf32, #tpu.memory_space<vmem>>, %arg12: memref<32x64xbf16, #tpu.memory_space<vmem>>, %arg13: memref<1x64xf32, #tpu.memory_space<vmem>>, %arg14: memref<64x32xbf16, #tpu.memory_space<vmem>>, %arg15: memref<1x32xf32, #tpu.memory_space<vmem>>, %arg16: memref<1x32xf32, #tpu.memory_space<vmem>>, %arg17: memref<1x32xf32, #tpu.memory_space<vmem>>, %arg18: memref<1x8x32xf32, #tpu.memory_space<vmem>>, %arg19: memref<1x4x8x8xf32, #tpu.memory_space<vmem>>, %arg20: memref<8x32xbf16, #tpu.memory_space<vmem>>, %arg21: memref<8x32xbf16, #tpu.memory_space<vmem>>) attributes {dimension_semantics = [#tpu.dimension_semantics<parallel>, #tpu.dimension_semantics<arbitrary>], iteration_bounds = array<i64: 2, 1>, scalar_prefetch = 0 : i64, scratch_operands = 2 : i64, tpu.core_type = #tpu.core_type<tc>, window_params = [{transform_indices = @transform_0, window_bounds = array<i64: 1, 8, 32>}, {transform_indices = @transform_1, window_bounds = array<i64: 1, 4, 8, 8>}, {pipeline_mode = #tpu.pipeline_mode<synchronous>, transform_indices = @transform_2, window_bounds = array<i64: 32, 32>}, {pipeline_mode = #tpu.pipeline_mode<synchronous>, transform_indices = @transform_3, window_bounds = array<i64: 1, 32>}, {pipeline_mode = #tpu.pipeline_mode<synchronous>, transform_indices = @transform_4, window_bounds = array<i64: 32, 64>}, {pipeline_mode = #tpu.pipeline_mode<synchronous>, transform_indices = @transform_5, window_bounds = array<i64: 1, 64>}, {pipeline_mode = #tpu.pipeline_mode<synchronous>, transform_indices = @transform_6, window_bounds = array<i64: 32, 32>}, {pipeline_mode = #tpu.pipeline_mode<synchronous>, transform_indices = @transform_7, window_bounds = array<i64: 1, 32>}, {pipeline_mode = #tpu.pipeline_mode<synchronous>, transform_indices = @transform_8, window_bounds = array<i64: 1, 32>}, {pipeline_mode = #tpu.pipeline_mode<synchronous>, transform_indices = @transform_9, window_bounds = array<i64: 1, 32>}, {pipeline_mode = #tpu.pipeline_mode<synchronous>, transform_indices = @transform_10, window_bounds = array<i64: 32, 64>}, {pipeline_mode = #tpu.pipeline_mode<synchronous>, transform_indices = @transform_11, window_bounds = array<i64: 1, 64>}, {pipeline_mode = #tpu.pipeline_mode<synchronous>, transform_indices = @transform_12, window_bounds = array<i64: 64, 32>}, {pipeline_mode = #tpu.pipeline_mode<synchronous>, transform_indices = @transform_13, window_bounds = array<i64: 1, 32>}, {pipeline_mode = #tpu.pipeline_mode<synchronous>, transform_indices = @transform_14, window_bounds = array<i64: 1, 32>}, {pipeline_mode = #tpu.pipeline_mode<synchronous>, transform_indices = @transform_15, window_bounds = array<i64: 1, 32>}, {transform_indices = @transform_16, window_bounds = array<i64: 1, 8, 32>}, {transform_indices = @transform_17, window_bounds = array<i64: 1, 4, 8, 8>}]} {
    %c8_i32 = arith.constant 8 : i32
    %0 = arith.muli %arg1, %c8_i32 : i32
    %1 = tpu.assume_multiple %0, 8 : i32
    %c0_i32 = arith.constant 0 : i32
    %2 = arith.cmpi eq, %arg1, %c0_i32 : i32
    %3 = arith.extui %2 : i1 to i32
    %c0_i32_0 = arith.constant 0 : i32
    %4 = arith.cmpi ne, %3, %c0_i32_0 : i32
    scf.if %4 {
      %c0_88 = arith.constant 0 : index
      %c0_89 = arith.constant 0 : index
      %c0_90 = arith.constant 0 : index
      %195 = vector.load %arg2[%c0_88, %c0_89, %c0_90] : memref<1x8x32xf32, #tpu.memory_space<vmem>>, vector<1x8x32xf32>
      %196 = vector.shape_cast %195 : vector<1x8x32xf32> to vector<8x32xf32>
      %197 = arith.truncf %196 : vector<8x32xf32> to vector<8x32xbf16>
      %c0_91 = arith.constant 0 : index
      %c0_92 = arith.constant 0 : index
      %198 = vector.load %arg6[%c0_91, %c0_92] : memref<32x64xbf16, #tpu.memory_space<vmem>>, vector<32x64xbf16>
      %cst_93 = arith.constant dense<0.000000e+00> : vector<8x64xf32>
      %199 = tpu.matmul %197, %198, %cst_93 {dimension_numbers = #tpu.dot_dimension_numbers<[1], [0], [0], [1], [0, 0, 1, 1], [], []>} : vector<8x32xbf16>, vector<32x64xbf16>, vector<8x64xf32> -> vector<8x64xf32>
      %c0_94 = arith.constant 0 : index
      %c0_95 = arith.constant 0 : index
      %200 = vector.load %arg7[%c0_94, %c0_95] : memref<1x64xf32, #tpu.memory_space<vmem>>, vector<1x64xf32>
      %201 = vector.broadcast %200 : vector<1x64xf32> to vector<8x64xf32>
      %202 = arith.addf %199, %201 : vector<8x64xf32>
      %203 = vector.extract_strided_slice %202 {offsets = [0, 0], sizes = [8, 32], strides = [1, 1]} : vector<8x64xf32> to vector<8x32xf32>
      %204 = arith.truncf %203 : vector<8x32xf32> to vector<8x32xbf16>
      %c0_96 = arith.constant 0 : index
      %c0_97 = arith.constant 0 : index
      %205 = vector.load %arg20[%c0_96, %c0_97] : memref<8x32xbf16, #tpu.memory_space<vmem>>, vector<8x32xbf16>
      tpu.vector_store %arg20[%c0_96, %c0_97], %204 {strides = array<i32>} : memref<8x32xbf16, #tpu.memory_space<vmem>>, vector<8x32xbf16>,
      %206 = vector.extract_strided_slice %202 {offsets = [0, 32], sizes = [8, 32], strides = [1, 1]} : vector<8x64xf32> to vector<8x32xf32>
      %207 = arith.truncf %206 : vector<8x32xf32> to vector<8x32xbf16>
      %c0_98 = arith.constant 0 : index
      %c0_99 = arith.constant 0 : index
      %208 = vector.load %arg21[%c0_98, %c0_99] : memref<8x32xbf16, #tpu.memory_space<vmem>>, vector<8x32xbf16>
      tpu.vector_store %arg21[%c0_98, %c0_99], %207 {strides = array<i32>} : memref<8x32xbf16, #tpu.memory_space<vmem>>, vector<8x32xbf16>,
    } else {
    }
    %c0 = arith.constant 0 : index
    %5 = arith.index_cast %1 : i32 to index
    %c0_1 = arith.constant 0 : index
    %6 = vector.load %arg2[%c0, %5, %c0_1] : memref<1x8x32xf32, #tpu.memory_space<vmem>>, vector<1x8x32xf32>
    %7 = vector.shape_cast %6 : vector<1x8x32xf32> to vector<8x32xf32>
    %8 = arith.truncf %7 : vector<8x32xf32> to vector<8x32xbf16>
    %c0_2 = arith.constant 0 : index
    %c0_3 = arith.constant 0 : index
    %9 = vector.load %arg4[%c0_2, %c0_3] : memref<32x32xbf16, #tpu.memory_space<vmem>>, vector<32x32xbf16>
    %cst = arith.constant dense<0.000000e+00> : vector<8x32xf32>
    %10 = tpu.matmul %8, %9, %cst {dimension_numbers = #tpu.dot_dimension_numbers<[1], [0], [0], [1], [0, 0, 1, 1], [], []>} : vector<8x32xbf16>, vector<32x32xbf16>, vector<8x32xf32> -> vector<8x32xf32>
    %c0_4 = arith.constant 0 : index
    %c0_5 = arith.constant 0 : index
    %11 = vector.load %arg5[%c0_4, %c0_5] : memref<1x32xf32, #tpu.memory_space<vmem>>, vector<1x32xf32>
    %12 = vector.broadcast %11 : vector<1x32xf32> to vector<8x32xf32>
    %13 = arith.addf %10, %12 : vector<8x32xf32>
    %cst_6 = arith.constant 0.353553385 : f32
    %14 = vector.broadcast %cst_6 : f32 to vector<8x32xf32>
    %15 = arith.mulf %13, %14 : vector<8x32xf32>
    %16 = arith.truncf %15 : vector<8x32xf32> to vector<8x32xbf16>
    %c0_7 = arith.constant 0 : index
    %c0_8 = arith.constant 0 : index
    %17 = vector.load %arg20[%c0_7, %c0_8] : memref<8x32xbf16, #tpu.memory_space<vmem>>, vector<8x32xbf16>
    %c0_9 = arith.constant 0 : index
    %c0_10 = arith.constant 0 : index
    %18 = vector.load %arg21[%c0_9, %c0_10] : memref<8x32xbf16, #tpu.memory_space<vmem>>, vector<8x32xbf16>
    %c0_11 = arith.constant 0 : index
    %c0_12 = arith.constant 0 : index
    %c0_13 = arith.constant 0 : index
    %c0_14 = arith.constant 0 : index
    %19 = vector.load %arg3[%c0_11, %c0_12, %c0_13, %c0_14] : memref<1x4x8x8xi8, #tpu.memory_space<vmem>>, vector<1x4x8x8xi8>
    %20 = vector.shape_cast %19 : vector<1x4x8x8xi8> to vector<4x8x8xi8>
    %21 = vector.extract_strided_slice %16 {offsets = [0, 0], sizes = [8, 8], strides = [1, 1]} : vector<8x32xbf16> to vector<8x8xbf16>
    %22 = vector.extract_strided_slice %17 {offsets = [0, 0], sizes = [8, 8], strides = [1, 1]} : vector<8x32xbf16> to vector<8x8xbf16>
    %23 = vector.extract_strided_slice %18 {offsets = [0, 0], sizes = [8, 8], strides = [1, 1]} : vector<8x32xbf16> to vector<8x8xbf16>
    %cst_15 = arith.constant dense<0.000000e+00> : vector<8x8xf32>
    %24 = tpu.matmul %21, %22, %cst_15 {dimension_numbers = #tpu.dot_dimension_numbers<[1], [1], [0], [0], [0, 0, 1, 0], [], []>} : vector<8x8xbf16>, vector<8x8xbf16>, vector<8x8xf32> -> vector<8x8xf32>
    %25 = vector.extract_strided_slice %20 {offsets = [0, 0, 0], sizes = [1, 8, 8], strides = [1, 1, 1]} : vector<4x8x8xi8> to vector<1x8x8xi8>
    %26 = vector.shape_cast %25 : vector<1x8x8xi8> to vector<8x8xi8>
    %c0_i8 = arith.constant 0 : i8
    %27 = vector.broadcast %c0_i8 : i8 to vector<8x8xi8>
    %28 = arith.cmpi ne, %26, %27 : vector<8x8xi8>
    %cst_16 = arith.constant -9.99999984E+17 : f32
    %29 = vector.broadcast %cst_16 : f32 to vector<8x8xf32>
    %30 = arith.select %28, %29, %24 : vector<8x8xi1>, vector<8x8xf32>
    %cst_17 = arith.constant dense<0xFF800000> : vector<8xf32>
    %31 = vector.multi_reduction <maximumf>, %30, %cst_17 [1] : vector<8x8xf32> to vector<8xf32>
    %32 = vector.shape_cast %31 : vector<8xf32> to vector<8x1xf32>
    %33 = vector.broadcast %32 : vector<8x1xf32> to vector<8x8xf32>
    %34 = arith.subf %30, %33 : vector<8x8xf32>
    %35 = math.exp %34 : vector<8x8xf32>
    %cst_18 = arith.constant dense<0.000000e+00> : vector<8xf32>
    %36 = vector.multi_reduction <add>, %35, %cst_18 [1] : vector<8x8xf32> to vector<8xf32>
    %37 = vector.shape_cast %36 : vector<8xf32> to vector<8x1xf32>
    %38 = tpu.reciprocal %37 {approx = true} : vector<8x1xf32> -> vector<8x1xf32>
    %39 = vector.broadcast %38 : vector<8x1xf32> to vector<8x8xf32>
    %40 = arith.mulf %35, %39 : vector<8x8xf32>
    %c0_19 = arith.constant 0 : index
    %c0_20 = arith.constant 0 : index
    %c0_21 = arith.constant 0 : index
    %c0_22 = arith.constant 0 : index
    %41 = vector.load %arg19[%c0_19, %c0_20, %c0_21, %c0_22] : memref<1x4x8x8xf32, #tpu.memory_space<vmem>>, vector<1x1x8x8xf32>
    %42 = vector.shape_cast %41 : vector<1x1x8x8xf32> to vector<8x8xf32>
    %43 = vector.shape_cast %40 : vector<8x8xf32> to vector<1x1x8x8xf32>
    tpu.vector_store %arg19[%c0_19, %c0_20, %c0_21, %c0_22], %43 {strides = array<i32>} : memref<1x4x8x8xf32, #tpu.memory_space<vmem>>, vector<1x1x8x8xf32>,
    %44 = arith.truncf %40 : vector<8x8xf32> to vector<8x8xbf16>
    %cst_23 = arith.constant dense<0.000000e+00> : vector<8x8xf32>
    %45 = tpu.matmul %44, %23, %cst_23 {dimension_numbers = #tpu.dot_dimension_numbers<[1], [0], [0], [1], [0, 0, 1, 1], [], []>} : vector<8x8xbf16>, vector<8x8xbf16>, vector<8x8xf32> -> vector<8x8xf32>
    %46 = vector.extract_strided_slice %16 {offsets = [0, 8], sizes = [8, 8], strides = [1, 1]} : vector<8x32xbf16> to vector<8x8xbf16>
    %47 = vector.extract_strided_slice %17 {offsets = [0, 8], sizes = [8, 8], strides = [1, 1]} : vector<8x32xbf16> to vector<8x8xbf16>
    %48 = vector.extract_strided_slice %18 {offsets = [0, 8], sizes = [8, 8], strides = [1, 1]} : vector<8x32xbf16> to vector<8x8xbf16>
    %cst_24 = arith.constant dense<0.000000e+00> : vector<8x8xf32>
    %49 = tpu.matmul %46, %47, %cst_24 {dimension_numbers = #tpu.dot_dimension_numbers<[1], [1], [0], [0], [0, 0, 1, 0], [], []>} : vector<8x8xbf16>, vector<8x8xbf16>, vector<8x8xf32> -> vector<8x8xf32>
    %50 = vector.extract_strided_slice %20 {offsets = [1, 0, 0], sizes = [1, 8, 8], strides = [1, 1, 1]} : vector<4x8x8xi8> to vector<1x8x8xi8>
    %51 = vector.shape_cast %50 : vector<1x8x8xi8> to vector<8x8xi8>
    %c0_i8_25 = arith.constant 0 : i8
    %52 = vector.broadcast %c0_i8_25 : i8 to vector<8x8xi8>
    %53 = arith.cmpi ne, %51, %52 : vector<8x8xi8>
    %cst_26 = arith.constant -9.99999984E+17 : f32
    %54 = vector.broadcast %cst_26 : f32 to vector<8x8xf32>
    %55 = arith.select %53, %54, %49 : vector<8x8xi1>, vector<8x8xf32>
    %cst_27 = arith.constant dense<0xFF800000> : vector<8xf32>
    %56 = vector.multi_reduction <maximumf>, %55, %cst_27 [1] : vector<8x8xf32> to vector<8xf32>
    %57 = vector.shape_cast %56 : vector<8xf32> to vector<8x1xf32>
    %58 = vector.broadcast %57 : vector<8x1xf32> to vector<8x8xf32>
    %59 = arith.subf %55, %58 : vector<8x8xf32>
    %60 = math.exp %59 : vector<8x8xf32>
    %cst_28 = arith.constant dense<0.000000e+00> : vector<8xf32>
    %61 = vector.multi_reduction <add>, %60, %cst_28 [1] : vector<8x8xf32> to vector<8xf32>
    %62 = vector.shape_cast %61 : vector<8xf32> to vector<8x1xf32>
    %63 = tpu.reciprocal %62 {approx = true} : vector<8x1xf32> -> vector<8x1xf32>
    %64 = vector.broadcast %63 : vector<8x1xf32> to vector<8x8xf32>
    %65 = arith.mulf %60, %64 : vector<8x8xf32>
    %c0_29 = arith.constant 0 : index
    %c1 = arith.constant 1 : index
    %c0_30 = arith.constant 0 : index
    %c0_31 = arith.constant 0 : index
    %66 = vector.load %arg19[%c0_29, %c1, %c0_30, %c0_31] : memref<1x4x8x8xf32, #tpu.memory_space<vmem>>, vector<1x1x8x8xf32>
    %67 = vector.shape_cast %66 : vector<1x1x8x8xf32> to vector<8x8xf32>
    %68 = vector.shape_cast %65 : vector<8x8xf32> to vector<1x1x8x8xf32>
    tpu.vector_store %arg19[%c0_29, %c1, %c0_30, %c0_31], %68 {strides = array<i32>} : memref<1x4x8x8xf32, #tpu.memory_space<vmem>>, vector<1x1x8x8xf32>,
    %69 = arith.truncf %65 : vector<8x8xf32> to vector<8x8xbf16>
    %cst_32 = arith.constant dense<0.000000e+00> : vector<8x8xf32>
    %70 = tpu.matmul %69, %48, %cst_32 {dimension_numbers = #tpu.dot_dimension_numbers<[1], [0], [0], [1], [0, 0, 1, 1], [], []>} : vector<8x8xbf16>, vector<8x8xbf16>, vector<8x8xf32> -> vector<8x8xf32>
    %71 = vector.extract_strided_slice %16 {offsets = [0, 16], sizes = [8, 8], strides = [1, 1]} : vector<8x32xbf16> to vector<8x8xbf16>
    %72 = vector.extract_strided_slice %17 {offsets = [0, 16], sizes = [8, 8], strides = [1, 1]} : vector<8x32xbf16> to vector<8x8xbf16>
    %73 = vector.extract_strided_slice %18 {offsets = [0, 16], sizes = [8, 8], strides = [1, 1]} : vector<8x32xbf16> to vector<8x8xbf16>
    %cst_33 = arith.constant dense<0.000000e+00> : vector<8x8xf32>
    %74 = tpu.matmul %71, %72, %cst_33 {dimension_numbers = #tpu.dot_dimension_numbers<[1], [1], [0], [0], [0, 0, 1, 0], [], []>} : vector<8x8xbf16>, vector<8x8xbf16>, vector<8x8xf32> -> vector<8x8xf32>
    %75 = vector.extract_strided_slice %20 {offsets = [2, 0, 0], sizes = [1, 8, 8], strides = [1, 1, 1]} : vector<4x8x8xi8> to vector<1x8x8xi8>
    %76 = vector.shape_cast %75 : vector<1x8x8xi8> to vector<8x8xi8>
    %c0_i8_34 = arith.constant 0 : i8
    %77 = vector.broadcast %c0_i8_34 : i8 to vector<8x8xi8>
    %78 = arith.cmpi ne, %76, %77 : vector<8x8xi8>
    %cst_35 = arith.constant -9.99999984E+17 : f32
    %79 = vector.broadcast %cst_35 : f32 to vector<8x8xf32>
    %80 = arith.select %78, %79, %74 : vector<8x8xi1>, vector<8x8xf32>
    %cst_36 = arith.constant dense<0xFF800000> : vector<8xf32>
    %81 = vector.multi_reduction <maximumf>, %80, %cst_36 [1] : vector<8x8xf32> to vector<8xf32>
    %82 = vector.shape_cast %81 : vector<8xf32> to vector<8x1xf32>
    %83 = vector.broadcast %82 : vector<8x1xf32> to vector<8x8xf32>
    %84 = arith.subf %80, %83 : vector<8x8xf32>
    %85 = math.exp %84 : vector<8x8xf32>
    %cst_37 = arith.constant dense<0.000000e+00> : vector<8xf32>
    %86 = vector.multi_reduction <add>, %85, %cst_37 [1] : vector<8x8xf32> to vector<8xf32>
    %87 = vector.shape_cast %86 : vector<8xf32> to vector<8x1xf32>
    %88 = tpu.reciprocal %87 {approx = true} : vector<8x1xf32> -> vector<8x1xf32>
    %89 = vector.broadcast %88 : vector<8x1xf32> to vector<8x8xf32>
    %90 = arith.mulf %85, %89 : vector<8x8xf32>
    %c0_38 = arith.constant 0 : index
    %c2 = arith.constant 2 : index
    %c0_39 = arith.constant 0 : index
    %c0_40 = arith.constant 0 : index
    %91 = vector.load %arg19[%c0_38, %c2, %c0_39, %c0_40] : memref<1x4x8x8xf32, #tpu.memory_space<vmem>>, vector<1x1x8x8xf32>
    %92 = vector.shape_cast %91 : vector<1x1x8x8xf32> to vector<8x8xf32>
    %93 = vector.shape_cast %90 : vector<8x8xf32> to vector<1x1x8x8xf32>
    tpu.vector_store %arg19[%c0_38, %c2, %c0_39, %c0_40], %93 {strides = array<i32>} : memref<1x4x8x8xf32, #tpu.memory_space<vmem>>, vector<1x1x8x8xf32>,
    %94 = arith.truncf %90 : vector<8x8xf32> to vector<8x8xbf16>
    %cst_41 = arith.constant dense<0.000000e+00> : vector<8x8xf32>
    %95 = tpu.matmul %94, %73, %cst_41 {dimension_numbers = #tpu.dot_dimension_numbers<[1], [0], [0], [1], [0, 0, 1, 1], [], []>} : vector<8x8xbf16>, vector<8x8xbf16>, vector<8x8xf32> -> vector<8x8xf32>
    %96 = vector.extract_strided_slice %16 {offsets = [0, 24], sizes = [8, 8], strides = [1, 1]} : vector<8x32xbf16> to vector<8x8xbf16>
    %97 = vector.extract_strided_slice %17 {offsets = [0, 24], sizes = [8, 8], strides = [1, 1]} : vector<8x32xbf16> to vector<8x8xbf16>
    %98 = vector.extract_strided_slice %18 {offsets = [0, 24], sizes = [8, 8], strides = [1, 1]} : vector<8x32xbf16> to vector<8x8xbf16>
    %cst_42 = arith.constant dense<0.000000e+00> : vector<8x8xf32>
    %99 = tpu.matmul %96, %97, %cst_42 {dimension_numbers = #tpu.dot_dimension_numbers<[1], [1], [0], [0], [0, 0, 1, 0], [], []>} : vector<8x8xbf16>, vector<8x8xbf16>, vector<8x8xf32> -> vector<8x8xf32>
    %100 = vector.extract_strided_slice %20 {offsets = [3, 0, 0], sizes = [1, 8, 8], strides = [1, 1, 1]} : vector<4x8x8xi8> to vector<1x8x8xi8>
    %101 = vector.shape_cast %100 : vector<1x8x8xi8> to vector<8x8xi8>
    %c0_i8_43 = arith.constant 0 : i8
    %102 = vector.broadcast %c0_i8_43 : i8 to vector<8x8xi8>
    %103 = arith.cmpi ne, %101, %102 : vector<8x8xi8>
    %cst_44 = arith.constant -9.99999984E+17 : f32
    %104 = vector.broadcast %cst_44 : f32 to vector<8x8xf32>
    %105 = arith.select %103, %104, %99 : vector<8x8xi1>, vector<8x8xf32>
    %cst_45 = arith.constant dense<0xFF800000> : vector<8xf32>
    %106 = vector.multi_reduction <maximumf>, %105, %cst_45 [1] : vector<8x8xf32> to vector<8xf32>
    %107 = vector.shape_cast %106 : vector<8xf32> to vector<8x1xf32>
    %108 = vector.broadcast %107 : vector<8x1xf32> to vector<8x8xf32>
    %109 = arith.subf %105, %108 : vector<8x8xf32>
    %110 = math.exp %109 : vector<8x8xf32>
    %cst_46 = arith.constant dense<0.000000e+00> : vector<8xf32>
    %111 = vector.multi_reduction <add>, %110, %cst_46 [1] : vector<8x8xf32> to vector<8xf32>
    %112 = vector.shape_cast %111 : vector<8xf32> to vector<8x1xf32>
    %113 = tpu.reciprocal %112 {approx = true} : vector<8x1xf32> -> vector<8x1xf32>
    %114 = vector.broadcast %113 : vector<8x1xf32> to vector<8x8xf32>
    %115 = arith.mulf %110, %114 : vector<8x8xf32>
    %c0_47 = arith.constant 0 : index
    %c3 = arith.constant 3 : index
    %c0_48 = arith.constant 0 : index
    %c0_49 = arith.constant 0 : index
    %116 = vector.load %arg19[%c0_47, %c3, %c0_48, %c0_49] : memref<1x4x8x8xf32, #tpu.memory_space<vmem>>, vector<1x1x8x8xf32>
    %117 = vector.shape_cast %116 : vector<1x1x8x8xf32> to vector<8x8xf32>
    %118 = vector.shape_cast %115 : vector<8x8xf32> to vector<1x1x8x8xf32>
    tpu.vector_store %arg19[%c0_47, %c3, %c0_48, %c0_49], %118 {strides = array<i32>} : memref<1x4x8x8xf32, #tpu.memory_space<vmem>>, vector<1x1x8x8xf32>,
    %119 = arith.truncf %115 : vector<8x8xf32> to vector<8x8xbf16>
    %cst_50 = arith.constant dense<0.000000e+00> : vector<8x8xf32>
    %120 = tpu.matmul %119, %98, %cst_50 {dimension_numbers = #tpu.dot_dimension_numbers<[1], [0], [0], [1], [0, 0, 1, 1], [], []>} : vector<8x8xbf16>, vector<8x8xbf16>, vector<8x8xf32> -> vector<8x8xf32>
    %121 = tpu.concatenate %45, %70, %95, %120 in 1 : vector<8x8xf32>, vector<8x8xf32>, vector<8x8xf32>, vector<8x8xf32> -> vector<8x32xf32>
    %122 = arith.truncf %121 : vector<8x32xf32> to vector<8x32xbf16>
    %c0_51 = arith.constant 0 : index
    %c0_52 = arith.constant 0 : index
    %123 = vector.load %arg8[%c0_51, %c0_52] : memref<32x32xbf16, #tpu.memory_space<vmem>>, vector<32x32xbf16>
    %cst_53 = arith.constant dense<0.000000e+00> : vector<8x32xf32>
    %124 = tpu.matmul %122, %123, %cst_53 {dimension_numbers = #tpu.dot_dimension_numbers<[1], [0], [0], [1], [0, 0, 1, 1], [], []>} : vector<8x32xbf16>, vector<32x32xbf16>, vector<8x32xf32> -> vector<8x32xf32>
    %c0_54 = arith.constant 0 : index
    %c0_55 = arith.constant 0 : index
    %125 = vector.load %arg9[%c0_54, %c0_55] : memref<1x32xf32, #tpu.memory_space<vmem>>, vector<1x32xf32>
    %126 = vector.broadcast %125 : vector<1x32xf32> to vector<8x32xf32>
    %127 = arith.addf %124, %126 : vector<8x32xf32>
    %128 = arith.addf %127, %7 : vector<8x32xf32>
    %c0_56 = arith.constant 0 : index
    %c0_57 = arith.constant 0 : index
    %129 = vector.load %arg10[%c0_56, %c0_57] : memref<1x32xf32, #tpu.memory_space<vmem>>, vector<1x32xf32>
    %c0_58 = arith.constant 0 : index
    %c0_59 = arith.constant 0 : index
    %130 = vector.load %arg11[%c0_58, %c0_59] : memref<1x32xf32, #tpu.memory_space<vmem>>, vector<1x32xf32>
    %cst_60 = arith.constant dense<0.000000e+00> : vector<8xf32>
    %131 = vector.multi_reduction <add>, %128, %cst_60 [1] : vector<8x32xf32> to vector<8xf32>
    %132 = vector.shape_cast %131 : vector<8xf32> to vector<8x1xf32>
    %cst_61 = arith.constant 3.200000e+01 : f32
    %133 = vector.broadcast %cst_61 : f32 to vector<8x1xf32>
    %134 = arith.divf %132, %133 : vector<8x1xf32>
    %135 = vector.broadcast %134 : vector<8x1xf32> to vector<8x32xf32>
    %136 = arith.subf %128, %135 : vector<8x32xf32>
    %137 = arith.mulf %136, %136 : vector<8x32xf32>
    %cst_62 = arith.constant dense<0.000000e+00> : vector<8xf32>
    %138 = vector.multi_reduction <add>, %137, %cst_62 [1] : vector<8x32xf32> to vector<8xf32>
    %139 = vector.shape_cast %138 : vector<8xf32> to vector<8x1xf32>
    %cst_63 = arith.constant 3.100000e+01 : f32
    %140 = vector.broadcast %cst_63 : f32 to vector<8x1xf32>
    %141 = arith.divf %139, %140 : vector<8x1xf32>
    %142 = math.sqrt %141 : vector<8x1xf32>
    %143 = vector.broadcast %134 : vector<8x1xf32> to vector<8x32xf32>
    %144 = arith.subf %128, %143 : vector<8x32xf32>
    %145 = vector.broadcast %129 : vector<1x32xf32> to vector<8x32xf32>
    %146 = arith.mulf %145, %144 : vector<8x32xf32>
    %cst_64 = arith.constant 9.99999997E-7 : f32
    %147 = vector.broadcast %cst_64 : f32 to vector<8x1xf32>
    %148 = arith.addf %142, %147 : vector<8x1xf32>
    %149 = vector.broadcast %148 : vector<8x1xf32> to vector<8x32xf32>
    %150 = arith.divf %146, %149 : vector<8x32xf32>
    %151 = vector.broadcast %130 : vector<1x32xf32> to vector<8x32xf32>
    %152 = arith.addf %150, %151 : vector<8x32xf32>
    %c0_65 = arith.constant 0 : index
    %c0_66 = arith.constant 0 : index
    %153 = vector.load %arg16[%c0_65, %c0_66] : memref<1x32xf32, #tpu.memory_space<vmem>>, vector<1x32xf32>
    %c0_67 = arith.constant 0 : index
    %c0_68 = arith.constant 0 : index
    %154 = vector.load %arg17[%c0_67, %c0_68] : memref<1x32xf32, #tpu.memory_space<vmem>>, vector<1x32xf32>
    %cst_69 = arith.constant dense<0.000000e+00> : vector<8xf32>
    %155 = vector.multi_reduction <add>, %152, %cst_69 [1] : vector<8x32xf32> to vector<8xf32>
    %156 = vector.shape_cast %155 : vector<8xf32> to vector<8x1xf32>
    %cst_70 = arith.constant 3.200000e+01 : f32
    %157 = vector.broadcast %cst_70 : f32 to vector<8x1xf32>
    %158 = arith.divf %156, %157 : vector<8x1xf32>
    %159 = vector.broadcast %158 : vector<8x1xf32> to vector<8x32xf32>
    %160 = arith.subf %152, %159 : vector<8x32xf32>
    %161 = arith.mulf %160, %160 : vector<8x32xf32>
    %cst_71 = arith.constant dense<0.000000e+00> : vector<8xf32>
    %162 = vector.multi_reduction <add>, %161, %cst_71 [1] : vector<8x32xf32> to vector<8xf32>
    %163 = vector.shape_cast %162 : vector<8xf32> to vector<8x1xf32>
    %cst_72 = arith.constant 3.100000e+01 : f32
    %164 = vector.broadcast %cst_72 : f32 to vector<8x1xf32>
    %165 = arith.divf %163, %164 : vector<8x1xf32>
    %166 = math.sqrt %165 : vector<8x1xf32>
    %167 = vector.broadcast %158 : vector<8x1xf32> to vector<8x32xf32>
    %168 = arith.subf %152, %167 : vector<8x32xf32>
    %169 = vector.broadcast %153 : vector<1x32xf32> to vector<8x32xf32>
    %170 = arith.mulf %169, %168 : vector<8x32xf32>
    %cst_73 = arith.constant 9.99999997E-7 : f32
    %171 = vector.broadcast %cst_73 : f32 to vector<8x1xf32>
    %172 = arith.addf %166, %171 : vector<8x1xf32>
    %173 = vector.broadcast %172 : vector<8x1xf32> to vector<8x32xf32>
    %174 = arith.divf %170, %173 : vector<8x32xf32>
    %175 = vector.broadcast %154 : vector<1x32xf32> to vector<8x32xf32>
    %176 = arith.addf %174, %175 : vector<8x32xf32>
    %177 = arith.truncf %176 : vector<8x32xf32> to vector<8x32xbf16>
    %c0_74 = arith.constant 0 : index
    %c0_75 = arith.constant 0 : index
    %178 = vector.load %arg12[%c0_74, %c0_75] : memref<32x64xbf16, #tpu.memory_space<vmem>>, vector<32x64xbf16>
    %cst_76 = arith.constant dense<0.000000e+00> : vector<8x64xf32>
    %179 = tpu.matmul %177, %178, %cst_76 {dimension_numbers = #tpu.dot_dimension_numbers<[1], [0], [0], [1], [0, 0, 1, 1], [], []>} : vector<8x32xbf16>, vector<32x64xbf16>, vector<8x64xf32> -> vector<8x64xf32>
    %c0_77 = arith.constant 0 : index
    %c0_78 = arith.constant 0 : index
    %180 = vector.load %arg13[%c0_77, %c0_78] : memref<1x64xf32, #tpu.memory_space<vmem>>, vector<1x64xf32>
    %181 = vector.broadcast %180 : vector<1x64xf32> to vector<8x64xf32>
    %182 = arith.addf %179, %181 : vector<8x64xf32>
    %cst_79 = arith.constant 0.000000e+00 : f32
    %183 = vector.broadcast %cst_79 : f32 to vector<8x64xf32>
    %184 = arith.maximumf %182, %183 : vector<8x64xf32>
    %185 = arith.truncf %184 : vector<8x64xf32> to vector<8x64xbf16>
    %c0_80 = arith.constant 0 : index
    %c0_81 = arith.constant 0 : index
    %186 = vector.load %arg14[%c0_80, %c0_81] : memref<64x32xbf16, #tpu.memory_space<vmem>>, vector<64x32xbf16>
    %cst_82 = arith.constant dense<0.000000e+00> : vector<8x32xf32>
    %187 = tpu.matmul %185, %186, %cst_82 {dimension_numbers = #tpu.dot_dimension_numbers<[1], [0], [0], [1], [0, 0, 1, 1], [], []>} : vector<8x64xbf16>, vector<64x32xbf16>, vector<8x32xf32> -> vector<8x32xf32>
    %c0_83 = arith.constant 0 : index
    %c0_84 = arith.constant 0 : index
    %188 = vector.load %arg15[%c0_83, %c0_84] : memref<1x32xf32, #tpu.memory_space<vmem>>, vector<1x32xf32>
    %189 = vector.broadcast %188 : vector<1x32xf32> to vector<8x32xf32>
    %190 = arith.addf %187, %189 : vector<8x32xf32>
    %191 = arith.addf %190, %152 : vector<8x32xf32>
    %c0_85 = arith.constant 0 : index
    %c0_86 = arith.constant 0 : index
    %c0_87 = arith.constant 0 : index
    %192 = vector.load %arg18[%c0_85, %c0_86, %c0_87] : memref<1x8x32xf32, #tpu.memory_space<vmem>>, vector<1x8x32xf32>
    %193 = vector.shape_cast %192 : vector<1x8x32xf32> to vector<8x32xf32>
    %194 = vector.shape_cast %191 : vector<8x32xf32> to vector<1x8x32xf32>
    tpu.vector_store %arg18[%c0_85, %c0_86, %c0_87], %194 {strides = array<i32>} : memref<1x8x32xf32, #tpu.memory_space<vmem>>, vector<1x8x32xf32>,
    return
  }
  func.func @transform_0(%arg0: i32, %arg1: i32) -> (i32, i32, i32) {
    %c0_i32 = arith.constant 0 : i32
    %c0_i32_0 = arith.constant 0 : i32
    %c0_i32_1 = arith.constant 0 : i32
    return %arg0, %c0_i32, %c0_i32_0 : i32, i32, i32
  }
  func.func @transform_1(%arg0: i32, %arg1: i32) -> (i32, i32, i32, i32) {
    %c0_i32 = arith.constant 0 : i32
    %c0_i32_0 = arith.constant 0 : i32
    %c0_i32_1 = arith.constant 0 : i32
    return %arg0, %c0_i32, %arg1, %c0_i32_0 : i32, i32, i32, i32
  }
  func.func @transform_2(%arg0: i32, %arg1: i32) -> (i32, i32) {
    %c0_i32 = arith.constant 0 : i32
    %c0_i32_0 = arith.constant 0 : i32
    %c0_i32_1 = arith.constant 0 : i32
    return %c0_i32, %c0_i32_0 : i32, i32
  }
  func.func @transform_3(%arg0: i32, %arg1: i32) -> (i32, i32) {
    %c0_i32 = arith.constant 0 : i32
    %c0_i32_0 = arith.constant 0 : i32
    %c0_i32_1 = arith.constant 0 : i32
    return %c0_i32, %c0_i32_0 : i32, i32
  }
  func.func @transform_4(%arg0: i32, %arg1: i32) -> (i32, i32) {
    %c0_i32 = arith.constant 0 : i32
    %c0_i32_0 = arith.constant 0 : i32
    %c0_i32_1 = arith.constant 0 : i32
    return %c0_i32, %c0_i32_0 : i32, i32
  }
  func.func @transform_5(%arg0: i32, %arg1: i32) -> (i32, i32) {
    %c0_i32 = arith.constant 0 : i32
    %c0_i32_0 = arith.constant 0 : i32
    %c0_i32_1 = arith.constant 0 : i32
    return %c0_i32, %c0_i32_0 : i32, i32
  }
  func.func @transform_6(%arg0: i32, %arg1: i32) -> (i32, i32) {
    %c0_i32 = arith.constant 0 : i32
    %c0_i32_0 = arith.constant 0 : i32
    %c0_i32_1 = arith.constant 0 : i32
    return %c0_i32, %c0_i32_0 : i32, i32
  }
  func.func @transform_7(%arg0: i32, %arg1: i32) -> (i32, i32) {
    %c0_i32 = arith.constant 0 : i32
    %c0_i32_0 = arith.constant 0 : i32
    %c0_i32_1 = arith.constant 0 : i32
    return %c0_i32, %c0_i32_0 : i32, i32
  }
  func.func @transform_8(%arg0: i32, %arg1: i32) -> (i32, i32) {
    %c0_i32 = arith.constant 0 : i32
    %c0_i32_0 = arith.constant 0 : i32
    %c0_i32_1 = arith.constant 0 : i32
    return %c0_i32, %c0_i32_0 : i32, i32
  }
  func.func @transform_9(%arg0: i32, %arg1: i32) -> (i32, i32) {
    %c0_i32 = arith.constant 0 : i32
    %c0_i32_0 = arith.constant 0 : i32
    %c0_i32_1 = arith.constant 0 : i32
    return %c0_i32, %c0_i32_0 : i32, i32
  }
  func.func @transform_10(%arg0: i32, %arg1: i32) -> (i32, i32) {
    %c0_i32 = arith.constant 0 : i32
    %c0_i32_0 = arith.constant 0 : i32
    %c0_i32_1 = arith.constant 0 : i32
    return %c0_i32, %c0_i32_0 : i32, i32
  }
  func.func @transform_11(%arg0: i32, %arg1: i32) -> (i32, i32) {
    %c0_i32 = arith.constant 0 : i32
    %c0_i32_0 = arith.constant 0 : i32
    %c0_i32_1 = arith.constant 0 : i32
    return %c0_i32, %c0_i32_0 : i32, i32
  }
  func.func @transform_12(%arg0: i32, %arg1: i32) -> (i32, i32) {
    %c0_i32 = arith.constant 0 : i32
    %c0_i32_0 = arith.constant 0 : i32
    %c0_i32_1 = arith.constant 0 : i32
    return %c0_i32, %c0_i32_0 : i32, i32
  }
  func.func @transform_13(%arg0: i32, %arg1: i32) -> (i32, i32) {
    %c0_i32 = arith.constant 0 : i32
    %c0_i32_0 = arith.constant 0 : i32
    %c0_i32_1 = arith.constant 0 : i32
    return %c0_i32, %c0_i32_0 : i32, i32
  }
  func.func @transform_14(%arg0: i32, %arg1: i32) -> (i32, i32) {
    %c0_i32 = arith.constant 0 : i32
    %c0_i32_0 = arith.constant 0 : i32
    %c0_i32_1 = arith.constant 0 : i32
    return %c0_i32, %c0_i32_0 : i32, i32
  }
  func.func @transform_15(%arg0: i32, %arg1: i32) -> (i32, i32) {
    %c0_i32 = arith.constant 0 : i32
    %c0_i32_0 = arith.constant 0 : i32
    %c0_i32_1 = arith.constant 0 : i32
    return %c0_i32, %c0_i32_0 : i32, i32
  }
  func.func @transform_16(%arg0: i32, %arg1: i32) -> (i32, i32, i32) {
    %c0_i32 = arith.constant 0 : i32
    %c0_i32_0 = arith.constant 0 : i32
    return %arg0, %arg1, %c0_i32 : i32, i32, i32
  }
  func.func @transform_17(%arg0: i32, %arg1: i32) -> (i32, i32, i32, i32) {
    %c0_i32 = arith.constant 0 : i32
    %c0_i32_0 = arith.constant 0 : i32
    %c0_i32_1 = arith.constant 0 : i32
    return %arg0, %c0_i32, %arg1, %c0_i32_0 : i32, i32, i32, i32
  }
}

module attributes {stable_mosaic.version = 11 : i64} {
  func.func @encoder_layer_kernel(%arg0: i32, %arg1: i32, %arg2: memref<1x8x32xf32, #tpu.memory_space<vmem>>, %arg3: memref<1x4x8x8xi8, #tpu.memory_space<vmem>>, %arg4: memref<32x32xbf16, #tpu.memory_space<vmem>>, %arg5: memref<1x32xf32, #tpu.memory_space<vmem>>, %arg6: memref<32x64xbf16, #tpu.memory_space<vmem>>, %arg7: memref<1x64xf32, #tpu.memory_space<vmem>>, %arg8: memref<32x32xbf16, #tpu.memory_space<vmem>>, %arg9: memref<1x32xf32, #tpu.memory_space<vmem>>, %arg10: memref<1x32xf32, #tpu.memory_space<vmem>>, %arg11: memref<1x32xf32, #tpu.memory_space<vmem>>, %arg12: memref<32x64xbf16, #tpu.memory_space<vmem>>, %arg13: memref<1x64xf32, #tpu.memory_space<vmem>>, %arg14: memref<64x32xbf16, #tpu.memory_space<vmem>>, %arg15: memref<1x32xf32, #tpu.memory_space<vmem>>, %arg16: memref<1x32xf32, #tpu.memory_space<vmem>>, %arg17: memref<1x32xf32, #tpu.memory_space<vmem>>, %arg18: memref<1x8x32xf32, #tpu.memory_space<vmem>>, %arg19: memref<1x4x8x8xf32, #tpu.memory_space<vmem>>, %arg20: memref<8x32xbf16, #tpu.memory_space<vmem>>, %arg21: memref<8x32xbf16, #tpu.memory_space<vmem>>) attributes {dimension_semantics = [#tpu.dimension_semantics<parallel>, #tpu.dimension_semantics<arbitrary>], iteration_bounds = array<i64: 2, 1>, scalar_prefetch = 0 : i64, scratch_operands = 2 : i64, tpu.core_type = #tpu.core_type<tc>, window_params = [{transform_indices = @transform_0, window_bounds = array<i64: 1, 8, 32>}, {transform_indices = @transform_1, window_bounds = array<i64: 1, 4, 8, 8>}, {pipeline_mode = #tpu.pipeline_mode<synchronous>, transform_indices = @transform_2, window_bounds = array<i64: 32, 32>}, {pipeline_mode = #tpu.pipeline_mode<synchronous>, transform_indices = @transform_3, window_bounds = array<i64: 1, 32>}, {pipeline_mode = #tpu.pipeline_mode<synchronous>, transform_indices = @transform_4, window_bounds = array<i64: 32, 64>}, {pipeline_mode = #tpu.pipeline_mode<synchronous>, transform_indices = @transform_5, window_bounds = array<i64: 1, 64>}, {pipeline_mode = #tpu.pipeline_mode<synchronous>, transform_indices = @transform_6, window_bounds = array<i64: 32, 32>}, {pipeline_mode = #tpu.pipeline_mode<synchronous>, transform_indices = @transform_7, window_bounds = array<i64: 1, 32>}, {pipeline_mode = #tpu.pipeline_mode<synchronous>, transform_indices = @transform_8, window_bounds = array<i64: 1, 32>}, {pipeline_mode = #tpu.pipeline_mode<synchronous>, transform_indices = @transform_9, window_bounds = array<i64: 1, 32>}, {pipeline_mode = #tpu.pipeline_mode<synchronous>, transform_indices = @transform_10, window_bounds = array<i64: 32, 64>}, {pipeline_mode = #tpu.pipeline_mode<synchronous>, transform_indices = @transform_11, window_bounds = array<i64: 1, 64>}, {pipeline_mode = #tpu.pipeline_mode<synchronous>, transform_indices = @transform_12, window_bounds = array<i64: 64, 32>}, {pipeline_mode = #tpu.pipeline_mode<synchronous>, transform_indices = @transform_13, window_bounds = array<i64: 1, 32>}, {pipeline_mode = #tpu.pipeline_mode<synchronous>, transform_indices = @transform_14, window_bounds = array<i64: 1, 32>}, {pipeline_mode = #tpu.pipeline_mode<synchronous>, transform_indices = @transform_15, window_bounds = array<i64: 1, 32>}, {transform_indices = @transform_16, window_bounds = array<i64: 1, 8, 32>}, {transform_indices = @transform_17, window_bounds = array<i64: 1, 4, 8, 8>}]} {
    %c8_i32 = arith.constant 8 : i32
    %0 = arith.muli %arg1, %c8_i32 : i32
    %1 = tpu.assume_multiple %0, 8 : i32
    %c0_i32 = arith.constant 0 : i32
    %2 = arith.cmpi eq, %arg1, %c0_i32 : i32
    %3 = arith.extui %2 : i1 to i32
    %c0_i32_0 = arith.constant 0 : i32
    %4 = arith.cmpi ne, %3, %c0_i32_0 : i32
    scf.if %4 {
      %c0_88 = arith.constant 0 : index
      %c0_89 = arith.constant 0 : index
      %c0_90 = arith.constant 0 : index
      %195 = vector.load %arg2[%c0_88, %c0_89, %c0_90] : memref<1x8x32xf32, #tpu.memory_space<vmem>>, vector<1x8x32xf32>
      %196 = vector.shape_cast %195 : vector<1x8x32xf32> to vector<8x32xf32>
      %197 = arith.truncf %196 : vector<8x32xf32> to vector<8x32xbf16>
      %c0_91 = arith.constant 0 : index
      %c0_92 = arith.constant 0 : index
      %198 = vector.load %arg6[%c0_91, %c0_92] : memref<32x64xbf16, #tpu.memory_space<vmem>>, vector<32x64xbf16>
      %cst_93 = arith.constant dense<0.000000e+00> : vector<8x64xf32>
      %199 = tpu.matmul %197, %198, %cst_93 {dimension_numbers = #tpu.dot_dimension_numbers<[1], [0], [0], [1], [0, 0, 1, 1], [], []>} : vector<8x32xbf16>, vector<32x64xbf16>, vector<8x64xf32> -> vector<8x64xf32>
      %c0_94 = arith.constant 0 : index
      %c0_95 = arith.constant 0 : index
      %200 = vector.load %arg7[%c0_94, %c0_95] : memref<1x64xf32, #tpu.memory_space<vmem>>, vector<1x64xf32>
      %201 = vector.broadcast %200 : vector<1x64xf32> to vector<8x64xf32>
      %202 = arith.addf %199, %201 : vector<8x64xf32>
      %203 = vector.extract_strided_slice %202 {offsets = [0, 0], sizes = [8, 32], strides = [1, 1]} : vector<8x64xf32> to vector<8x32xf32>
      %204 = arith.truncf %203 : vector<8x32xf32> to vector<8x32xbf16>
      %c0_96 = arith.constant 0 : index
      %c0_97 = arith.constant 0 : index
      %205 = vector.load %arg20[%c0_96, %c0_97] : memref<8x32xbf16, #tpu.memory_space<vmem>>, vector<8x32xbf16>
      tpu.vector_store %arg20[%c0_96, %c0_97], %204 {strides = array<i32>} : memref<8x32xbf16, #tpu.memory_space<vmem>>, vector<8x32xbf16>,
      %206 = vector.extract_strided_slice %202 {offsets = [0, 32], sizes = [8, 32], strides = [1, 1]} : vector<8x64xf32> to vector<8x32xf32>
      %207 = arith.truncf %206 : vector<8x32xf32> to vector<8x32xbf16>
      %c0_98 = arith.constant 0 : index
      %c0_99 = arith.constant 0 : index
      %208 = vector.load %arg21[%c0_98, %c0_99] : memref<8x32xbf16, #tpu.memory_space<vmem>>, vector<8x32xbf16>
      tpu.vector_store %arg21[%c0_98, %c0_99], %207 {strides = array<i32>} : memref<8x32xbf16, #tpu.memory_space<vmem>>, vector<8x32xbf16>,
    } else {
    }
    %c0 = arith.constant 0 : index
    %5 = arith.index_cast %1 : i32 to index
    %c0_1 = arith.constant 0 : index
    %6 = vector.load %arg2[%c0, %5, %c0_1] : memref<1x8x32xf32, #tpu.memory_space<vmem>>, vector<1x8x32xf32>
    %7 = vector.shape_cast %6 : vector<1x8x32xf32> to vector<8x32xf32>
    %8 = arith.truncf %7 : vector<8x32xf32> to vector<8x32xbf16>
    %c0_2 = arith.constant 0 : index
    %c0_3 = arith.constant 0 : index
    %9 = vector.load %arg4[%c0_2, %c0_3] : memref<32x32xbf16, #tpu.memory_space<vmem>>, vector<32x32xbf16>
    %cst = arith.constant dense<0.000000e+00> : vector<8x32xf32>
    %10 = tpu.matmul %8, %9, %cst {dimension_numbers = #tpu.dot_dimension_numbers<[1], [0], [0], [1], [0, 0, 1, 1], [], []>} : vector<8x32xbf16>, vector<32x32xbf16>, vector<8x32xf32> -> vector<8x32xf32>
    %c0_4 = arith.constant 0 : index
    %c0_5 = arith.constant 0 : index
    %11 = vector.load %arg5[%c0_4, %c0_5] : memref<1x32xf32, #tpu.memory_space<vmem>>, vector<1x32xf32>
    %12 = vector.broadcast %11 : vector<1x32xf32> to vector<8x32xf32>
    %13 = arith.addf %10, %12 : vector<8x32xf32>
    %cst_6 = arith.constant 0.353553385 : f32
    %14 = vector.broadcast %cst_6 : f32 to vector<8x32xf32>
    %15 = arith.mulf %13, %14 : vector<8x32xf32>
    %16 = arith.truncf %15 : vector<8x32xf32> to vector<8x32xbf16>
    %c0_7 = arith.constant 0 : index
    %c0_8 = arith.constant 0 : index
    %17 = vector.load %arg20[%c0_7, %c0_8] : memref<8x32xbf16, #tpu.memory_space<vmem>>, vector<8x32xbf16>
    %c0_9 = arith.constant 0 : index
    %c0_10 = arith.constant 0 : index
    %18 = vector.load %arg21[%c0_9, %c0_10] : memref<8x32xbf16, #tpu.memory_space<vmem>>, vector<8x32xbf16>
    %c0_11 = arith.constant 0 : index
    %c0_12 = arith.constant 0 : index
    %c0_13 = arith.constant 0 : index
    %c0_14 = arith.constant 0 : index
    %19 = vector.load %arg3[%c0_11, %c0_12, %c0_13, %c0_14] : memref<1x4x8x8xi8, #tpu.memory_space<vmem>>, vector<1x4x8x8xi8>
    %20 = vector.shape_cast %19 : vector<1x4x8x8xi8> to vector<4x8x8xi8>
    %21 = vector.extract_strided_slice %16 {offsets = [0, 0], sizes = [8, 8], strides = [1, 1]} : vector<8x32xbf16> to vector<8x8xbf16>
    %22 = vector.extract_strided_slice %17 {offsets = [0, 0], sizes = [8, 8], strides = [1, 1]} : vector<8x32xbf16> to vector<8x8xbf16>
    %23 = vector.extract_strided_slice %18 {offsets = [0, 0], sizes = [8, 8], strides = [1, 1]} : vector<8x32xbf16> to vector<8x8xbf16>
    %cst_15 = arith.constant dense<0.000000e+00> : vector<8x8xf32>
    %24 = tpu.matmul %21, %22, %cst_15 {dimension_numbers = #tpu.dot_dimension_numbers<[1], [1], [0], [0], [0, 0, 1, 0], [], []>} : vector<8x8xbf16>, vector<8x8xbf16>, vector<8x8xf32> -> vector<8x8xf32>
    %25 = vector.extract_strided_slice %20 {offsets = [0, 0, 0], sizes = [1, 8, 8], strides = [1, 1, 1]} : vector<4x8x8xi8> to vector<1x8x8xi8>
    %26 = vector.shape_cast %25 : vector<1x8x8xi8> to vector<8x8xi8>
    %c0_i8 = arith.constant 0 : i8
    %27 = vector.broadcast %c0_i8 : i8 to vector<8x8xi8>
    %28 = arith.cmpi ne, %26, %27 : vector<8x8xi8>
    %cst_16 = arith.constant -9.99999984E+17 : f32
    %29 = vector.broadcast %cst_16 : f32 to vector<8x8xf32>
    %30 = arith.select %28, %29, %24 : vector<8x8xi1>, vector<8x8xf32>
    %cst_17 = arith.constant dense<0xFF800000> : vector<8xf32>
    %31 = vector.multi_reduction <maximumf>, %30, %cst_17 [1] : vector<8x8xf32> to vector<8xf32>
    %32 = vector.shape_cast %31 : vector<8xf32> to vector<8x1xf32>
    %33 = vector.broadcast %32 : vector<8x1xf32> to vector<8x8xf32>
    %34 = arith.subf %30, %33 : vector<8x8xf32>
    %35 = math.exp %34 : vector<8x8xf32>
    %cst_18 = arith.constant dense<0.000000e+00> : vector<8xf32>
    %36 = vector.multi_reduction <add>, %35, %cst_18 [1] : vector<8x8xf32> to vector<8xf32>
    %37 = vector.shape_cast %36 : vector<8xf32> to vector<8x1xf32>
    %38 = tpu.reciprocal %37 {approx = true} : vector<8x1xf32> -> vector<8x1xf32>
    %39 = vector.broadcast %38 : vector<8x1xf32> to vector<8x8xf32>
    %40 = arith.mulf %35, %39 : vector<8x8xf32>
    %c0_19 = arith.constant 0 : index
    %c0_20 = arith.constant 0 : index
    %c0_21 = arith.constant 0 : index
    %c0_22 = arith.constant 0 : index
    %41 = vector.load %arg19[%c0_19, %c0_20, %c0_21, %c0_22] : memref<1x4x8x8xf32, #tpu.memory_space<vmem>>, vector<1x1x8x8xf32>
    %42 = vector.shape_cast %41 : vector<1x1x8x8xf32> to vector<8x8xf32>
    %43 = vector.shape_cast %40 : vector<8x8xf32> to vector<1x1x8x8xf32>
    tpu.vector_store %arg19[%c0_19, %c0_20, %c0_21, %c0_22], %43 {strides = array<i32>} : memref<1x4x8x8xf32, #tpu.memory_space<vmem>>, vector<1x1x8x8xf32>,
    %44 = arith.truncf %40 : vector<8x8xf32> to vector<8x8xbf16>
    %cst_23 = arith.constant dense<0.000000e+00> : vector<8x8xf32>
    %45 = tpu.matmul %44, %23, %cst_23 {dimension_numbers = #tpu.dot_dimension_numbers<[1], [0], [0], [1], [0, 0, 1, 1], [], []>} : vector<8x8xbf16>, vector<8x8xbf16>, vector<8x8xf32> -> vector<8x8xf32>
    %46 = vector.extract_strided_slice %16 {offsets = [0, 8], sizes = [8, 8], strides = [1, 1]} : vector<8x32xbf16> to vector<8x8xbf16>
    %47 = vector.extract_strided_slice %17 {offsets = [0, 8], sizes = [8, 8], strides = [1, 1]} : vector<8x32xbf16> to vector<8x8xbf16>
    %48 = vector.extract_strided_slice %18 {offsets = [0, 8], sizes = [8, 8], strides = [1, 1]} : vector<8x32xbf16> to vector<8x8xbf16>
    %cst_24 = arith.constant dense<0.000000e+00> : vector<8x8xf32>
    %49 = tpu.matmul %46, %47, %cst_24 {dimension_numbers = #tpu.dot_dimension_numbers<[1], [1], [0], [0], [0, 0, 1, 0], [], []>} : vector<8x8xbf16>, vector<8x8xbf16>, vector<8x8xf32> -> vector<8x8xf32>
    %50 = vector.extract_strided_slice %20 {offsets = [1, 0, 0], sizes = [1, 8, 8], strides = [1, 1, 1]} : vector<4x8x8xi8> to vector<1x8x8xi8>
    %51 = vector.shape_cast %50 : vector<1x8x8xi8> to vector<8x8xi8>
    %c0_i8_25 = arith.constant 0 : i8
    %52 = vector.broadcast %c0_i8_25 : i8 to vector<8x8xi8>
    %53 = arith.cmpi ne, %51, %52 : vector<8x8xi8>
    %cst_26 = arith.constant -9.99999984E+17 : f32
    %54 = vector.broadcast %cst_26 : f32 to vector<8x8xf32>
    %55 = arith.select %53, %54, %49 : vector<8x8xi1>, vector<8x8xf32>
    %cst_27 = arith.constant dense<0xFF800000> : vector<8xf32>
    %56 = vector.multi_reduction <maximumf>, %55, %cst_27 [1] : vector<8x8xf32> to vector<8xf32>
    %57 = vector.shape_cast %56 : vector<8xf32> to vector<8x1xf32>
    %58 = vector.broadcast %57 : vector<8x1xf32> to vector<8x8xf32>
    %59 = arith.subf %55, %58 : vector<8x8xf32>
    %60 = math.exp %59 : vector<8x8xf32>
    %cst_28 = arith.constant dense<0.000000e+00> : vector<8xf32>
    %61 = vector.multi_reduction <add>, %60, %cst_28 [1] : vector<8x8xf32> to vector<8xf32>
    %62 = vector.shape_cast %61 : vector<8xf32> to vector<8x1xf32>
    %63 = tpu.reciprocal %62 {approx = true} : vector<8x1xf32> -> vector<8x1xf32>
    %64 = vector.broadcast %63 : vector<8x1xf32> to vector<8x8xf32>
    %65 = arith.mulf %60, %64 : vector<8x8xf32>
    %c0_29 = arith.constant 0 : index
    %c1 = arith.constant 1 : index
    %c0_30 = arith.constant 0 : index
    %c0_31 = arith.constant 0 : index
    %66 = vector.load %arg19[%c0_29, %c1, %c0_30, %c0_31] : memref<1x4x8x8xf32, #tpu.memory_space<vmem>>, vector<1x1x8x8xf32>
    %67 = vector.shape_cast %66 : vector<1x1x8x8xf32> to vector<8x8xf32>
    %68 = vector.shape_cast %65 : vector<8x8xf32> to vector<1x1x8x8xf32>
    tpu.vector_store %arg19[%c0_29, %c1, %c0_30, %c0_31], %68 {strides = array<i32>} : memref<1x4x8x8xf32, #tpu.memory_space<vmem>>, vector<1x1x8x8xf32>,
    %69 = arith.truncf %65 : vector<8x8xf32> to vector<8x8xbf16>
    %cst_32 = arith.constant dense<0.000000e+00> : vector<8x8xf32>
    %70 = tpu.matmul %69, %48, %cst_32 {dimension_numbers = #tpu.dot_dimension_numbers<[1], [0], [0], [1], [0, 0, 1, 1], [], []>} : vector<8x8xbf16>, vector<8x8xbf16>, vector<8x8xf32> -> vector<8x8xf32>
    %71 = vector.extract_strided_slice %16 {offsets = [0, 16], sizes = [8, 8], strides = [1, 1]} : vector<8x32xbf16> to vector<8x8xbf16>
    %72 = vector.extract_strided_slice %17 {offsets = [0, 16], sizes = [8, 8], strides = [1, 1]} : vector<8x32xbf16> to vector<8x8xbf16>
    %73 = vector.extract_strided_slice %18 {offsets = [0, 16], sizes = [8, 8], strides = [1, 1]} : vector<8x32xbf16> to vector<8x8xbf16>
    %cst_33 = arith.constant dense<0.000000e+00> : vector<8x8xf32>
    %74 = tpu.matmul %71, %72, %cst_33 {dimension_numbers = #tpu.dot_dimension_numbers<[1], [1], [0], [0], [0, 0, 1, 0], [], []>} : vector<8x8xbf16>, vector<8x8xbf16>, vector<8x8xf32> -> vector<8x8xf32>
    %75 = vector.extract_strided_slice %20 {offsets = [2, 0, 0], sizes = [1, 8, 8], strides = [1, 1, 1]} : vector<4x8x8xi8> to vector<1x8x8xi8>
    %76 = vector.shape_cast %75 : vector<1x8x8xi8> to vector<8x8xi8>
    %c0_i8_34 = arith.constant 0 : i8
    %77 = vector.broadcast %c0_i8_34 : i8 to vector<8x8xi8>
    %78 = arith.cmpi ne, %76, %77 : vector<8x8xi8>
    %cst_35 = arith.constant -9.99999984E+17 : f32
    %79 = vector.broadcast %cst_35 : f32 to vector<8x8xf32>
    %80 = arith.select %78, %79, %74 : vector<8x8xi1>, vector<8x8xf32>
    %cst_36 = arith.constant dense<0xFF800000> : vector<8xf32>
    %81 = vector.multi_reduction <maximumf>, %80, %cst_36 [1] : vector<8x8xf32> to vector<8xf32>
    %82 = vector.shape_cast %81 : vector<8xf32> to vector<8x1xf32>
    %83 = vector.broadcast %82 : vector<8x1xf32> to vector<8x8xf32>
    %84 = arith.subf %80, %83 : vector<8x8xf32>
    %85 = math.exp %84 : vector<8x8xf32>
    %cst_37 = arith.constant dense<0.000000e+00> : vector<8xf32>
    %86 = vector.multi_reduction <add>, %85, %cst_37 [1] : vector<8x8xf32> to vector<8xf32>
    %87 = vector.shape_cast %86 : vector<8xf32> to vector<8x1xf32>
    %88 = tpu.reciprocal %87 {approx = true} : vector<8x1xf32> -> vector<8x1xf32>
    %89 = vector.broadcast %88 : vector<8x1xf32> to vector<8x8xf32>
    %90 = arith.mulf %85, %89 : vector<8x8xf32>
    %c0_38 = arith.constant 0 : index
    %c2 = arith.constant 2 : index
    %c0_39 = arith.constant 0 : index
    %c0_40 = arith.constant 0 : index
    %91 = vector.load %arg19[%c0_38, %c2, %c0_39, %c0_40] : memref<1x4x8x8xf32, #tpu.memory_space<vmem>>, vector<1x1x8x8xf32>
    %92 = vector.shape_cast %91 : vector<1x1x8x8xf32> to vector<8x8xf32>
    %93 = vector.shape_cast %90 : vector<8x8xf32> to vector<1x1x8x8xf32>
    tpu.vector_store %arg19[%c0_38, %c2, %c0_39, %c0_40], %93 {strides = array<i32>} : memref<1x4x8x8xf32, #tpu.memory_space<vmem>>, vector<1x1x8x8xf32>,
    %94 = arith.truncf %90 : vector<8x8xf32> to vector<8x8xbf16>
    %cst_41 = arith.constant dense<0.000000e+00> : vector<8x8xf32>
    %95 = tpu.matmul %94, %73, %cst_41 {dimension_numbers = #tpu.dot_dimension_numbers<[1], [0], [0], [1], [0, 0, 1, 1], [], []>} : vector<8x8xbf16>, vector<8x8xbf16>, vector<8x8xf32> -> vector<8x8xf32>
    %96 = vector.extract_strided_slice %16 {offsets = [0, 24], sizes = [8, 8], strides = [1, 1]} : vector<8x32xbf16> to vector<8x8xbf16>
    %97 = vector.extract_strided_slice %17 {offsets = [0, 24], sizes = [8, 8], strides = [1, 1]} : vector<8x32xbf16> to vector<8x8xbf16>
    %98 = vector.extract_strided_slice %18 {offsets = [0, 24], sizes = [8, 8], strides = [1, 1]} : vector<8x32xbf16> to vector<8x8xbf16>
    %cst_42 = arith.constant dense<0.000000e+00> : vector<8x8xf32>
    %99 = tpu.matmul %96, %97, %cst_42 {dimension_numbers = #tpu.dot_dimension_numbers<[1], [1], [0], [0], [0, 0, 1, 0], [], []>} : vector<8x8xbf16>, vector<8x8xbf16>, vector<8x8xf32> -> vector<8x8xf32>
    %100 = vector.extract_strided_slice %20 {offsets = [3, 0, 0], sizes = [1, 8, 8], strides = [1, 1, 1]} : vector<4x8x8xi8> to vector<1x8x8xi8>
    %101 = vector.shape_cast %100 : vector<1x8x8xi8> to vector<8x8xi8>
    %c0_i8_43 = arith.constant 0 : i8
    %102 = vector.broadcast %c0_i8_43 : i8 to vector<8x8xi8>
    %103 = arith.cmpi ne, %101, %102 : vector<8x8xi8>
    %cst_44 = arith.constant -9.99999984E+17 : f32
    %104 = vector.broadcast %cst_44 : f32 to vector<8x8xf32>
    %105 = arith.select %103, %104, %99 : vector<8x8xi1>, vector<8x8xf32>
    %cst_45 = arith.constant dense<0xFF800000> : vector<8xf32>
    %106 = vector.multi_reduction <maximumf>, %105, %cst_45 [1] : vector<8x8xf32> to vector<8xf32>
    %107 = vector.shape_cast %106 : vector<8xf32> to vector<8x1xf32>
    %108 = vector.broadcast %107 : vector<8x1xf32> to vector<8x8xf32>
    %109 = arith.subf %105, %108 : vector<8x8xf32>
    %110 = math.exp %109 : vector<8x8xf32>
    %cst_46 = arith.constant dense<0.000000e+00> : vector<8xf32>
    %111 = vector.multi_reduction <add>, %110, %cst_46 [1] : vector<8x8xf32> to vector<8xf32>
    %112 = vector.shape_cast %111 : vector<8xf32> to vector<8x1xf32>
    %113 = tpu.reciprocal %112 {approx = true} : vector<8x1xf32> -> vector<8x1xf32>
    %114 = vector.broadcast %113 : vector<8x1xf32> to vector<8x8xf32>
    %115 = arith.mulf %110, %114 : vector<8x8xf32>
    %c0_47 = arith.constant 0 : index
    %c3 = arith.constant 3 : index
    %c0_48 = arith.constant 0 : index
    %c0_49 = arith.constant 0 : index
    %116 = vector.load %arg19[%c0_47, %c3, %c0_48, %c0_49] : memref<1x4x8x8xf32, #tpu.memory_space<vmem>>, vector<1x1x8x8xf32>
    %117 = vector.shape_cast %116 : vector<1x1x8x8xf32> to vector<8x8xf32>
    %118 = vector.shape_cast %115 : vector<8x8xf32> to vector<1x1x8x8xf32>
    tpu.vector_store %arg19[%c0_47, %c3, %c0_48, %c0_49], %118 {strides = array<i32>} : memref<1x4x8x8xf32, #tpu.memory_space<vmem>>, vector<1x1x8x8xf32>,
    %119 = arith.truncf %115 : vector<8x8xf32> to vector<8x8xbf16>
    %cst_50 = arith.constant dense<0.000000e+00> : vector<8x8xf32>
    %120 = tpu.matmul %119, %98, %cst_50 {dimension_numbers = #tpu.dot_dimension_numbers<[1], [0], [0], [1], [0, 0, 1, 1], [], []>} : vector<8x8xbf16>, vector<8x8xbf16>, vector<8x8xf32> -> vector<8x8xf32>
    %121 = tpu.concatenate %45, %70, %95, %120 in 1 : vector<8x8xf32>, vector<8x8xf32>, vector<8x8xf32>, vector<8x8xf32> -> vector<8x32xf32>
    %122 = arith.truncf %121 : vector<8x32xf32> to vector<8x32xbf16>
    %c0_51 = arith.constant 0 : index
    %c0_52 = arith.constant 0 : index
    %123 = vector.load %arg8[%c0_51, %c0_52] : memref<32x32xbf16, #tpu.memory_space<vmem>>, vector<32x32xbf16>
    %cst_53 = arith.constant dense<0.000000e+00> : vector<8x32xf32>
    %124 = tpu.matmul %122, %123, %cst_53 {dimension_numbers = #tpu.dot_dimension_numbers<[1], [0], [0], [1], [0, 0, 1, 1], [], []>} : vector<8x32xbf16>, vector<32x32xbf16>, vector<8x32xf32> -> vector<8x32xf32>
    %c0_54 = arith.constant 0 : index
    %c0_55 = arith.constant 0 : index
    %125 = vector.load %arg9[%c0_54, %c0_55] : memref<1x32xf32, #tpu.memory_space<vmem>>, vector<1x32xf32>
    %126 = vector.broadcast %125 : vector<1x32xf32> to vector<8x32xf32>
    %127 = arith.addf %124, %126 : vector<8x32xf32>
    %128 = arith.addf %127, %7 : vector<8x32xf32>
    %c0_56 = arith.constant 0 : index
    %c0_57 = arith.constant 0 : index
    %129 = vector.load %arg10[%c0_56, %c0_57] : memref<1x32xf32, #tpu.memory_space<vmem>>, vector<1x32xf32>
    %c0_58 = arith.constant 0 : index
    %c0_59 = arith.constant 0 : index
    %130 = vector.load %arg11[%c0_58, %c0_59] : memref<1x32xf32, #tpu.memory_space<vmem>>, vector<1x32xf32>
    %cst_60 = arith.constant dense<0.000000e+00> : vector<8xf32>
    %131 = vector.multi_reduction <add>, %128, %cst_60 [1] : vector<8x32xf32> to vector<8xf32>
    %132 = vector.shape_cast %131 : vector<8xf32> to vector<8x1xf32>
    %cst_61 = arith.constant 3.200000e+01 : f32
    %133 = vector.broadcast %cst_61 : f32 to vector<8x1xf32>
    %134 = arith.divf %132, %133 : vector<8x1xf32>
    %135 = vector.broadcast %134 : vector<8x1xf32> to vector<8x32xf32>
    %136 = arith.subf %128, %135 : vector<8x32xf32>
    %137 = arith.mulf %136, %136 : vector<8x32xf32>
    %cst_62 = arith.constant dense<0.000000e+00> : vector<8xf32>
    %138 = vector.multi_reduction <add>, %137, %cst_62 [1] : vector<8x32xf32> to vector<8xf32>
    %139 = vector.shape_cast %138 : vector<8xf32> to vector<8x1xf32>
    %cst_63 = arith.constant 3.100000e+01 : f32
    %140 = vector.broadcast %cst_63 : f32 to vector<8x1xf32>
    %141 = arith.divf %139, %140 : vector<8x1xf32>
    %142 = math.sqrt %141 : vector<8x1xf32>
    %143 = vector.broadcast %134 : vector<8x1xf32> to vector<8x32xf32>
    %144 = arith.subf %128, %143 : vector<8x32xf32>
    %145 = vector.broadcast %129 : vector<1x32xf32> to vector<8x32xf32>
    %146 = arith.mulf %145, %144 : vector<8x32xf32>
    %cst_64 = arith.constant 9.99999997E-7 : f32
    %147 = vector.broadcast %cst_64 : f32 to vector<8x1xf32>
    %148 = arith.addf %142, %147 : vector<8x1xf32>
    %149 = vector.broadcast %148 : vector<8x1xf32> to vector<8x32xf32>
    %150 = arith.divf %146, %149 : vector<8x32xf32>
    %151 = vector.broadcast %130 : vector<1x32xf32> to vector<8x32xf32>
    %152 = arith.addf %150, %151 : vector<8x32xf32>
    %c0_65 = arith.constant 0 : index
    %c0_66 = arith.constant 0 : index
    %153 = vector.load %arg16[%c0_65, %c0_66] : memref<1x32xf32, #tpu.memory_space<vmem>>, vector<1x32xf32>
    %c0_67 = arith.constant 0 : index
    %c0_68 = arith.constant 0 : index
    %154 = vector.load %arg17[%c0_67, %c0_68] : memref<1x32xf32, #tpu.memory_space<vmem>>, vector<1x32xf32>
    %cst_69 = arith.constant dense<0.000000e+00> : vector<8xf32>
    %155 = vector.multi_reduction <add>, %152, %cst_69 [1] : vector<8x32xf32> to vector<8xf32>
    %156 = vector.shape_cast %155 : vector<8xf32> to vector<8x1xf32>
    %cst_70 = arith.constant 3.200000e+01 : f32
    %157 = vector.broadcast %cst_70 : f32 to vector<8x1xf32>
    %158 = arith.divf %156, %157 : vector<8x1xf32>
    %159 = vector.broadcast %158 : vector<8x1xf32> to vector<8x32xf32>
    %160 = arith.subf %152, %159 : vector<8x32xf32>
    %161 = arith.mulf %160, %160 : vector<8x32xf32>
    %cst_71 = arith.constant dense<0.000000e+00> : vector<8xf32>
    %162 = vector.multi_reduction <add>, %161, %cst_71 [1] : vector<8x32xf32> to vector<8xf32>
    %163 = vector.shape_cast %162 : vector<8xf32> to vector<8x1xf32>
    %cst_72 = arith.constant 3.100000e+01 : f32
    %164 = vector.broadcast %cst_72 : f32 to vector<8x1xf32>
    %165 = arith.divf %163, %164 : vector<8x1xf32>
    %166 = math.sqrt %165 : vector<8x1xf32>
    %167 = vector.broadcast %158 : vector<8x1xf32> to vector<8x32xf32>
    %168 = arith.subf %152, %167 : vector<8x32xf32>
    %169 = vector.broadcast %153 : vector<1x32xf32> to vector<8x32xf32>
    %170 = arith.mulf %169, %168 : vector<8x32xf32>
    %cst_73 = arith.constant 9.99999997E-7 : f32
    %171 = vector.broadcast %cst_73 : f32 to vector<8x1xf32>
    %172 = arith.addf %166, %171 : vector<8x1xf32>
    %173 = vector.broadcast %172 : vector<8x1xf32> to vector<8x32xf32>
    %174 = arith.divf %170, %173 : vector<8x32xf32>
    %175 = vector.broadcast %154 : vector<1x32xf32> to vector<8x32xf32>
    %176 = arith.addf %174, %175 : vector<8x32xf32>
    %177 = arith.truncf %176 : vector<8x32xf32> to vector<8x32xbf16>
    %c0_74 = arith.constant 0 : index
    %c0_75 = arith.constant 0 : index
    %178 = vector.load %arg12[%c0_74, %c0_75] : memref<32x64xbf16, #tpu.memory_space<vmem>>, vector<32x64xbf16>
    %cst_76 = arith.constant dense<0.000000e+00> : vector<8x64xf32>
    %179 = tpu.matmul %177, %178, %cst_76 {dimension_numbers = #tpu.dot_dimension_numbers<[1], [0], [0], [1], [0, 0, 1, 1], [], []>} : vector<8x32xbf16>, vector<32x64xbf16>, vector<8x64xf32> -> vector<8x64xf32>
    %c0_77 = arith.constant 0 : index
    %c0_78 = arith.constant 0 : index
    %180 = vector.load %arg13[%c0_77, %c0_78] : memref<1x64xf32, #tpu.memory_space<vmem>>, vector<1x64xf32>
    %181 = vector.broadcast %180 : vector<1x64xf32> to vector<8x64xf32>
    %182 = arith.addf %179, %181 : vector<8x64xf32>
    %cst_79 = arith.constant 0.000000e+00 : f32
    %183 = vector.broadcast %cst_79 : f32 to vector<8x64xf32>
    %184 = arith.maximumf %182, %183 : vector<8x64xf32>
    %185 = arith.truncf %184 : vector<8x64xf32> to vector<8x64xbf16>
    %c0_80 = arith.constant 0 : index
    %c0_81 = arith.constant 0 : index
    %186 = vector.load %arg14[%c0_80, %c0_81] : memref<64x32xbf16, #tpu.memory_space<vmem>>, vector<64x32xbf16>
    %cst_82 = arith.constant dense<0.000000e+00> : vector<8x32xf32>
    %187 = tpu.matmul %185, %186, %cst_82 {dimension_numbers = #tpu.dot_dimension_numbers<[1], [0], [0], [1], [0, 0, 1, 1], [], []>} : vector<8x64xbf16>, vector<64x32xbf16>, vector<8x32xf32> -> vector<8x32xf32>
    %c0_83 = arith.constant 0 : index
    %c0_84 = arith.constant 0 : index
    %188 = vector.load %arg15[%c0_83, %c0_84] : memref<1x32xf32, #tpu.memory_space<vmem>>, vector<1x32xf32>
    %189 = vector.broadcast %188 : vector<1x32xf32> to vector<8x32xf32>
    %190 = arith.addf %187, %189 : vector<8x32xf32>
    %191 = arith.addf %190, %152 : vector<8x32xf32>
    %c0_85 = arith.constant 0 : index
    %c0_86 = arith.constant 0 : index
    %c0_87 = arith.constant 0 : index
    %192 = vector.load %arg18[%c0_85, %c0_86, %c0_87] : memref<1x8x32xf32, #tpu.memory_space<vmem>>, vector<1x8x32xf32>
    %193 = vector.shape_cast %192 : vector<1x8x32xf32> to vector<8x32xf32>
    %194 = vector.shape_cast %191 : vector<8x32xf32> to vector<1x8x32xf32>
    tpu.vector_store %arg18[%c0_85, %c0_86, %c0_87], %194 {strides = array<i32>} : memref<1x8x32xf32, #tpu.memory_space<vmem>>, vector<1x8x32xf32>,
    return
  }
  func.func @transform_0(%arg0: i32, %arg1: i32) -> (i32, i32, i32) {
    %c0_i32 = arith.constant 0 : i32
    %c0_i32_0 = arith.constant 0 : i32
    %c0_i32_1 = arith.constant 0 : i32
    return %arg0, %c0_i32, %c0_i32_0 : i32, i32, i32
  }
  func.func @transform_1(%arg0: i32, %arg1: i32) -> (i32, i32, i32, i32) {
    %c0_i32 = arith.constant 0 : i32
    %c0_i32_0 = arith.constant 0 : i32
    %c0_i32_1 = arith.constant 0 : i32
    return %arg0, %c0_i32, %arg1, %c0_i32_0 : i32, i32, i32, i32
  }
  func.func @transform_2(%arg0: i32, %arg1: i32) -> (i32, i32) {
    %c0_i32 = arith.constant 0 : i32
    %c0_i32_0 = arith.constant 0 : i32
    %c0_i32_1 = arith.constant 0 : i32
    return %c0_i32, %c0_i32_0 : i32, i32
  }
  func.func @transform_3(%arg0: i32, %arg1: i32) -> (i32, i32) {
    %c0_i32 = arith.constant 0 : i32
    %c0_i32_0 = arith.constant 0 : i32
    %c0_i32_1 = arith.constant 0 : i32
    return %c0_i32, %c0_i32_0 : i32, i32
  }
  func.func @transform_4(%arg0: i32, %arg1: i32) -> (i32, i32) {
    %c0_i32 = arith.constant 0 : i32
    %c0_i32_0 = arith.constant 0 : i32
    %c0_i32_1 = arith.constant 0 : i32
    return %c0_i32, %c0_i32_0 : i32, i32
  }
  func.func @transform_5(%arg0: i32, %arg1: i32) -> (i32, i32) {
    %c0_i32 = arith.constant 0 : i32
    %c0_i32_0 = arith.constant 0 : i32
    %c0_i32_1 = arith.constant 0 : i32
    return %c0_i32, %c0_i32_0 : i32, i32
  }
  func.func @transform_6(%arg0: i32, %arg1: i32) -> (i32, i32) {
    %c0_i32 = arith.constant 0 : i32
    %c0_i32_0 = arith.constant 0 : i32
    %c0_i32_1 = arith.constant 0 : i32
    return %c0_i32, %c0_i32_0 : i32, i32
  }
  func.func @transform_7(%arg0: i32, %arg1: i32) -> (i32, i32) {
    %c0_i32 = arith.constant 0 : i32
    %c0_i32_0 = arith.constant 0 : i32
    %c0_i32_1 = arith.constant 0 : i32
    return %c0_i32, %c0_i32_0 : i32, i32
  }
  func.func @transform_8(%arg0: i32, %arg1: i32) -> (i32, i32) {
    %c0_i32 = arith.constant 0 : i32
    %c0_i32_0 = arith.constant 0 : i32
    %c0_i32_1 = arith.constant 0 : i32
    return %c0_i32, %c0_i32_0 : i32, i32
  }
  func.func @transform_9(%arg0: i32, %arg1: i32) -> (i32, i32) {
    %c0_i32 = arith.constant 0 : i32
    %c0_i32_0 = arith.constant 0 : i32
    %c0_i32_1 = arith.constant 0 : i32
    return %c0_i32, %c0_i32_0 : i32, i32
  }
  func.func @transform_10(%arg0: i32, %arg1: i32) -> (i32, i32) {
    %c0_i32 = arith.constant 0 : i32
    %c0_i32_0 = arith.constant 0 : i32
    %c0_i32_1 = arith.constant 0 : i32
    return %c0_i32, %c0_i32_0 : i32, i32
  }
  func.func @transform_11(%arg0: i32, %arg1: i32) -> (i32, i32) {
    %c0_i32 = arith.constant 0 : i32
    %c0_i32_0 = arith.constant 0 : i32
    %c0_i32_1 = arith.constant 0 : i32
    return %c0_i32, %c0_i32_0 : i32, i32
  }
  func.func @transform_12(%arg0: i32, %arg1: i32) -> (i32, i32) {
    %c0_i32 = arith.constant 0 : i32
    %c0_i32_0 = arith.constant 0 : i32
    %c0_i32_1 = arith.constant 0 : i32
    return %c0_i32, %c0_i32_0 : i32, i32
  }
  func.func @transform_13(%arg0: i32, %arg1: i32) -> (i32, i32) {
    %c0_i32 = arith.constant 0 : i32
    %c0_i32_0 = arith.constant 0 : i32
    %c0_i32_1 = arith.constant 0 : i32
    return %c0_i32, %c0_i32_0 : i32, i32
  }
  func.func @transform_14(%arg0: i32, %arg1: i32) -> (i32, i32) {
    %c0_i32 = arith.constant 0 : i32
    %c0_i32_0 = arith.constant 0 : i32
    %c0_i32_1 = arith.constant 0 : i32
    return %c0_i32, %c0_i32_0 : i32, i32
  }
  func.func @transform_15(%arg0: i32, %arg1: i32) -> (i32, i32) {
    %c0_i32 = arith.constant 0 : i32
    %c0_i32_0 = arith.constant 0 : i32
    %c0_i32_1 = arith.constant 0 : i32
    return %c0_i32, %c0_i32_0 : i32, i32
  }
  func.func @transform_16(%arg0: i32, %arg1: i32) -> (i32, i32, i32) {
    %c0_i32 = arith.constant 0 : i32
    %c0_i32_0 = arith.constant 0 : i32
    return %arg0, %arg1, %c0_i32 : i32, i32, i32
  }
  func.func @transform_17(%arg0: i32, %arg1: i32) -> (i32, i32, i32, i32) {
    %c0_i32 = arith.constant 0 : i32
    %c0_i32_0 = arith.constant 0 : i32
    %c0_i32_1 = arith.constant 0 : i32
    return %arg0, %c0_i32, %arg1, %c0_i32_0 : i32, i32, i32, i32
  }
}

</mosaic_0001>

<llo_original>
// kernel: tpu_custom_call.1
$region0: #{tpu_custom_call.1}
  #allocation0 [shape = 'u32[]', space=smem, size = 0x4, offset = 0x4, fixed_abs, tag = 'smem constant byte address 0x4 - core index']
  #allocation1 [shape = 'u32[144,128]{1,0:T(1,128)}', space=vmem, size = 0x12000, scoped, tag = 'internal scratch']
  #allocation2 [shape = 'bf16[8,32]{1,0:T(8,128)(2,1)}', space=vmem, size = 0x800, scoped, tag = 'scratch operand']
  #allocation3 [shape = 'bf16[8,32]{1,0:T(8,128)(2,1)}', space=vmem, size = 0x800, scoped, tag = 'scratch operand']
  %s0 = inlined_call_operand.vmem [shape: f32[2,8,32], index: 0, kind: input, shape index: {}]
  %s1 = inlined_call_operand.vmem [shape: s8[2,4,8,8], index: 1, kind: input, shape index: {}]
  %s2 = inlined_call_operand.vmem [shape: bf16[32,32], index: 2, kind: input, shape index: {}]
  %s3 = inlined_call_operand.vmem [shape: f32[1,32], index: 3, kind: input, shape index: {}]
  %s4 = inlined_call_operand.hbm [shape: bf16[32,64], index: 4, kind: input, shape index: {}]
  %s5 = inlined_call_operand.vmem [shape: f32[1,64], index: 5, kind: input, shape index: {}]
  %s6 = inlined_call_operand.hbm [shape: bf16[32,32], index: 6, kind: input, shape index: {}]
  %s7 = inlined_call_operand.hbm [shape: f32[1,32], index: 7, kind: input, shape index: {}]
  %s8 = inlined_call_operand.hbm [shape: f32[1,32], index: 8, kind: input, shape index: {}]
  %s9 = inlined_call_operand.hbm [shape: f32[1,32], index: 9, kind: input, shape index: {}]
  %s10 = inlined_call_operand.vmem [shape: bf16[32,64], index: 10, kind: input, shape index: {}]
  %s11 = inlined_call_operand.vmem [shape: f32[1,64], index: 11, kind: input, shape index: {}]
  %s12 = inlined_call_operand.vmem [shape: bf16[64,32], index: 12, kind: input, shape index: {}]
  %s13 = inlined_call_operand.vmem [shape: f32[1,32], index: 13, kind: input, shape index: {}]
  %s14 = inlined_call_operand.vmem [shape: f32[1,32], index: 14, kind: input, shape index: {}]
  %s15 = inlined_call_operand.vmem [shape: f32[1,32], index: 15, kind: input, shape index: {}]
  %s16 = inlined_call_operand.hbm [shape: f32[2,8,32], index: 16, kind: output, shape index: {0}]
  %s17 = inlined_call_operand.hbm [shape: f32[2,4,8,8], index: 17, kind: output, shape index: {1}]
  %18 = xla_tuple %s16, %s17
  %s19 = sld [smem:[#allocation0]]
  $region129: #{tpu_custom_call.1} parent=0
    _
  %s21 = ssub.s32 1, %s19
  %s22 = scalar_select 0, %s21, %s19
  $region1: #{tpu_custom_call.1} parent=0
    #allocation4 [shape = 'u8[8192]{0}', space=vmem, size = 0x2000, scoped, tag = 'input window, operand 4, single buffered']
    #allocation5 [shape = 's32[2]{0}', space=sflag, size = 0x8, scoped, tag = 'scoped memory for tpu_custom_call.1']
    #allocation6 [shape = 's32[2]{0}', space=sflag, size = 0x8, scoped, tag = 'scoped memory for tpu_custom_call.1']
    #allocation7 [shape = 'u8[8192]{0}', space=vmem, size = 0x2000, scoped, tag = 'input window, operand 6, single buffered']
    #allocation8 [shape = 's32[1]{0}', space=sflag, size = 0x4, scoped, tag = 'scoped memory for tpu_custom_call.1']
    #allocation9 [shape = 'u8[512]{0}', space=vmem, size = 0x400, scoped, tag = 'input window, operand 7, single buffered']
    #allocation10 [shape = 'u8[512]{0}', space=vmem, size = 0x400, scoped, tag = 'input window, operand 8, single buffered']
    #allocation11 [shape = 's32[1]{0}', space=sflag, size = 0x4, scoped, tag = 'scoped memory for tpu_custom_call.1']
    #allocation12 [shape = 'u8[512]{0}', space=vmem, size = 0x400, scoped, tag = 'input window, operand 9, single buffered']
    #allocation13 [shape = 'u8[8192]{0}', space=vmem, size = 0x2000, scoped, tag = 'output window, operand 0']
    #allocation14 [shape = 'u8[32768]{0}', space=vmem, size = 0x8000, scoped, tag = 'output window, operand 1']
    #allocation15 [shape = 's32[2]{0}', space=sflag, size = 0x8, scoped, tag = 'scoped memory for tpu_custom_call.1']
    %23 = vsyncpa [#allocation5], 0
    %24 = vsyncpa [#allocation8], 0
    %25 = vsyncpa [#allocation11], 0
    %26 = vsyncpa [#allocation6], 0
    %s27 = scalar_lea.sflag [#allocation6], 1
    %28 = vsyncpa %s27, 0
    %29 = vsyncpa [#allocation15], 0
    %s30 = scalar_lea.sflag [#allocation15], 1
    %31 = vsyncpa %s30, 0
    loop: start=0, step=1, limit=4
    $region2: #{tpu_custom_call.1} parent=1 // loop_pre_header
      _
    $region3: #{tpu_custom_call.1} parent=1 // loop_header
      %s33 = sphi 0, %s37
      %p34 = scmp.ge.s32.totalorder %s33, 4
      %s40 = sphi 0, %s52
      %s41 = sphi 0, %s48
      %s42 = sphi 0, %s40
      %s43 = sphi 0, %s41
      %s44 = sphi 0, %s42
      %s45 = sphi 0, %s43
      %s55 = sphi 0, %s57
      %s58 = sphi 0, %s55
      %s59 = sphi 0, %s58
      %s75 = sphi 0, %s59
      %s83 = sphi 0, %s85
      %s86 = sphi 0, %s83
      %s87 = sphi 0, %s86
      %s103 = sphi 0, %s87
      %s107 = sphi 0, %s107
      %s109 = sphi 0, %s107
      %s110 = sphi 0, %s109
      %s124 = sphi 0, %s110
      %s128 = sphi 0, %s128
      %s130 = sphi 0, %s128
      %s131 = sphi 0, %s130
      %s145 = sphi 0, %s131
      %s149 = sphi 0, %s149
      %s151 = sphi 0, %s149
      %s152 = sphi 0, %s151
      %s166 = sphi 0, %s152
      %s170 = sphi 0, %s170
      %s172 = sphi 0, %s170
      %s173 = sphi 0, %s172
      %s187 = sphi 0, %s173
      %s191 = sphi 0, %s191
      %s193 = sphi 0, %s191
      %s194 = sphi 0, %s193
      %s208 = sphi 0, %s194
      %s212 = sphi 0, %s212
      %s214 = sphi 0, %s212
      %s215 = sphi 0, %s214
      %s229 = sphi 0, %s215
      %s233 = sphi 0, %s233
      %s235 = sphi 0, %s233
      %s236 = sphi 0, %s235
      %s250 = sphi 0, %s236
      %s254 = sphi 0, %s254
      %s256 = sphi 0, %s254
      %s257 = sphi 0, %s256
      %s271 = sphi 0, %s257
      %s275 = sphi 0, %s275
      %s277 = sphi 0, %s275
      %s278 = sphi 0, %s277
      %s292 = sphi 0, %s278
      %s296 = sphi 0, %s296
      %s298 = sphi 0, %s296
      %s299 = sphi 0, %s298
      %s313 = sphi 0, %s299
      %s317 = sphi 0, %s317
      %s319 = sphi 0, %s317
      %s320 = sphi 0, %s319
      %s334 = sphi 0, %s320
      %s338 = sphi 0, %s338
      %s340 = sphi 0, %s338
      %s341 = sphi 0, %s340
      %s355 = sphi 0, %s341
      %s359 = sphi 0, %s359
      %s361 = sphi 0, %s359
      %s362 = sphi 0, %s361
      %s376 = sphi 0, %s362
      %s380 = sphi 0, %s380
      %s382 = sphi 0, %s380
      %s383 = sphi 0, %s382
      %s397 = sphi 0, %s383
      %s405 = sphi 0, %s407
      %s408 = sphi 0, %s405
      %s409 = sphi 0, %s408
      %s425 = sphi 0, %s409
      %s433 = sphi 0, %s435
      %s436 = sphi 0, %s433
      %s437 = sphi 0, %s436
      %s453 = sphi 0, %s437
    $region4: #{tpu_custom_call.1} parent=1 // loop_header_branch
      %36 = sbr.rel (%p34) target = $region8
    $region5: #{tpu_custom_call.1} parent=1 // loop_body
      %s38 = ssub.s32 %s33, 1
      %s39 = ssub.s32 %s33, 2
      %s46 = sadd.s32 1, %s41
      %p47 = scmp.ge.s32.totalorder %s46, 1
      %s48 = scalar_select %p47, 0, %s46
      %s49 = sadd.s32 1, %s40
      %s50 = scalar_select %p47, %s49, %s40
      %p51 = scmp.ge.s32.totalorder %s50, 2
      %s52 = scalar_select %p51, 0, %s50
      %s53 = ssub.s32 %s40, %s52
      %p54 = scmp.eq.s32.totalorder %s53, 0
      %s56 = sadd.s32 %s55, 1
      %s57 = scalar_select %p54, %s55, %s56
      %p60 = pneg %p54
      %p61 = scmp.eq.s32.totalorder %s33, 1
      %p62 = por %p60, %p61
      %p63 = scmp.ne.s32.totalorder %s55, %s58
      %p64 = scmp.eq.s32.totalorder %s33, 0
      %p65 = por %p63, %p64
      %p66 = scmp.ne.s32.totalorder %s55, %s58
      %p67 = scmp.eq.s32.totalorder %s38, 1
      %p68 = por %p66, %p67
      %p69 = scmp.ne.s32.totalorder %s58, %s59
      %p70 = scmp.eq.s32.totalorder %s38, 0
      %p71 = por %p69, %p70
      %p72 = scmp.ne.s32.totalorder %s58, %s59
      %p73 = scmp.eq.s32.totalorder %s39, 1
      %p74 = por %p72, %p73
      %p76 = scmp.ne.s32.totalorder %s59, %s75
      %p77 = scmp.eq.s32.totalorder %s39, 0
      %p78 = por %p76, %p77
      %s79 = ssub.s32 %s40, %s52
      %s80 = ssub.s32 %s41, %s48
      %s81 = sor.u32 %s79, %s80
      %p82 = scmp.eq.s32.totalorder %s81, 0
      %s84 = sadd.s32 %s83, 1
      %s85 = scalar_select %p82, %s83, %s84
      %p88 = pneg %p82
      %p89 = scmp.eq.s32.totalorder %s33, 1
      %p90 = por %p88, %p89
      %p91 = scmp.ne.s32.totalorder %s83, %s86
      %p92 = scmp.eq.s32.totalorder %s33, 0
      %p93 = por %p91, %p92
      %p94 = scmp.ne.s32.totalorder %s83, %s86
      %p95 = scmp.eq.s32.totalorder %s38, 1
      %p96 = por %p94, %p95
      %p97 = scmp.ne.s32.totalorder %s86, %s87
      %p98 = scmp.eq.s32.totalorder %s38, 0
      %p99 = por %p97, %p98
      %p100 = scmp.ne.s32.totalorder %s86, %s87
      %p101 = scmp.eq.s32.totalorder %s39, 1
      %p102 = por %p100, %p101
      %p104 = scmp.ne.s32.totalorder %s87, %s103
      %p105 = scmp.eq.s32.totalorder %s39, 0
      %p106 = por %p104, %p105
      %s108 = sadd.s32 %s107, 1
      %p111 = scmp.eq.s32.totalorder %s33, 1
      %p112 = scmp.ne.s32.totalorder %s107, %s109
      %p113 = scmp.eq.s32.totalorder %s33, 0
      %p114 = por %p112, %p113
      %p115 = scmp.ne.s32.totalorder %s107, %s109
      %p116 = scmp.eq.s32.totalorder %s38, 1
      %p117 = por %p115, %p116
      %p118 = scmp.ne.s32.totalorder %s109, %s110
      %p119 = scmp.eq.s32.totalorder %s38, 0
      %p120 = por %p118, %p119
      %p121 = scmp.ne.s32.totalorder %s109, %s110
      %p122 = scmp.eq.s32.totalorder %s39, 1
      %p123 = por %p121, %p122
      %p125 = scmp.ne.s32.totalorder %s110, %s124
      %p126 = scmp.eq.s32.totalorder %s39, 0
      %p127 = por %p125, %p126
      %s129 = sadd.s32 %s128, 1
      %p132 = scmp.eq.s32.totalorder %s33, 1
      %p133 = scmp.ne.s32.totalorder %s128, %s130
      %p134 = scmp.eq.s32.totalorder %s33, 0
      %p135 = por %p133, %p134
      %p136 = scmp.ne.s32.totalorder %s128, %s130
      %p137 = scmp.eq.s32.totalorder %s38, 1
      %p138 = por %p136, %p137
      %p139 = scmp.ne.s32.totalorder %s130, %s131
      %p140 = scmp.eq.s32.totalorder %s38, 0
      %p141 = por %p139, %p140
      %p142 = scmp.ne.s32.totalorder %s130, %s131
      %p143 = scmp.eq.s32.totalorder %s39, 1
      %p144 = por %p142, %p143
      %p146 = scmp.ne.s32.totalorder %s131, %s145
      %p147 = scmp.eq.s32.totalorder %s39, 0
      %p148 = por %p146, %p147
      %s150 = sadd.s32 %s149, 1
      %p153 = scmp.eq.s32.totalorder %s33, 1
      %p154 = scmp.ne.s32.totalorder %s149, %s151
      %p155 = scmp.eq.s32.totalorder %s33, 0
      %p156 = por %p154, %p155
      %p157 = scmp.ne.s32.totalorder %s149, %s151
      %p158 = scmp.eq.s32.totalorder %s38, 1
      %p159 = por %p157, %p158
      %p160 = scmp.ne.s32.totalorder %s151, %s152
      %p161 = scmp.eq.s32.totalorder %s38, 0
      %p162 = por %p160, %p161
      %p163 = scmp.ne.s32.totalorder %s151, %s152
      %p164 = scmp.eq.s32.totalorder %s39, 1
      %p165 = por %p163, %p164
      %p167 = scmp.ne.s32.totalorder %s152, %s166
      %p168 = scmp.eq.s32.totalorder %s39, 0
      %p169 = por %p167, %p168
      %s171 = sadd.s32 %s170, 1
      %p174 = scmp.eq.s32.totalorder %s33, 1
      %p175 = scmp.ne.s32.totalorder %s170, %s172
      %p176 = scmp.eq.s32.totalorder %s33, 0
      %p177 = por %p175, %p176
      %p178 = scmp.ne.s32.totalorder %s170, %s172
      %p179 = scmp.eq.s32.totalorder %s38, 1
      %p180 = por %p178, %p179
      %p181 = scmp.ne.s32.totalorder %s172, %s173
      %p182 = scmp.eq.s32.totalorder %s38, 0
      %p183 = por %p181, %p182
      %p184 = scmp.ne.s32.totalorder %s172, %s173
      %p185 = scmp.eq.s32.totalorder %s39, 1
      %p186 = por %p184, %p185
      %p188 = scmp.ne.s32.totalorder %s173, %s187
      %p189 = scmp.eq.s32.totalorder %s39, 0
      %p190 = por %p188, %p189
      %s192 = sadd.s32 %s191, 1
      %p195 = scmp.eq.s32.totalorder %s33, 1
      %p196 = scmp.ne.s32.totalorder %s191, %s193
      %p197 = scmp.eq.s32.totalorder %s33, 0
      %p198 = por %p196, %p197
      %p199 = scmp.ne.s32.totalorder %s191, %s193
      %p200 = scmp.eq.s32.totalorder %s38, 1
      %p201 = por %p199, %p200
      %p202 = scmp.ne.s32.totalorder %s193, %s194
      %p203 = scmp.eq.s32.totalorder %s38, 0
      %p204 = por %p202, %p203
      %p205 = scmp.ne.s32.totalorder %s193, %s194
      %p206 = scmp.eq.s32.totalorder %s39, 1
      %p207 = por %p205, %p206
      %p209 = scmp.ne.s32.totalorder %s194, %s208
      %p210 = scmp.eq.s32.totalorder %s39, 0
      %p211 = por %p209, %p210
      %s213 = sadd.s32 %s212, 1
      %p216 = scmp.eq.s32.totalorder %s33, 1
      %p217 = scmp.ne.s32.totalorder %s212, %s214
      %p218 = scmp.eq.s32.totalorder %s33, 0
      %p219 = por %p217, %p218
      %p220 = scmp.ne.s32.totalorder %s212, %s214
      %p221 = scmp.eq.s32.totalorder %s38, 1
      %p222 = por %p220, %p221
      %p223 = scmp.ne.s32.totalorder %s214, %s215
      %p224 = scmp.eq.s32.totalorder %s38, 0
      %p225 = por %p223, %p224
      %p226 = scmp.ne.s32.totalorder %s214, %s215
      %p227 = scmp.eq.s32.totalorder %s39, 1
      %p228 = por %p226, %p227
      %p230 = scmp.ne.s32.totalorder %s215, %s229
      %p231 = scmp.eq.s32.totalorder %s39, 0
      %p232 = por %p230, %p231
      %s234 = sadd.s32 %s233, 1
      %p237 = scmp.eq.s32.totalorder %s33, 1
      %p238 = scmp.ne.s32.totalorder %s233, %s235
      %p239 = scmp.eq.s32.totalorder %s33, 0
      %p240 = por %p238, %p239
      %p241 = scmp.ne.s32.totalorder %s233, %s235
      %p242 = scmp.eq.s32.totalorder %s38, 1
      %p243 = por %p241, %p242
      %p244 = scmp.ne.s32.totalorder %s235, %s236
      %p245 = scmp.eq.s32.totalorder %s38, 0
      %p246 = por %p244, %p245
      %p247 = scmp.ne.s32.totalorder %s235, %s236
      %p248 = scmp.eq.s32.totalorder %s39, 1
      %p249 = por %p247, %p248
      %p251 = scmp.ne.s32.totalorder %s236, %s250
      %p252 = scmp.eq.s32.totalorder %s39, 0
      %p253 = por %p251, %p252
      %s255 = sadd.s32 %s254, 1
      %p258 = scmp.eq.s32.totalorder %s33, 1
      %p259 = scmp.ne.s32.totalorder %s254, %s256
      %p260 = scmp.eq.s32.totalorder %s33, 0
      %p261 = por %p259, %p260
      %p262 = scmp.ne.s32.totalorder %s254, %s256
      %p263 = scmp.eq.s32.totalorder %s38, 1
      %p264 = por %p262, %p263
      %p265 = scmp.ne.s32.totalorder %s256, %s257
      %p266 = scmp.eq.s32.totalorder %s38, 0
      %p267 = por %p265, %p266
      %p268 = scmp.ne.s32.totalorder %s256, %s257
      %p269 = scmp.eq.s32.totalorder %s39, 1
      %p270 = por %p268, %p269
      %p272 = scmp.ne.s32.totalorder %s257, %s271
      %p273 = scmp.eq.s32.totalorder %s39, 0
      %p274 = por %p272, %p273
      %s276 = sadd.s32 %s275, 1
      %p279 = scmp.eq.s32.totalorder %s33, 1
      %p280 = scmp.ne.s32.totalorder %s275, %s277
      %p281 = scmp.eq.s32.totalorder %s33, 0
      %p282 = por %p280, %p281
      %p283 = scmp.ne.s32.totalorder %s275, %s277
      %p284 = scmp.eq.s32.totalorder %s38, 1
      %p285 = por %p283, %p284
      %p286 = scmp.ne.s32.totalorder %s277, %s278
      %p287 = scmp.eq.s32.totalorder %s38, 0
      %p288 = por %p286, %p287
      %p289 = scmp.ne.s32.totalorder %s277, %s278
      %p290 = scmp.eq.s32.totalorder %s39, 1
      %p291 = por %p289, %p290
      %p293 = scmp.ne.s32.totalorder %s278, %s292
      %p294 = scmp.eq.s32.totalorder %s39, 0
      %p295 = por %p293, %p294
      %s297 = sadd.s32 %s296, 1
      %p300 = scmp.eq.s32.totalorder %s33, 1
      %p301 = scmp.ne.s32.totalorder %s296, %s298
      %p302 = scmp.eq.s32.totalorder %s33, 0
      %p303 = por %p301, %p302
      %p304 = scmp.ne.s32.totalorder %s296, %s298
      %p305 = scmp.eq.s32.totalorder %s38, 1
      %p306 = por %p304, %p305
      %p307 = scmp.ne.s32.totalorder %s298, %s299
      %p308 = scmp.eq.s32.totalorder %s38, 0
      %p309 = por %p307, %p308
      %p310 = scmp.ne.s32.totalorder %s298, %s299
      %p311 = scmp.eq.s32.totalorder %s39, 1
      %p312 = por %p310, %p311
      %p314 = scmp.ne.s32.totalorder %s299, %s313
      %p315 = scmp.eq.s32.totalorder %s39, 0
      %p316 = por %p314, %p315
      %s318 = sadd.s32 %s317, 1
      %p321 = scmp.eq.s32.totalorder %s33, 1
      %p322 = scmp.ne.s32.totalorder %s317, %s319
      %p323 = scmp.eq.s32.totalorder %s33, 0
      %p324 = por %p322, %p323
      %p325 = scmp.ne.s32.totalorder %s317, %s319
      %p326 = scmp.eq.s32.totalorder %s38, 1
      %p327 = por %p325, %p326
      %p328 = scmp.ne.s32.totalorder %s319, %s320
      %p329 = scmp.eq.s32.totalorder %s38, 0
      %p330 = por %p328, %p329
      %p331 = scmp.ne.s32.totalorder %s319, %s320
      %p332 = scmp.eq.s32.totalorder %s39, 1
      %p333 = por %p331, %p332
      %p335 = scmp.ne.s32.totalorder %s320, %s334
      %p336 = scmp.eq.s32.totalorder %s39, 0
      %p337 = por %p335, %p336
      %s339 = sadd.s32 %s338, 1
      %p342 = scmp.eq.s32.totalorder %s33, 1
      %p343 = scmp.ne.s32.totalorder %s338, %s340
      %p344 = scmp.eq.s32.totalorder %s33, 0
      %p345 = por %p343, %p344
      %p346 = scmp.ne.s32.totalorder %s338, %s340
      %p347 = scmp.eq.s32.totalorder %s38, 1
      %p348 = por %p346, %p347
      %p349 = scmp.ne.s32.totalorder %s340, %s341
      %p350 = scmp.eq.s32.totalorder %s38, 0
      %p351 = por %p349, %p350
      %p352 = scmp.ne.s32.totalorder %s340, %s341
      %p353 = scmp.eq.s32.totalorder %s39, 1
      %p354 = por %p352, %p353
      %p356 = scmp.ne.s32.totalorder %s341, %s355
      %p357 = scmp.eq.s32.totalorder %s39, 0
      %p358 = por %p356, %p357
      %s360 = sadd.s32 %s359, 1
      %p363 = scmp.eq.s32.totalorder %s33, 1
      %p364 = scmp.ne.s32.totalorder %s359, %s361
      %p365 = scmp.eq.s32.totalorder %s33, 0
      %p366 = por %p364, %p365
      %p367 = scmp.ne.s32.totalorder %s359, %s361
      %p368 = scmp.eq.s32.totalorder %s38, 1
      %p369 = por %p367, %p368
      %p370 = scmp.ne.s32.totalorder %s361, %s362
      %p371 = scmp.eq.s32.totalorder %s38, 0
      %p372 = por %p370, %p371
      %p373 = scmp.ne.s32.totalorder %s361, %s362
      %p374 = scmp.eq.s32.totalorder %s39, 1
      %p375 = por %p373, %p374
      %p377 = scmp.ne.s32.totalorder %s362, %s376
      %p378 = scmp.eq.s32.totalorder %s39, 0
      %p379 = por %p377, %p378
      %s381 = sadd.s32 %s380, 1
      %p384 = scmp.eq.s32.totalorder %s33, 1
      %p385 = scmp.ne.s32.totalorder %s380, %s382
      %p386 = scmp.eq.s32.totalorder %s33, 0
      %p387 = por %p385, %p386
      %p388 = scmp.ne.s32.totalorder %s380, %s382
      %p389 = scmp.eq.s32.totalorder %s38, 1
      %p390 = por %p388, %p389
      %p391 = scmp.ne.s32.totalorder %s382, %s383
      %p392 = scmp.eq.s32.totalorder %s38, 0
      %p393 = por %p391, %p392
      %p394 = scmp.ne.s32.totalorder %s382, %s383
      %p395 = scmp.eq.s32.totalorder %s39, 1
      %p396 = por %p394, %p395
      %p398 = scmp.ne.s32.totalorder %s383, %s397
      %p399 = scmp.eq.s32.totalorder %s39, 0
      %p400 = por %p398, %p399
      %s401 = ssub.s32 %s40, %s52
      %s402 = ssub.s32 %s41, %s48
      %s403 = sor.u32 %s401, %s402
      %p404 = scmp.eq.s32.totalorder %s403, 0
      %s406 = sadd.s32 %s405, 1
      %s407 = scalar_select %p404, %s405, %s406
      %p410 = pneg %p404
      %p411 = scmp.eq.s32.totalorder %s33, 1
      %p412 = por %p410, %p411
      %p413 = scmp.ne.s32.totalorder %s405, %s408
      %p414 = scmp.eq.s32.totalorder %s33, 0
      %p415 = por %p413, %p414
      %p416 = scmp.ne.s32.totalorder %s405, %s408
      %p417 = scmp.eq.s32.totalorder %s38, 1
      %p418 = por %p416, %p417
      %p419 = scmp.ne.s32.totalorder %s408, %s409
      %p420 = scmp.eq.s32.totalorder %s38, 0
      %p421 = por %p419, %p420
      %p422 = scmp.ne.s32.totalorder %s408, %s409
      %p423 = scmp.eq.s32.totalorder %s39, 1
      %p424 = por %p422, %p423
      %p426 = scmp.ne.s32.totalorder %s409, %s425
      %p427 = scmp.eq.s32.totalorder %s39, 0
      %p428 = por %p426, %p427
      %s429 = ssub.s32 %s40, %s52
      %s430 = ssub.s32 %s41, %s48
      %s431 = sor.u32 %s429, %s430
      %p432 = scmp.eq.s32.totalorder %s431, 0
      %s434 = sadd.s32 %s433, 1
      %s435 = scalar_select %p432, %s433, %s434
      %p438 = pneg %p432
      %p439 = scmp.eq.s32.totalorder %s33, 1
      %p440 = por %p438, %p439
      %p441 = scmp.ne.s32.totalorder %s433, %s436
      %p442 = scmp.eq.s32.totalorder %s33, 0
      %p443 = por %p441, %p442
      %p444 = scmp.ne.s32.totalorder %s433, %s436
      %p445 = scmp.eq.s32.totalorder %s38, 1
      %p446 = por %p444, %p445
      %p447 = scmp.ne.s32.totalorder %s436, %s437
      %p448 = scmp.eq.s32.totalorder %s38, 0
      %p449 = por %p447, %p448
      %p450 = scmp.ne.s32.totalorder %s436, %s437
      %p451 = scmp.eq.s32.totalorder %s39, 1
      %p452 = por %p450, %p451
      %p454 = scmp.ne.s32.totalorder %s437, %s453
      %p455 = scmp.eq.s32.totalorder %s39, 0
      %p456 = por %p454, %p455
      %p457 = scmp.le.s32.totalorder 1, %s33
      %p458 = scmp.lt.s32.totalorder %s33, 3
      %p459 = pnand %p457, %p458
      %p460 = pneg %p459
      // Predicated region
      $region9: #{tpu_custom_call.1} parent=5 // pred_check
        _
      $region10: #{tpu_custom_call.1} parent=5 // pred_check_branch
        %462 = sbr.rel (%p459) target = $region12
      $region11: #{tpu_custom_call.1} parent=5 // pred_region
        %s463 = ssub.s32 %s33, 1
        // Predicated region
        $region13: #{tpu_custom_call.1} parent=11 // pred_check
          %p464 = pneg %p120
        $region14: #{tpu_custom_call.1} parent=11 // pred_check_branch
          %466 = sbr.rel (%p464) target = $region16
        $region15: #{tpu_custom_call.1} parent=11 // pred_region
          _
        $region16: #{tpu_custom_call.1} parent=11 // pred_fallthru
          _
        // Predicated region
        $region17: #{tpu_custom_call.1} parent=11 // pred_check
          %p467 = pneg %p141
        $region18: #{tpu_custom_call.1} parent=11 // pred_check_branch
          %469 = sbr.rel (%p467) target = $region20
        $region19: #{tpu_custom_call.1} parent=11 // pred_region
          _
        $region20: #{tpu_custom_call.1} parent=11 // pred_fallthru
          _
        // Predicated region
        $region21: #{tpu_custom_call.1} parent=11 // pred_check
          %p470 = pneg %p162
        $region22: #{tpu_custom_call.1} parent=11 // pred_check_branch
          %472 = sbr.rel (%p470) target = $region24
        $region23: #{tpu_custom_call.1} parent=11 // pred_region
          %s474 = ssub.s32 256, 256
          %475 = vsyncadd [#allocation5], %s474
          %s476 = sshll.u32 [#allocation4], 4
          %s477 = int_to_ptr.vmem [resolvable:$true] %s476
          %482 = dma.hbm_to_vmem [thread:$0]  %s4, 256, %s477, [#allocation5], 64, 64, 4
        $region24: #{tpu_custom_call.1} parent=11 // pred_fallthru
          _
        // Predicated region
        $region25: #{tpu_custom_call.1} parent=11 // pred_check
          %p483 = pneg %p183
        $region26: #{tpu_custom_call.1} parent=11 // pred_check_branch
          %485 = sbr.rel (%p483) target = $region28
        $region27: #{tpu_custom_call.1} parent=11 // pred_region
          _
        $region28: #{tpu_custom_call.1} parent=11 // pred_fallthru
          _
        // Predicated region
        $region29: #{tpu_custom_call.1} parent=11 // pred_check
          %p486 = pneg %p204
        $region30: #{tpu_custom_call.1} parent=11 // pred_check_branch
          %488 = sbr.rel (%p486) target = $region32
        $region31: #{tpu_custom_call.1} parent=11 // pred_region
          %s490 = ssub.s32 256, 256
          %491 = vsyncadd [#allocation8], %s490
          %s492 = sshll.u32 [#allocation7], 4
          %s493 = int_to_ptr.vmem [resolvable:$true] %s492
          %498 = dma.hbm_to_vmem [thread:$0]  %s6, 256, %s493, [#allocation8], 64, 64, 4
        $region32: #{tpu_custom_call.1} parent=11 // pred_fallthru
          _
        // Predicated region
        $region33: #{tpu_custom_call.1} parent=11 // pred_check
          %p499 = pneg %p225
        $region34: #{tpu_custom_call.1} parent=11 // pred_check_branch
          %501 = sbr.rel (%p499) target = $region36
        $region35: #{tpu_custom_call.1} parent=11 // pred_region
          %s503 = ssub.s32 16, 16
          %504 = vsyncadd [#allocation8], %s503
          %s506 = sshll.u32 [#allocation9], 4
          %s507 = int_to_ptr.vmem [resolvable:$true] %s506
          %509 = dma.hbm_to_vmem [thread:$0]  %s7, 16, %s507, [#allocation8]
        $region36: #{tpu_custom_call.1} parent=11 // pred_fallthru
          _
        // Predicated region
        $region37: #{tpu_custom_call.1} parent=11 // pred_check
          %p510 = pneg %p246
        $region38: #{tpu_custom_call.1} parent=11 // pred_check_branch
          %512 = sbr.rel (%p510) target = $region40
        $region39: #{tpu_custom_call.1} parent=11 // pred_region
          %s514 = ssub.s32 16, 16
          %515 = vsyncadd [#allocation11], %s514
          %s517 = sshll.u32 [#allocation10], 4
          %s518 = int_to_ptr.vmem [resolvable:$true] %s517
          %520 = dma.hbm_to_vmem [thread:$0]  %s8, 16, %s518, [#allocation11]
        $region40: #{tpu_custom_call.1} parent=11 // pred_fallthru
          _
        // Predicated region
        $region41: #{tpu_custom_call.1} parent=11 // pred_check
          %p521 = pneg %p267
        $region42: #{tpu_custom_call.1} parent=11 // pred_check_branch
          %523 = sbr.rel (%p521) target = $region44
        $region43: #{tpu_custom_call.1} parent=11 // pred_region
          %s525 = ssub.s32 16, 16
          %526 = vsyncadd [#allocation11], %s525
          %s528 = sshll.u32 [#allocation12], 4
          %s529 = int_to_ptr.vmem [resolvable:$true] %s528
          %531 = dma.hbm_to_vmem [thread:$0]  %s9, 16, %s529, [#allocation11]
        $region44: #{tpu_custom_call.1} parent=11 // pred_fallthru
          _
        // Predicated region
        $region45: #{tpu_custom_call.1} parent=11 // pred_check
          %p532 = pneg %p288
        $region46: #{tpu_custom_call.1} parent=11 // pred_check_branch
          %534 = sbr.rel (%p532) target = $region48
        $region47: #{tpu_custom_call.1} parent=11 // pred_region
          _
        $region48: #{tpu_custom_call.1} parent=11 // pred_fallthru
          _
        // Predicated region
        $region49: #{tpu_custom_call.1} parent=11 // pred_check
          %p535 = pneg %p309
        $region50: #{tpu_custom_call.1} parent=11 // pred_check_branch
          %537 = sbr.rel (%p535) target = $region52
        $region51: #{tpu_custom_call.1} parent=11 // pred_region
          _
        $region52: #{tpu_custom_call.1} parent=11 // pred_fallthru
          _
        // Predicated region
        $region53: #{tpu_custom_call.1} parent=11 // pred_check
          %p538 = pneg %p330
        $region54: #{tpu_custom_call.1} parent=11 // pred_check_branch
          %540 = sbr.rel (%p538) target = $region56
        $region55: #{tpu_custom_call.1} parent=11 // pred_region
          _
        $region56: #{tpu_custom_call.1} parent=11 // pred_fallthru
          _
        // Predicated region
        $region57: #{tpu_custom_call.1} parent=11 // pred_check
          %p541 = pneg %p351
        $region58: #{tpu_custom_call.1} parent=11 // pred_check_branch
          %543 = sbr.rel (%p541) target = $region60
        $region59: #{tpu_custom_call.1} parent=11 // pred_region
          _
        $region60: #{tpu_custom_call.1} parent=11 // pred_fallthru
          _
        // Predicated region
        $region61: #{tpu_custom_call.1} parent=11 // pred_check
          %p544 = pneg %p372
        $region62: #{tpu_custom_call.1} parent=11 // pred_check_branch
          %546 = sbr.rel (%p544) target = $region64
        $region63: #{tpu_custom_call.1} parent=11 // pred_region
          _
        $region64: #{tpu_custom_call.1} parent=11 // pred_fallthru
          _
        // Predicated region
        $region65: #{tpu_custom_call.1} parent=11 // pred_check
          %p547 = pneg %p393
        $region66: #{tpu_custom_call.1} parent=11 // pred_check_branch
          %549 = sbr.rel (%p547) target = $region68
        $region67: #{tpu_custom_call.1} parent=11 // pred_region
          _
        $region68: #{tpu_custom_call.1} parent=11 // pred_fallthru
          _
      $region12: #{tpu_custom_call.1} parent=5 // pred_fallthru
        _
      %p550 = scmp.lt.s32.totalorder %s33, 2
      // Predicated region
      $region69: #{tpu_custom_call.1} parent=5 // pred_check
        %p551 = pneg %p550
      $region70: #{tpu_custom_call.1} parent=5 // pred_check_branch
        %553 = sbr.rel (%p551) target = $region72
      $region71: #{tpu_custom_call.1} parent=5 // pred_region
        // Predicated region
        $region73: #{tpu_custom_call.1} parent=71 // pred_check
          %p554 = pneg %p65
        $region74: #{tpu_custom_call.1} parent=71 // pred_check_branch
          %556 = sbr.rel (%p554) target = $region76
        $region75: #{tpu_custom_call.1} parent=71 // pred_region
          %p557 = scmp.lt.s32.totalorder %s40, 1
          %s558 = scalar_select %p557, %s40, 1
          %s559 = smul.addr %s558, 8
          %s560 = scalar_lea.vmem %s0, %s559
        $region76: #{tpu_custom_call.1} parent=71 // pred_fallthru
          _
        // Predicated region
        $region77: #{tpu_custom_call.1} parent=71 // pred_check
          %p561 = pneg %p93
        $region78: #{tpu_custom_call.1} parent=71 // pred_check_branch
          %563 = sbr.rel (%p561) target = $region80
        $region79: #{tpu_custom_call.1} parent=71 // pred_region
          %p564 = scmp.lt.s32.totalorder %s40, 1
          %s565 = scalar_select %p564, %s40, 1
          %p566 = scmp.lt.s32.totalorder %s41, 0
          %s567 = scalar_select %p566, %s41, 0
          %s568 = smul.addr %s565, 4
          %s569 = sadd.s32 %s567, %s568
          %s570 = smul.addr %s569, 2
          %s571 = scalar_lea.vmem %s1, %s570
        $region80: #{tpu_custom_call.1} parent=71 // pred_fallthru
          _
      $region72: #{tpu_custom_call.1} parent=5 // pred_fallthru
        _
      %p572 = scmp.le.s32.totalorder 1, %s33
      %p573 = scmp.lt.s32.totalorder %s33, 3
      %p574 = pnand %p572, %p573
      %p575 = pneg %p574
      // Predicated region
      $region81: #{tpu_custom_call.1} parent=5 // pred_check
        _
      $region82: #{tpu_custom_call.1} parent=5 // pred_check_branch
        %577 = sbr.rel (%p574) target = $region84
      $region83: #{tpu_custom_call.1} parent=5 // pred_region
        %s578 = ssub.s32 %s33, 1
        // Predicated region
        $region85: #{tpu_custom_call.1} parent=83 // pred_check
          %p579 = pneg %p162
        $region86: #{tpu_custom_call.1} parent=83 // pred_check_branch
          %581 = sbr.rel (%p579) target = $region88
        $region87: #{tpu_custom_call.1} parent=83 // pred_region
          %582 = dma.done [#allocation5], 256
        $region88: #{tpu_custom_call.1} parent=83 // pred_fallthru
          _
        // Predicated region
        $region89: #{tpu_custom_call.1} parent=83 // pred_check
          %p583 = pneg %p204
        $region90: #{tpu_custom_call.1} parent=83 // pred_check_branch
          %585 = sbr.rel (%p583) target = $region92
        $region91: #{tpu_custom_call.1} parent=83 // pred_region
          %586 = dma.done [#allocation8], 256
        $region92: #{tpu_custom_call.1} parent=83 // pred_fallthru
          _
        // Predicated region
        $region93: #{tpu_custom_call.1} parent=83 // pred_check
          %p587 = pneg %p225
        $region94: #{tpu_custom_call.1} parent=83 // pred_check_branch
          %589 = sbr.rel (%p587) target = $region96
        $region95: #{tpu_custom_call.1} parent=83 // pred_region
          %590 = dma.done [#allocation8], 16
        $region96: #{tpu_custom_call.1} parent=83 // pred_fallthru
          _
        // Predicated region
        $region97: #{tpu_custom_call.1} parent=83 // pred_check
          %p591 = pneg %p246
        $region98: #{tpu_custom_call.1} parent=83 // pred_check_branch
          %593 = sbr.rel (%p591) target = $region100
        $region99: #{tpu_custom_call.1} parent=83 // pred_region
          %594 = dma.done [#allocation11], 16
        $region100: #{tpu_custom_call.1} parent=83 // pred_fallthru
          _
        // Predicated region
        $region101: #{tpu_custom_call.1} parent=83 // pred_check
          %p595 = pneg %p267
        $region102: #{tpu_custom_call.1} parent=83 // pred_check_branch
          %597 = sbr.rel (%p595) target = $region104
        $region103: #{tpu_custom_call.1} parent=83 // pred_region
          %598 = dma.done [#allocation11], 16
        $region104: #{tpu_custom_call.1} parent=83 // pred_fallthru
          _
        %p599 = scmp.lt.s32.totalorder %s42, 1
        %s600 = scalar_select %p599, %s42, 1
        %s601 = smul.addr %s600, 8
        %s602 = scalar_lea.vmem %s0, %s601
        %p603 = pneg %p71
        %p604 = pneg %p68
        %p605 = scmp.lt.s32.totalorder %s42, 1
        %s606 = scalar_select %p605, %s42, 1
        %p607 = scmp.lt.s32.totalorder %s43, 0
        %s608 = scalar_select %p607, %s43, 0
        %s609 = smul.addr %s606, 4
        %s610 = sadd.s32 %s608, %s609
        %s611 = smul.addr %s610, 2
        %s612 = scalar_lea.vmem %s1, %s611
        %p613 = pneg %p99
        %p614 = pneg %p96
        %p615 = pneg %p120
        %p616 = pneg %p117
        %p617 = pneg %p141
        %p618 = pneg %p138
        %p619 = pneg %p162
        %p620 = pneg %p159
        %p621 = pneg %p183
        %p622 = pneg %p180
        %p623 = pneg %p204
        %p624 = pneg %p201
        %p625 = pneg %p225
        %p626 = pneg %p222
        %p627 = pneg %p246
        %p628 = pneg %p243
        %p629 = pneg %p267
        %p630 = pneg %p264
        %p631 = pneg %p288
        %p632 = pneg %p285
        %p633 = pneg %p309
        %p634 = pneg %p306
        %p635 = pneg %p330
        %p636 = pneg %p327
        %p637 = pneg %p351
        %p638 = pneg %p348
        %p639 = pneg %p372
        %p640 = pneg %p369
        %p641 = pneg %p393
        %p642 = pneg %p390
        %p643 = pneg %p421
        %p644 = pneg %p418
        %s645 = sand.u32 %s408, 1
        %s646 = scalar_lea.sflag [#allocation6], %s645
        %s647 = sand.u32 %s408, 1
        %s648 = smul.addr %s647, 8
        %s649 = scalar_lea.vmem [#allocation13], %s648
        %p650 = pneg %p449
        %p651 = pneg %p446
        %s652 = sand.u32 %s436, 1
        %s653 = scalar_lea.sflag [#allocation15], %s652
        %s654 = sand.u32 %s436, 1
        %s655 = smul.addr %s654, 32
        %s656 = scalar_lea.vmem [#allocation14], %s655
        %p657 = scmp.lt.s32.totalorder %s42, 1
        %s658 = scalar_select %p657, %s42, 1
        %s659 = smul.addr %s658, 8
        %s660 = scalar_lea.vmem %s0, %s659
        %p661 = scmp.lt.s32.totalorder %s42, 1
        %s662 = scalar_select %p661, %s42, 1
        %p663 = scmp.lt.s32.totalorder %s43, 0
        %s664 = scalar_select %p663, %s43, 0
        %s665 = smul.addr %s662, 4
        %s666 = sadd.s32 %s664, %s665
        %s667 = smul.addr %s666, 2
        %s668 = scalar_lea.vmem %s1, %s667
        %s672 = smul.u32 %s43, 8
        %p673 = scmp.eq.s32.totalorder %s43, 0
        // Predicated region
        $region105: #{tpu_custom_call.1} parent=83 // pred_check
          %p674 = pneg %p673
        $region106: #{tpu_custom_call.1} parent=83 // pred_check_branch
          %676 = sbr.rel (%p674) target = $region108
        $region107: #{tpu_custom_call.1} parent=83 // pred_region
          %v677 = vld [vmem:[%s660] sm:$0xff]
          %v678 = vpack.c.bf16 %v677, %v677
          %v679 = vld [vmem:[#allocation4] sm:$0xf]
          %v680 = vld [vmem:[#allocation4 + $0x4] sm:$0xf]
          %v681 = vld [vmem:[#allocation4 + $0x8] sm:$0xf]
          %v682 = vld [vmem:[#allocation4 + $0xc] sm:$0xf]
          %v683 = vld [vmem:[%s5] sm:$0x1]
          %v685 = vlaneseq
          %v686 = vshrl.u32 %v685, 7
          %v687 = vsub.s32 0, %v686
          %v688 = vrot.slane %v683, %v687
          %v694 = vunpack.c.l.b16 %v679
          %v695 = vunpack.c.l.b16 %v680
          %v696 = vunpack.c.l.b16 %v681
          %v697 = vunpack.c.l.b16 %v682
          %v698 = vpack.c.b16 %v695, %v694
          %v699 = vpack.c.b16 %v697, %v696
          %vm702 = vcmask 261120
          %v704 = vsel %vm702, %v678, 0
          %706 = vmatprep.subr.bf16.mxu0 0
          %707 = vmatpush1.bf16.msra.mxu0 %v698
          %708 = vmatprep.subr.bf16.mxu0 0
          %709 = vmatpush1.bf16.msra.mxu0 %v699
          %710 = vmatprep.subr.bf16.mxu0 0
          %711 = vmatpush1.bf16.msra.mxu0 0
          %712 = vmatprep.subr.bf16.mxu0 0
          %713 = vmatpush1.bf16.msra.mxu0 0
          %714 = vmatprep.subr.bf16.mxu0 0
          %715 = vmatpush1.bf16.msra.mxu0 0
          %716 = vmatprep.subr.bf16.mxu0 0
          %717 = vmatpush1.bf16.msra.mxu0 0
          %718 = vmatprep.subr.bf16.mxu0 0
          %719 = vmatpush1.bf16.msra.mxu0 0
          %720 = vmatprep.subr.bf16.mxu0 0
          %721 = vmatpush1.bf16.msra.mxu0 0
          %722 = vmatprep.subr.bf16.mxu0 0
          %723 = vmatpush1.bf16.msra.mxu0 0
          %724 = vmatprep.subr.bf16.mxu0 0
          %725 = vmatpush1.bf16.msra.mxu0 0
          %726 = vmatprep.subr.bf16.mxu0 0
          %727 = vmatpush1.bf16.msra.mxu0 0
          %728 = vmatprep.subr.bf16.mxu0 0
          %729 = vmatpush1.bf16.msra.mxu0 0
          %730 = vmatprep.subr.bf16.mxu0 0
          %731 = vmatpush1.bf16.msra.mxu0 0
          %732 = vmatprep.subr.bf16.mxu0 0
          %733 = vmatpush1.bf16.msra.mxu0 0
          %734 = vmatprep.subr.bf16.mxu0 0
          %735 = vmatpush1.bf16.msra.mxu0 0
          %736 = vmatprep.subr.bf16.mxu0 0
          %737 = vmatpush1.bf16.msra.mxu0 0
          %738 = vmatprep.mubr.bf16.mxu0 0
          %739 = vmatmul.mubr.bf16.gmra.mrb[0].mxu0 %v704
          %v740 = vpop.f32.mrb[0].mxu0
          %v741 = vadd.f32 %v688, %v740
          %v742 = vpop.f32.mrb[0].mxu0
          %v743 = vpop.f32.mrb[0].mxu0
          %v744 = vpop.f32.mrb[0].mxu0
          %745 = vdwg.mxu0
          %v746 = vpack.c.bf16 %v741, %v741
          %vm747 = vcmask 257024
          %748 = vst.msk [vmem:[#allocation2] sm:$0xf] %vm747, %v746
          %v750 = vunpack.c.l.b16 %v746
          %v751 = vpack.c.b16 %v750, %v750
          %752 = vrot.lane.b32.xlu0 %v751, 96
          %v753 = vpop.permute.xlu0 %752
          %755 = vst.msk [vmem:[#allocation3] sm:$0xf] %vm747, %v753
        $region108: #{tpu_custom_call.1} parent=83 // pred_fallthru
          _
        %s756 = scalar_lea.vmem %s660, %s672
        %v757 = vld [vmem:[%s756] sm:$0xff]
        %v758 = vpack.c.bf16 %v757, %v757
        %v759 = vld [vmem:[%s2] sm:$0xf]
        %v760 = vld [vmem:[%s2 + $0x4] sm:$0xf]
        %v761 = vld [vmem:[%s2 + $0x8] sm:$0xf]
        %v762 = vld [vmem:[%s2 + $0xc] sm:$0xf]
        %v763 = vld [vmem:[%s3] sm:$0x1]
        %v765 = vlaneseq
        %v766 = vshrl.u32 %v765, 7
        %v767 = vsub.s32 0, %v766
        %v768 = vrot.slane %v763, %v767
        %v774 = vunpack.c.l.b16 %v759
        %v775 = vunpack.c.l.b16 %v760
        %v776 = vunpack.c.l.b16 %v761
        %v777 = vunpack.c.l.b16 %v762
        %v778 = vpack.c.b16 %v775, %v774
        %v779 = vpack.c.b16 %v777, %v776
        %vm782 = vcmask 261120
        %v784 = vsel %vm782, %v758, 0
        %786 = vmatprep.subr.bf16.mxu0 0
        %787 = vmatpush1.bf16.msra.mxu0 %v778
        %788 = vmatprep.subr.bf16.mxu0 0
        %789 = vmatpush1.bf16.msra.mxu0 %v779
        %790 = vmatprep.subr.bf16.mxu0 0
        %791 = vmatpush1.bf16.msra.mxu0 0
        %792 = vmatprep.subr.bf16.mxu0 0
        %793 = vmatpush1.bf16.msra.mxu0 0
        %794 = vmatprep.subr.bf16.mxu0 0
        %795 = vmatpush1.bf16.msra.mxu0 0
        %796 = vmatprep.subr.bf16.mxu0 0
        %797 = vmatpush1.bf16.msra.mxu0 0
        %798 = vmatprep.subr.bf16.mxu0 0
        %799 = vmatpush1.bf16.msra.mxu0 0
        %800 = vmatprep.subr.bf16.mxu0 0
        %801 = vmatpush1.bf16.msra.mxu0 0
        %802 = vmatprep.subr.bf16.mxu0 0
        %803 = vmatpush1.bf16.msra.mxu0 0
        %804 = vmatprep.subr.bf16.mxu0 0
        %805 = vmatpush1.bf16.msra.mxu0 0
        %806 = vmatprep.subr.bf16.mxu0 0
        %807 = vmatpush1.bf16.msra.mxu0 0
        %808 = vmatprep.subr.bf16.mxu0 0
        %809 = vmatpush1.bf16.msra.mxu0 0
        %810 = vmatprep.subr.bf16.mxu0 0
        %811 = vmatpush1.bf16.msra.mxu0 0
        %812 = vmatprep.subr.bf16.mxu0 0
        %813 = vmatpush1.bf16.msra.mxu0 0
        %814 = vmatprep.subr.bf16.mxu0 0
        %815 = vmatpush1.bf16.msra.mxu0 0
        %816 = vmatprep.subr.bf16.mxu0 0
        %817 = vmatpush1.bf16.msra.mxu0 0
        %818 = vmatprep.mubr.bf16.mxu0 0
        %819 = vmatmul.mubr.bf16.gmra.mrb[0].mxu0 %v784
        %v820 = vpop.f32.mrb[0].mxu0
        %v821 = vadd.f32 %v768, %v820
        %v822 = vpop.f32.mrb[0].mxu0
        %v823 = vpop.f32.mrb[0].mxu0
        %v824 = vpop.f32.mrb[0].mxu0
        %825 = vdwg.mxu0
        %v826 = vmul.f32 %v821, 0.35355338
        %v827 = vpack.c.bf16 %v826, %v826
        %v828 = vld [vmem:[#allocation2] sm:$0xf]
        %v829 = vld [vmem:[#allocation3] sm:$0xf]
        %v830 = vld [vmem:[%s668] sm:$0x3]
        %v831 = vld [vmem:[%s668 + $0x2] sm:$0x3]
        %v832 = vld [vmem:[%s668 + $0x4] sm:$0x3]
        %v833 = vld [vmem:[%s668 + $0x6] sm:$0x3]
        %vm834 = vcmask 64512
        %v836 = vsel %vm834, %v827, 0
        %v839 = vsel %vm834, %v828, 0
        %841 = vmatprep.subr.bf16.mxu0 0
        %842 = vmatpush1.bf16.xpose.msra.mxu0 %v839
        %843 = vmatprep.subr.bf16.mxu0 0
        %844 = vmatpush1.bf16.xpose.msra.mxu0 0
        %845 = vmatprep.subr.bf16.mxu0 0
        %846 = vmatpush1.bf16.xpose.msra.mxu0 0
        %847 = vmatprep.subr.bf16.mxu0 0
        %848 = vmatpush1.bf16.xpose.msra.mxu0 0
        %849 = vmatprep.subr.bf16.mxu0 0
        %850 = vmatpush1.bf16.xpose.msra.mxu0 0
        %851 = vmatprep.subr.bf16.mxu0 0
        %852 = vmatpush1.bf16.xpose.msra.mxu0 0
        %853 = vmatprep.subr.bf16.mxu0 0
        %854 = vmatpush1.bf16.xpose.msra.mxu0 0
        %855 = vmatprep.subr.bf16.mxu0 0
        %856 = vmatpush1.bf16.xpose.msra.mxu0 0
        %857 = vmatprep.subr.bf16.mxu0 0
        %858 = vmatpush1.bf16.xpose.msra.mxu0 0
        %859 = vmatprep.subr.bf16.mxu0 0
        %860 = vmatpush1.bf16.xpose.msra.mxu0 0
        %861 = vmatprep.subr.bf16.mxu0 0
        %862 = vmatpush1.bf16.xpose.msra.mxu0 0
        %863 = vmatprep.subr.bf16.mxu0 0
        %864 = vmatpush1.bf16.xpose.msra.mxu0 0
        %865 = vmatprep.subr.bf16.mxu0 0
        %866 = vmatpush1.bf16.xpose.msra.mxu0 0
        %867 = vmatprep.subr.bf16.mxu0 0
        %868 = vmatpush1.bf16.xpose.msra.mxu0 0
        %869 = vmatprep.subr.bf16.mxu0 0
        %870 = vmatpush1.bf16.xpose.msra.mxu0 0
        %871 = vmatprep.subr.bf16.mxu0 0
        %872 = vmatpush1.bf16.xpose.msra.mxu0 0
        %873 = vmatprep.mubr.bf16.mxu0 0
        %874 = vmatmul.mubr.bf16.gmra.mrb[0].mxu0 %v836
        %v875 = vpop.f32.mrb[0].mxu0
        %v876 = vadd.f32 0.0, %v875
        %v877 = vpop.f32.mrb[0].mxu0
        %v878 = vpop.f32.mrb[0].mxu0
        %v879 = vpop.f32.mrb[0].mxu0
        %880 = vdwg.mxu0
        %vm881 = vnez %v830
        %v882 = vsel %vm881, 16843009, 0
        %v883 = vunpack.c.0.s8 %v882
        %vm884 = vcmp.ne.s32.totalorder %v883, 0
        %v885 = vsel %vm884, -1e+18, %v876
        %v886 = vsel %vm834, %v885, -inf
        %887 = vmax.xlane.f32.xlu0 %v886
        %v888 = vpop.xlane.xlu0 %887
        %v889 = vsub.f32 %v885, %v888
        %v890 = vmul.f32 %v889, 1.442695
        %v891 = vpow.pop %v890
        %v892 = vsel %vm834, %v891, 0.0
        %893 = vadd.xlane.f32.xlu0 %v892
        %v894 = vpop.xlane.xlu0 %893
        %v895 = vrcp.pop %v894
        %v896 = vmul.f32 %v891, %v895
        %897 = vst.msk [vmem:[%s656] sm:$0xff] %vm834, %v896
        %v898 = vpack.c.bf16 %v896, %v896
        %v900 = vsel %vm834, %v898, 0
        %vm902 = vcmask 1043456
        %v904 = vsel %vm902, %v829, 0
        %906 = vmatprep.subr.bf16.mxu0 0
        %907 = vmatpush1.bf16.msra.mxu0 %v904
        %908 = vmatprep.subr.bf16.mxu0 0
        %909 = vmatpush1.bf16.msra.mxu0 0
        %910 = vmatprep.subr.bf16.mxu0 0
        %911 = vmatpush1.bf16.msra.mxu0 0
        %912 = vmatprep.subr.bf16.mxu0 0
        %913 = vmatpush1.bf16.msra.mxu0 0
        %914 = vmatprep.subr.bf16.mxu0 0
        %915 = vmatpush1.bf16.msra.mxu0 0
        %916 = vmatprep.subr.bf16.mxu0 0
        %917 = vmatpush1.bf16.msra.mxu0 0
        %918 = vmatprep.subr.bf16.mxu0 0
        %919 = vmatpush1.bf16.msra.mxu0 0
        %920 = vmatprep.subr.bf16.mxu0 0
        %921 = vmatpush1.bf16.msra.mxu0 0
        %922 = vmatprep.subr.bf16.mxu0 0
        %923 = vmatpush1.bf16.msra.mxu0 0
        %924 = vmatprep.subr.bf16.mxu0 0
        %925 = vmatpush1.bf16.msra.mxu0 0
        %926 = vmatprep.subr.bf16.mxu0 0
        %927 = vmatpush1.bf16.msra.mxu0 0
        %928 = vmatprep.subr.bf16.mxu0 0
        %929 = vmatpush1.bf16.msra.mxu0 0
        %930 = vmatprep.subr.bf16.mxu0 0
        %931 = vmatpush1.bf16.msra.mxu0 0
        %932 = vmatprep.subr.bf16.mxu0 0
        %933 = vmatpush1.bf16.msra.mxu0 0
        %934 = vmatprep.subr.bf16.mxu0 0
        %935 = vmatpush1.bf16.msra.mxu0 0
        %936 = vmatprep.subr.bf16.mxu0 0
        %937 = vmatpush1.bf16.msra.mxu0 0
        %938 = vmatprep.mubr.bf16.mxu0 0
        %939 = vmatmul.mubr.bf16.gmra.mrb[0].mxu0 %v900
        %v940 = vpop.f32.mrb[0].mxu0
        %v941 = vadd.f32 0.0, %v940
        %v942 = vpop.f32.mrb[0].mxu0
        %v943 = vpop.f32.mrb[0].mxu0
        %v944 = vpop.f32.mrb[0].mxu0
        %945 = vdwg.mxu0
        %947 = vrot.lane.b32.xlu0 %v827, 120
        %v948 = vpop.permute.xlu0 %947
        %v950 = vunpack.c.l.b16 %v828
        %v951 = vpack.c.b16 %v950, %v950
        %952 = vrot.lane.b32.xlu0 %v951, 120
        %v953 = vpop.permute.xlu0 %952
        %v955 = vsel %vm834, %v948, 0
        %v958 = vsel %vm834, %v953, 0
        %960 = vmatprep.subr.bf16.mxu0 0
        %961 = vmatpush1.bf16.xpose.msra.mxu0 %v958
        %962 = vmatprep.subr.bf16.mxu0 0
        %963 = vmatpush1.bf16.xpose.msra.mxu0 0
        %964 = vmatprep.subr.bf16.mxu0 0
        %965 = vmatpush1.bf16.xpose.msra.mxu0 0
        %966 = vmatprep.subr.bf16.mxu0 0
        %967 = vmatpush1.bf16.xpose.msra.mxu0 0
        %968 = vmatprep.subr.bf16.mxu0 0
        %969 = vmatpush1.bf16.xpose.msra.mxu0 0
        %970 = vmatprep.subr.bf16.mxu0 0
        %971 = vmatpush1.bf16.xpose.msra.mxu0 0
        %972 = vmatprep.subr.bf16.mxu0 0
        %973 = vmatpush1.bf16.xpose.msra.mxu0 0
        %974 = vmatprep.subr.bf16.mxu0 0
        %975 = vmatpush1.bf16.xpose.msra.mxu0 0
        %976 = vmatprep.subr.bf16.mxu0 0
        %977 = vmatpush1.bf16.xpose.msra.mxu0 0
        %978 = vmatprep.subr.bf16.mxu0 0
        %979 = vmatpush1.bf16.xpose.msra.mxu0 0
        %980 = vmatprep.subr.bf16.mxu0 0
        %981 = vmatpush1.bf16.xpose.msra.mxu0 0
        %982 = vmatprep.subr.bf16.mxu0 0
        %983 = vmatpush1.bf16.xpose.msra.mxu0 0
        %984 = vmatprep.subr.bf16.mxu0 0
        %985 = vmatpush1.bf16.xpose.msra.mxu0 0
        %986 = vmatprep.subr.bf16.mxu0 0
        %987 = vmatpush1.bf16.xpose.msra.mxu0 0
        %988 = vmatprep.subr.bf16.mxu0 0
        %989 = vmatpush1.bf16.xpose.msra.mxu0 0
        %990 = vmatprep.subr.bf16.mxu0 0
        %991 = vmatpush1.bf16.xpose.msra.mxu0 0
        %992 = vmatprep.mubr.bf16.mxu0 0
        %993 = vmatmul.mubr.bf16.gmra.mrb[0].mxu0 %v955
        %v994 = vpop.f32.mrb[0].mxu0
        %v995 = vadd.f32 0.0, %v994
        %v996 = vpop.f32.mrb[0].mxu0
        %v997 = vpop.f32.mrb[0].mxu0
        %v998 = vpop.f32.mrb[0].mxu0
        %999 = vdwg.mxu0
        %vm1000 = vnez %v831
        %v1001 = vsel %vm1000, 16843009, 0
        %v1002 = vunpack.c.0.s8 %v1001
        %vm1003 = vcmp.ne.s32.totalorder %v1002, 0
        %v1004 = vsel %vm1003, -1e+18, %v995
        %v1005 = vsel %vm834, %v1004, -inf
        %1006 = vmax.xlane.f32.xlu0 %v1005
        %v1007 = vpop.xlane.xlu0 %1006
        %v1008 = vsub.f32 %v1004, %v1007
        %v1009 = vmul.f32 %v1008, 1.442695
        %v1010 = vpow.pop %v1009
        %v1011 = vsel %vm834, %v1010, 0.0
        %1012 = vadd.xlane.f32.xlu0 %v1011
        %v1013 = vpop.xlane.xlu0 %1012
        %v1014 = vrcp.pop %v1013
        %v1015 = vmul.f32 %v1010, %v1014
        %s1016 = scalar_lea.vmem %s656, 8 [#allocation14]
        %1017 = vst.msk [vmem:[%s1016] sm:$0xff] %vm834, %v1015
        %v1018 = vpack.c.bf16 %v1015, %v1015
        %v1020 = vunpack.c.l.b16 %v829
        %v1021 = vpack.c.b16 %v1020, %v1020
        %1022 = vrot.lane.b32.xlu0 %v1021, 120
        %v1023 = vpop.permute.xlu0 %1022
        %v1025 = vsel %vm834, %v1018, 0
        %v1028 = vsel %vm902, %v1023, 0
        %1030 = vmatprep.subr.bf16.mxu0 0
        %1031 = vmatpush1.bf16.msra.mxu0 %v1028
        %1032 = vmatprep.subr.bf16.mxu0 0
        %1033 = vmatpush1.bf16.msra.mxu0 0
        %1034 = vmatprep.subr.bf16.mxu0 0
        %1035 = vmatpush1.bf16.msra.mxu0 0
        %1036 = vmatprep.subr.bf16.mxu0 0
        %1037 = vmatpush1.bf16.msra.mxu0 0
        %1038 = vmatprep.subr.bf16.mxu0 0
        %1039 = vmatpush1.bf16.msra.mxu0 0
        %1040 = vmatprep.subr.bf16.mxu0 0
        %1041 = vmatpush1.bf16.msra.mxu0 0
        %1042 = vmatprep.subr.bf16.mxu0 0
        %1043 = vmatpush1.bf16.msra.mxu0 0
        %1044 = vmatprep.subr.bf16.mxu0 0
        %1045 = vmatpush1.bf16.msra.mxu0 0
        %1046 = vmatprep.subr.bf16.mxu0 0
        %1047 = vmatpush1.bf16.msra.mxu0 0
        %1048 = vmatprep.subr.bf16.mxu0 0
        %1049 = vmatpush1.bf16.msra.mxu0 0
        %1050 = vmatprep.subr.bf16.mxu0 0
        %1051 = vmatpush1.bf16.msra.mxu0 0
        %1052 = vmatprep.subr.bf16.mxu0 0
        %1053 = vmatpush1.bf16.msra.mxu0 0
        %1054 = vmatprep.subr.bf16.mxu0 0
        %1055 = vmatpush1.bf16.msra.mxu0 0
        %1056 = vmatprep.subr.bf16.mxu0 0
        %1057 = vmatpush1.bf16.msra.mxu0 0
        %1058 = vmatprep.subr.bf16.mxu0 0
        %1059 = vmatpush1.bf16.msra.mxu0 0
        %1060 = vmatprep.subr.bf16.mxu0 0
        %1061 = vmatpush1.bf16.msra.mxu0 0
        %1062 = vmatprep.mubr.bf16.mxu0 0
        %1063 = vmatmul.mubr.bf16.gmra.mrb[0].mxu0 %v1025
        %v1064 = vpop.f32.mrb[0].mxu0
        %v1065 = vadd.f32 0.0, %v1064
        %v1066 = vpop.f32.mrb[0].mxu0
        %v1067 = vpop.f32.mrb[0].mxu0
        %v1068 = vpop.f32.mrb[0].mxu0
        %1069 = vdwg.mxu0
        %1070 = vrot.lane.b32.xlu0 %v827, 112
        %v1071 = vpop.permute.xlu0 %1070
        %1072 = vrot.lane.b32.xlu0 %v951, 112
        %v1073 = vpop.permute.xlu0 %1072
        %v1075 = vsel %vm834, %v1071, 0
        %v1078 = vsel %vm834, %v1073, 0
        %1080 = vmatprep.subr.bf16.mxu0 0
        %1081 = vmatpush1.bf16.xpose.msra.mxu0 %v1078
        %1082 = vmatprep.subr.bf16.mxu0 0
        %1083 = vmatpush1.bf16.xpose.msra.mxu0 0
        %1084 = vmatprep.subr.bf16.mxu0 0
        %1085 = vmatpush1.bf16.xpose.msra.mxu0 0
        %1086 = vmatprep.subr.bf16.mxu0 0
        %1087 = vmatpush1.bf16.xpose.msra.mxu0 0
        %1088 = vmatprep.subr.bf16.mxu0 0
        %1089 = vmatpush1.bf16.xpose.msra.mxu0 0
        %1090 = vmatprep.subr.bf16.mxu0 0
        %1091 = vmatpush1.bf16.xpose.msra.mxu0 0
        %1092 = vmatprep.subr.bf16.mxu0 0
        %1093 = vmatpush1.bf16.xpose.msra.mxu0 0
        %1094 = vmatprep.subr.bf16.mxu0 0
        %1095 = vmatpush1.bf16.xpose.msra.mxu0 0
        %1096 = vmatprep.subr.bf16.mxu0 0
        %1097 = vmatpush1.bf16.xpose.msra.mxu0 0
        %1098 = vmatprep.subr.bf16.mxu0 0
        %1099 = vmatpush1.bf16.xpose.msra.mxu0 0
        %1100 = vmatprep.subr.bf16.mxu0 0
        %1101 = vmatpush1.bf16.xpose.msra.mxu0 0
        %1102 = vmatprep.subr.bf16.mxu0 0
        %1103 = vmatpush1.bf16.xpose.msra.mxu0 0
        %1104 = vmatprep.subr.bf16.mxu0 0
        %1105 = vmatpush1.bf16.xpose.msra.mxu0 0
        %1106 = vmatprep.subr.bf16.mxu0 0
        %1107 = vmatpush1.bf16.xpose.msra.mxu0 0
        %1108 = vmatprep.subr.bf16.mxu0 0
        %1109 = vmatpush1.bf16.xpose.msra.mxu0 0
        %1110 = vmatprep.subr.bf16.mxu0 0
        %1111 = vmatpush1.bf16.xpose.msra.mxu0 0
        %1112 = vmatprep.mubr.bf16.mxu0 0
        %1113 = vmatmul.mubr.bf16.gmra.mrb[0].mxu0 %v1075
        %v1114 = vpop.f32.mrb[0].mxu0
        %v1115 = vadd.f32 0.0, %v1114
        %v1116 = vpop.f32.mrb[0].mxu0
        %v1117 = vpop.f32.mrb[0].mxu0
        %v1118 = vpop.f32.mrb[0].mxu0
        %1119 = vdwg.mxu0
        %vm1120 = vnez %v832
        %v1121 = vsel %vm1120, 16843009, 0
        %v1122 = vunpack.c.0.s8 %v1121
        %vm1123 = vcmp.ne.s32.totalorder %v1122, 0
        %v1124 = vsel %vm1123, -1e+18, %v1115
        %v1125 = vsel %vm834, %v1124, -inf
        %1126 = vmax.xlane.f32.xlu0 %v1125
        %v1127 = vpop.xlane.xlu0 %1126
        %v1128 = vsub.f32 %v1124, %v1127
        %v1129 = vmul.f32 %v1128, 1.442695
        %v1130 = vpow.pop %v1129
        %v1131 = vsel %vm834, %v1130, 0.0
        %1132 = vadd.xlane.f32.xlu0 %v1131
        %v1133 = vpop.xlane.xlu0 %1132
        %v1134 = vrcp.pop %v1133
        %v1135 = vmul.f32 %v1130, %v1134
        %s1136 = scalar_lea.vmem %s656, 16 [#allocation14]
        %1137 = vst.msk [vmem:[%s1136] sm:$0xff] %vm834, %v1135
        %v1138 = vpack.c.bf16 %v1135, %v1135
        %1139 = vrot.lane.b32.xlu0 %v1021, 112
        %v1140 = vpop.permute.xlu0 %1139
        %v1142 = vsel %vm834, %v1138, 0
        %v1145 = vsel %vm902, %v1140, 0
        %1147 = vmatprep.subr.bf16.mxu0 0
        %1148 = vmatpush1.bf16.msra.mxu0 %v1145
        %1149 = vmatprep.subr.bf16.mxu0 0
        %1150 = vmatpush1.bf16.msra.mxu0 0
        %1151 = vmatprep.subr.bf16.mxu0 0
        %1152 = vmatpush1.bf16.msra.mxu0 0
        %1153 = vmatprep.subr.bf16.mxu0 0
        %1154 = vmatpush1.bf16.msra.mxu0 0
        %1155 = vmatprep.subr.bf16.mxu0 0
        %1156 = vmatpush1.bf16.msra.mxu0 0
        %1157 = vmatprep.subr.bf16.mxu0 0
        %1158 = vmatpush1.bf16.msra.mxu0 0
        %1159 = vmatprep.subr.bf16.mxu0 0
        %1160 = vmatpush1.bf16.msra.mxu0 0
        %1161 = vmatprep.subr.bf16.mxu0 0
        %1162 = vmatpush1.bf16.msra.mxu0 0
        %1163 = vmatprep.subr.bf16.mxu0 0
        %1164 = vmatpush1.bf16.msra.mxu0 0
        %1165 = vmatprep.subr.bf16.mxu0 0
        %1166 = vmatpush1.bf16.msra.mxu0 0
        %1167 = vmatprep.subr.bf16.mxu0 0
        %1168 = vmatpush1.bf16.msra.mxu0 0
        %1169 = vmatprep.subr.bf16.mxu0 0
        %1170 = vmatpush1.bf16.msra.mxu0 0
        %1171 = vmatprep.subr.bf16.mxu0 0
        %1172 = vmatpush1.bf16.msra.mxu0 0
        %1173 = vmatprep.subr.bf16.mxu0 0
        %1174 = vmatpush1.bf16.msra.mxu0 0
        %1175 = vmatprep.subr.bf16.mxu0 0
        %1176 = vmatpush1.bf16.msra.mxu0 0
        %1177 = vmatprep.subr.bf16.mxu0 0
        %1178 = vmatpush1.bf16.msra.mxu0 0
        %1179 = vmatprep.mubr.bf16.mxu0 0
        %1180 = vmatmul.mubr.bf16.gmra.mrb[0].mxu0 %v1142
        %v1181 = vpop.f32.mrb[0].mxu0
        %v1182 = vadd.f32 0.0, %v1181
        %v1183 = vpop.f32.mrb[0].mxu0
        %v1184 = vpop.f32.mrb[0].mxu0
        %v1185 = vpop.f32.mrb[0].mxu0
        %1186 = vdwg.mxu0
        %1187 = vrot.lane.b32.xlu0 %v827, 104
        %v1188 = vpop.permute.xlu0 %1187
        %1189 = vrot.lane.b32.xlu0 %v951, 104
        %v1190 = vpop.permute.xlu0 %1189
        %v1192 = vsel %vm834, %v1188, 0
        %v1195 = vsel %vm834, %v1190, 0
        %1197 = vmatprep.subr.bf16.mxu0 0
        %1198 = vmatpush1.bf16.xpose.msra.mxu0 %v1195
        %1199 = vmatprep.subr.bf16.mxu0 0
        %1200 = vmatpush1.bf16.xpose.msra.mxu0 0
        %1201 = vmatprep.subr.bf16.mxu0 0
        %1202 = vmatpush1.bf16.xpose.msra.mxu0 0
        %1203 = vmatprep.subr.bf16.mxu0 0
        %1204 = vmatpush1.bf16.xpose.msra.mxu0 0
        %1205 = vmatprep.subr.bf16.mxu0 0
        %1206 = vmatpush1.bf16.xpose.msra.mxu0 0
        %1207 = vmatprep.subr.bf16.mxu0 0
        %1208 = vmatpush1.bf16.xpose.msra.mxu0 0
        %1209 = vmatprep.subr.bf16.mxu0 0
        %1210 = vmatpush1.bf16.xpose.msra.mxu0 0
        %1211 = vmatprep.subr.bf16.mxu0 0
        %1212 = vmatpush1.bf16.xpose.msra.mxu0 0
        %1213 = vmatprep.subr.bf16.mxu0 0
        %1214 = vmatpush1.bf16.xpose.msra.mxu0 0
        %1215 = vmatprep.subr.bf16.mxu0 0
        %1216 = vmatpush1.bf16.xpose.msra.mxu0 0
        %1217 = vmatprep.subr.bf16.mxu0 0
        %1218 = vmatpush1.bf16.xpose.msra.mxu0 0
        %1219 = vmatprep.subr.bf16.mxu0 0
        %1220 = vmatpush1.bf16.xpose.msra.mxu0 0
        %1221 = vmatprep.subr.bf16.mxu0 0
        %1222 = vmatpush1.bf16.xpose.msra.mxu0 0
        %1223 = vmatprep.subr.bf16.mxu0 0
        %1224 = vmatpush1.bf16.xpose.msra.mxu0 0
        %1225 = vmatprep.subr.bf16.mxu0 0
        %1226 = vmatpush1.bf16.xpose.msra.mxu0 0
        %1227 = vmatprep.subr.bf16.mxu0 0
        %1228 = vmatpush1.bf16.xpose.msra.mxu0 0
        %1229 = vmatprep.mubr.bf16.mxu0 0
        %1230 = vmatmul.mubr.bf16.gmra.mrb[0].mxu0 %v1192
        %v1231 = vpop.f32.mrb[0].mxu0
        %v1232 = vadd.f32 0.0, %v1231
        %v1233 = vpop.f32.mrb[0].mxu0
        %v1234 = vpop.f32.mrb[0].mxu0
        %v1235 = vpop.f32.mrb[0].mxu0
        %1236 = vdwg.mxu0
        %vm1237 = vnez %v833
        %v1238 = vsel %vm1237, 16843009, 0
        %v1239 = vunpack.c.0.s8 %v1238
        %vm1240 = vcmp.ne.s32.totalorder %v1239, 0
        %v1241 = vsel %vm1240, -1e+18, %v1232
        %v1242 = vsel %vm834, %v1241, -inf
        %1243 = vmax.xlane.f32.xlu0 %v1242
        %v1244 = vpop.xlane.xlu0 %1243
        %v1245 = vsub.f32 %v1241, %v1244
        %v1246 = vmul.f32 %v1245, 1.442695
        %v1247 = vpow.pop %v1246
        %v1248 = vsel %vm834, %v1247, 0.0
        %1249 = vadd.xlane.f32.xlu0 %v1248
        %v1250 = vpop.xlane.xlu0 %1249
        %v1251 = vrcp.pop %v1250
        %v1252 = vmul.f32 %v1247, %v1251
        %s1253 = scalar_lea.vmem %s656, 24 [#allocation14]
        %1254 = vst.msk [vmem:[%s1253] sm:$0xff] %vm834, %v1252
        %v1255 = vpack.c.bf16 %v1252, %v1252
        %1256 = vrot.lane.b32.xlu0 %v1021, 104
        %v1257 = vpop.permute.xlu0 %1256
        %v1259 = vsel %vm834, %v1255, 0
        %v1262 = vsel %vm902, %v1257, 0
        %1264 = vmatprep.subr.bf16.mxu0 0
        %1265 = vmatpush1.bf16.msra.mxu0 %v1262
        %1266 = vmatprep.subr.bf16.mxu0 0
        %1267 = vmatpush1.bf16.msra.mxu0 0
        %1268 = vmatprep.subr.bf16.mxu0 0
        %1269 = vmatpush1.bf16.msra.mxu0 0
        %1270 = vmatprep.subr.bf16.mxu0 0
        %1271 = vmatpush1.bf16.msra.mxu0 0
        %1272 = vmatprep.subr.bf16.mxu0 0
        %1273 = vmatpush1.bf16.msra.mxu0 0
        %1274 = vmatprep.subr.bf16.mxu0 0
        %1275 = vmatpush1.bf16.msra.mxu0 0
        %1276 = vmatprep.subr.bf16.mxu0 0
        %1277 = vmatpush1.bf16.msra.mxu0 0
        %1278 = vmatprep.subr.bf16.mxu0 0
        %1279 = vmatpush1.bf16.msra.mxu0 0
        %1280 = vmatprep.subr.bf16.mxu0 0
        %1281 = vmatpush1.bf16.msra.mxu0 0
        %1282 = vmatprep.subr.bf16.mxu0 0
        %1283 = vmatpush1.bf16.msra.mxu0 0
        %1284 = vmatprep.subr.bf16.mxu0 0
        %1285 = vmatpush1.bf16.msra.mxu0 0
        %1286 = vmatprep.subr.bf16.mxu0 0
        %1287 = vmatpush1.bf16.msra.mxu0 0
        %1288 = vmatprep.subr.bf16.mxu0 0
        %1289 = vmatpush1.bf16.msra.mxu0 0
        %1290 = vmatprep.subr.bf16.mxu0 0
        %1291 = vmatpush1.bf16.msra.mxu0 0
        %1292 = vmatprep.subr.bf16.mxu0 0
        %1293 = vmatpush1.bf16.msra.mxu0 0
        %1294 = vmatprep.subr.bf16.mxu0 0
        %1295 = vmatpush1.bf16.msra.mxu0 0
        %1296 = vmatprep.mubr.bf16.mxu0 0
        %1297 = vmatmul.mubr.bf16.gmra.mrb[0].mxu0 %v1259
        %v1298 = vpop.f32.mrb[0].mxu0
        %v1299 = vadd.f32 0.0, %v1298
        %v1300 = vpop.f32.mrb[0].mxu0
        %v1301 = vpop.f32.mrb[0].mxu0
        %v1302 = vpop.f32.mrb[0].mxu0
        %1303 = vdwg.mxu0
        %1305 = vrot.lane.b32.xlu0 %v1065, 8
        %v1306 = vpop.permute.xlu0 %1305
        %1309 = vrot.lane.b32.xlu0 %v1182, 16
        %v1310 = vpop.permute.xlu0 %1309
        %1313 = vrot.lane.b32.xlu0 %v1299, 24
        %v1314 = vpop.permute.xlu0 %1313
        %v1316 = vsel %vm834, %v941, %v1306
        %vm1317 = vcmask 130048
        %v1318 = vsel %vm1317, %v1316, %v1310
        %vm1319 = vcmask 195584
        %v1320 = vsel %vm1319, %v1318, %v1314
        %v1321 = vpack.c.bf16 %v1320, %v1320
        %v1322 = vld [vmem:[#allocation7] sm:$0xf]
        %v1323 = vld [vmem:[#allocation7 + $0x4] sm:$0xf]
        %v1324 = vld [vmem:[#allocation7 + $0x8] sm:$0xf]
        %v1325 = vld [vmem:[#allocation7 + $0xc] sm:$0xf]
        %v1326 = vld [vmem:[#allocation9] sm:$0x1]
        %v1328 = vlaneseq
        %v1329 = vshrl.u32 %v1328, 7
        %v1330 = vsub.s32 0, %v1329
        %v1331 = vrot.slane %v1326, %v1330
        %v1337 = vunpack.c.l.b16 %v1322
        %v1338 = vunpack.c.l.b16 %v1323
        %v1339 = vunpack.c.l.b16 %v1324
        %v1340 = vunpack.c.l.b16 %v1325
        %v1341 = vpack.c.b16 %v1338, %v1337
        %v1342 = vpack.c.b16 %v1340, %v1339
        %v1346 = vsel %vm782, %v1321, 0
        %1348 = vmatprep.subr.bf16.mxu0 0
        %1349 = vmatpush1.bf16.msra.mxu0 %v1341
        %1350 = vmatprep.subr.bf16.mxu0 0
        %1351 = vmatpush1.bf16.msra.mxu0 %v1342
        %1352 = vmatprep.subr.bf16.mxu0 0
        %1353 = vmatpush1.bf16.msra.mxu0 0
        %1354 = vmatprep.subr.bf16.mxu0 0
        %1355 = vmatpush1.bf16.msra.mxu0 0
        %1356 = vmatprep.subr.bf16.mxu0 0
        %1357 = vmatpush1.bf16.msra.mxu0 0
        %1358 = vmatprep.subr.bf16.mxu0 0
        %1359 = vmatpush1.bf16.msra.mxu0 0
        %1360 = vmatprep.subr.bf16.mxu0 0
        %1361 = vmatpush1.bf16.msra.mxu0 0
        %1362 = vmatprep.subr.bf16.mxu0 0
        %1363 = vmatpush1.bf16.msra.mxu0 0
        %1364 = vmatprep.subr.bf16.mxu0 0
        %1365 = vmatpush1.bf16.msra.mxu0 0
        %1366 = vmatprep.subr.bf16.mxu0 0
        %1367 = vmatpush1.bf16.msra.mxu0 0
        %1368 = vmatprep.subr.bf16.mxu0 0
        %1369 = vmatpush1.bf16.msra.mxu0 0
        %1370 = vmatprep.subr.bf16.mxu0 0
        %1371 = vmatpush1.bf16.msra.mxu0 0
        %1372 = vmatprep.subr.bf16.mxu0 0
        %1373 = vmatpush1.bf16.msra.mxu0 0
        %1374 = vmatprep.subr.bf16.mxu0 0
        %1375 = vmatpush1.bf16.msra.mxu0 0
        %1376 = vmatprep.subr.bf16.mxu0 0
        %1377 = vmatpush1.bf16.msra.mxu0 0
        %1378 = vmatprep.subr.bf16.mxu0 0
        %1379 = vmatpush1.bf16.msra.mxu0 0
        %1380 = vmatprep.mubr.bf16.mxu0 0
        %1381 = vmatmul.mubr.bf16.gmra.mrb[0].mxu0 %v1346
        %v1382 = vpop.f32.mrb[0].mxu0
        %v1383 = vadd.f32 %v1331, %v1382
        %v1384 = vpop.f32.mrb[0].mxu0
        %v1385 = vpop.f32.mrb[0].mxu0
        %v1386 = vpop.f32.mrb[0].mxu0
        %1387 = vdwg.mxu0
        %v1388 = vadd.f32 %v1383, %v757
        %v1389 = vld [vmem:[#allocation10] sm:$0x1]
        %v1390 = vld [vmem:[#allocation12] sm:$0x1]
        %v1391 = vsel %vm782, %v1388, 0.0
        %1392 = vadd.xlane.f32.xlu0 %v1391
        %v1393 = vpop.xlane.xlu0 %1392
        %v1394 = vrcp.pop 32.0
        %v1395 = vmul.f32 %v1393, %v1394
        %v1396 = vsub.f32 %v1388, %v1395
        %v1397 = vmul.f32 %v1396, %v1396
        %v1398 = vsel %vm782, %v1397, 0.0
        %1399 = vadd.xlane.f32.xlu0 %v1398
        %v1400 = vpop.xlane.xlu0 %1399
        %v1401 = vrcp.pop 31.0
        %v1402 = vmul.f32 %v1400, %v1401
        %v1403 = vrsqrt.pop %v1402
        %v1404 = vmul.f32 %v1402, %v1403
        %vm1405 = vcmp.eq.f32.partialorder %v1402, inf
        %v1406 = vsel %vm1405, %v1402, %v1404
        %vm1407 = vcmp.eq.f32.partialorder %v1402, 0.0
        %v1408 = vand.u32 %v1402, 2147483648
        %v1409 = vsel %vm1407, %v1408, %v1406
        %v1411 = vlaneseq
        %v1412 = vshrl.u32 %v1411, 7
        %v1413 = vsub.s32 0, %v1412
        %v1414 = vrot.slane %v1389, %v1413
        %v1416 = vmul.f32 %v1414, %v1396
        %v1417 = vadd.f32 %v1409, 1e-06
        %v1418 = vrcp.pop %v1417
        %v1419 = vmul.f32 %v1416, %v1418
        %v1421 = vlaneseq
        %v1422 = vshrl.u32 %v1421, 7
        %v1423 = vsub.s32 0, %v1422
        %v1424 = vrot.slane %v1390, %v1423
        %v1426 = vadd.f32 %v1419, %v1424
        %v1427 = vld [vmem:[%s14] sm:$0x1]
        %v1428 = vld [vmem:[%s15] sm:$0x1]
        %v1429 = vsel %vm782, %v1426, 0.0
        %1430 = vadd.xlane.f32.xlu0 %v1429
        %v1431 = vpop.xlane.xlu0 %1430
        %v1432 = vmul.f32 %v1431, %v1394
        %v1433 = vsub.f32 %v1426, %v1432
        %v1434 = vmul.f32 %v1433, %v1433
        %v1435 = vsel %vm782, %v1434, 0.0
        %1436 = vadd.xlane.f32.xlu0 %v1435
        %v1437 = vpop.xlane.xlu0 %1436
        %v1438 = vmul.f32 %v1437, %v1401
        %v1439 = vrsqrt.pop %v1438
        %v1440 = vmul.f32 %v1438, %v1439
        %vm1441 = vcmp.eq.f32.partialorder %v1438, inf
        %v1442 = vsel %vm1441, %v1438, %v1440
        %vm1443 = vcmp.eq.f32.partialorder %v1438, 0.0
        %v1444 = vand.u32 %v1438, 2147483648
        %v1445 = vsel %vm1443, %v1444, %v1442
        %v1447 = vlaneseq
        %v1448 = vshrl.u32 %v1447, 7
        %v1449 = vsub.s32 0, %v1448
        %v1450 = vrot.slane %v1427, %v1449
        %v1452 = vmul.f32 %v1450, %v1433
        %v1453 = vadd.f32 %v1445, 1e-06
        %v1454 = vrcp.pop %v1453
        %v1455 = vmul.f32 %v1452, %v1454
        %v1457 = vlaneseq
        %v1458 = vshrl.u32 %v1457, 7
        %v1459 = vsub.s32 0, %v1458
        %v1460 = vrot.slane %v1428, %v1459
        %v1462 = vadd.f32 %v1455, %v1460
        %v1463 = vpack.c.bf16 %v1462, %v1462
        %v1464 = vld [vmem:[%s10] sm:$0xf]
        %v1465 = vld [vmem:[%s10 + $0x4] sm:$0xf]
        %v1466 = vld [vmem:[%s10 + $0x8] sm:$0xf]
        %v1467 = vld [vmem:[%s10 + $0xc] sm:$0xf]
        %v1468 = vld [vmem:[%s11] sm:$0x1]
        %v1470 = vlaneseq
        %v1471 = vshrl.u32 %v1470, 7
        %v1472 = vsub.s32 0, %v1471
        %v1473 = vrot.slane %v1468, %v1472
        %v1479 = vunpack.c.l.b16 %v1464
        %v1480 = vunpack.c.l.b16 %v1465
        %v1481 = vunpack.c.l.b16 %v1466
        %v1482 = vunpack.c.l.b16 %v1467
        %v1483 = vpack.c.b16 %v1480, %v1479
        %v1484 = vpack.c.b16 %v1482, %v1481
        %v1488 = vsel %vm782, %v1463, 0
        %1490 = vmatprep.subr.bf16.mxu0 0
        %1491 = vmatpush1.bf16.msra.mxu0 %v1483
        %1492 = vmatprep.subr.bf16.mxu0 0
        %1493 = vmatpush1.bf16.msra.mxu0 %v1484
        %1494 = vmatprep.subr.bf16.mxu0 0
        %1495 = vmatpush1.bf16.msra.mxu0 0
        %1496 = vmatprep.subr.bf16.mxu0 0
        %1497 = vmatpush1.bf16.msra.mxu0 0
        %1498 = vmatprep.subr.bf16.mxu0 0
        %1499 = vmatpush1.bf16.msra.mxu0 0
        %1500 = vmatprep.subr.bf16.mxu0 0
        %1501 = vmatpush1.bf16.msra.mxu0 0
        %1502 = vmatprep.subr.bf16.mxu0 0
        %1503 = vmatpush1.bf16.msra.mxu0 0
        %1504 = vmatprep.subr.bf16.mxu0 0
        %1505 = vmatpush1.bf16.msra.mxu0 0
        %1506 = vmatprep.subr.bf16.mxu0 0
        %1507 = vmatpush1.bf16.msra.mxu0 0
        %1508 = vmatprep.subr.bf16.mxu0 0
        %1509 = vmatpush1.bf16.msra.mxu0 0
        %1510 = vmatprep.subr.bf16.mxu0 0
        %1511 = vmatpush1.bf16.msra.mxu0 0
        %1512 = vmatprep.subr.bf16.mxu0 0
        %1513 = vmatpush1.bf16.msra.mxu0 0
        %1514 = vmatprep.subr.bf16.mxu0 0
        %1515 = vmatpush1.bf16.msra.mxu0 0
        %1516 = vmatprep.subr.bf16.mxu0 0
        %1517 = vmatpush1.bf16.msra.mxu0 0
        %1518 = vmatprep.subr.bf16.mxu0 0
        %1519 = vmatpush1.bf16.msra.mxu0 0
        %1520 = vmatprep.subr.bf16.mxu0 0
        %1521 = vmatpush1.bf16.msra.mxu0 0
        %1522 = vmatprep.mubr.bf16.mxu0 0
        %1523 = vmatmul.mubr.bf16.gmra.mrb[0].mxu0 %v1488
        %v1524 = vpop.f32.mrb[0].mxu0
        %v1525 = vadd.f32 %v1473, %v1524
        %v1526 = vpop.f32.mrb[0].mxu0
        %v1527 = vpop.f32.mrb[0].mxu0
        %v1528 = vpop.f32.mrb[0].mxu0
        %1529 = vdwg.mxu0
        %v1530 = vmax.f32 %v1525, 0.0
        %v1531 = vpack.c.bf16 %v1530, %v1530
        %v1532 = vld [vmem:[%s12] sm:$0xf]
        %v1533 = vld [vmem:[%s12 + $0x4] sm:$0xf]
        %v1534 = vld [vmem:[%s12 + $0x8] sm:$0xf]
        %v1535 = vld [vmem:[%s12 + $0xc] sm:$0xf]
        %v1536 = vld [vmem:[%s12 + $0x10] sm:$0xf]
        %v1537 = vld [vmem:[%s12 + $0x14] sm:$0xf]
        %v1538 = vld [vmem:[%s12 + $0x18] sm:$0xf]
        %v1539 = vld [vmem:[%s12 + $0x1c] sm:$0xf]
        %v1540 = vld [vmem:[%s13] sm:$0x1]
        %v1542 = vlaneseq
        %v1543 = vshrl.u32 %v1542, 7
        %v1544 = vsub.s32 0, %v1543
        %v1545 = vrot.slane %v1540, %v1544
        %v1555 = vunpack.c.l.b16 %v1532
        %v1556 = vunpack.c.l.b16 %v1533
        %v1557 = vunpack.c.l.b16 %v1534
        %v1558 = vunpack.c.l.b16 %v1535
        %v1559 = vunpack.c.l.b16 %v1536
        %v1560 = vunpack.c.l.b16 %v1537
        %v1561 = vunpack.c.l.b16 %v1538
        %v1562 = vunpack.c.l.b16 %v1539
        %v1563 = vpack.c.b16 %v1556, %v1555
        %v1564 = vpack.c.b16 %v1558, %v1557
        %v1565 = vpack.c.b16 %v1560, %v1559
        %v1566 = vpack.c.b16 %v1562, %v1561
        %vm1571 = vcmask 523264
        %v1573 = vsel %vm1571, %v1531, 0
        %1575 = vmatprep.subr.bf16.mxu0 0
        %1576 = vmatpush1.bf16.msra.mxu0 %v1563
        %1577 = vmatprep.subr.bf16.mxu0 0
        %1578 = vmatpush1.bf16.msra.mxu0 %v1564
        %1579 = vmatprep.subr.bf16.mxu0 0
        %1580 = vmatpush1.bf16.msra.mxu0 %v1565
        %1581 = vmatprep.subr.bf16.mxu0 0
        %1582 = vmatpush1.bf16.msra.mxu0 %v1566
        %1583 = vmatprep.subr.bf16.mxu0 0
        %1584 = vmatpush1.bf16.msra.mxu0 0
        %1585 = vmatprep.subr.bf16.mxu0 0
        %1586 = vmatpush1.bf16.msra.mxu0 0
        %1587 = vmatprep.subr.bf16.mxu0 0
        %1588 = vmatpush1.bf16.msra.mxu0 0
        %1589 = vmatprep.subr.bf16.mxu0 0
        %1590 = vmatpush1.bf16.msra.mxu0 0
        %1591 = vmatprep.subr.bf16.mxu0 0
        %1592 = vmatpush1.bf16.msra.mxu0 0
        %1593 = vmatprep.subr.bf16.mxu0 0
        %1594 = vmatpush1.bf16.msra.mxu0 0
        %1595 = vmatprep.subr.bf16.mxu0 0
        %1596 = vmatpush1.bf16.msra.mxu0 0
        %1597 = vmatprep.subr.bf16.mxu0 0
        %1598 = vmatpush1.bf16.msra.mxu0 0
        %1599 = vmatprep.subr.bf16.mxu0 0
        %1600 = vmatpush1.bf16.msra.mxu0 0
        %1601 = vmatprep.subr.bf16.mxu0 0
        %1602 = vmatpush1.bf16.msra.mxu0 0
        %1603 = vmatprep.subr.bf16.mxu0 0
        %1604 = vmatpush1.bf16.msra.mxu0 0
        %1605 = vmatprep.subr.bf16.mxu0 0
        %1606 = vmatpush1.bf16.msra.mxu0 0
        %1607 = vmatprep.mubr.bf16.mxu0 0
        %1608 = vmatmul.mubr.bf16.gmra.mrb[0].mxu0 %v1573
        %v1609 = vpop.f32.mrb[0].mxu0
        %v1610 = vadd.f32 %v1545, %v1609
        %v1611 = vpop.f32.mrb[0].mxu0
        %v1612 = vpop.f32.mrb[0].mxu0
        %v1613 = vpop.f32.mrb[0].mxu0
        %1614 = vdwg.mxu0
        %v1615 = vadd.f32 %v1610, %v1426
        %1616 = vst.msk [vmem:[%s649] sm:$0xff] %vm782, %v1615
        %s1617 = sand.u32 %s408, 1
        %s1618 = scalar_lea.sflag [#allocation6], %s1617
        %s1619 = sand.u32 %s408, 1
        %s1620 = smul.addr %s1619, 8
        %s1621 = scalar_lea.vmem [#allocation13], %s1620
        %s1622 = sand.u32 %s436, 1
        %s1623 = scalar_lea.sflag [#allocation15], %s1622
        %s1624 = sand.u32 %s436, 1
        %s1625 = smul.addr %s1624, 32
        %s1626 = scalar_lea.vmem [#allocation14], %s1625
        // Predicated region
        $region109: #{tpu_custom_call.1} parent=83 // pred_check
          %p1627 = pneg %p418
        $region110: #{tpu_custom_call.1} parent=83 // pred_check_branch
          %1629 = sbr.rel (%p1627) target = $region112
        $region111: #{tpu_custom_call.1} parent=83 // pred_region
          %s1631 = ssub.s32 128, 128
          %1632 = vsyncadd %s1618, %s1631
          %s1633 = sadd.s32 %s43, %s42
          %s1634 = smul.addr %s1633, 128
          %s1635 = scalar_lea.hbm %s16, %s1634
          %s1637 = sshll.u32 %s1621, 4
          %s1638 = int_to_ptr.vmem [resolvable:$true] %s1637
          %1640 = dma.vmem_to_hbm [thread:$0]  %s1638, 128, %s1635, %s1618
        $region112: #{tpu_custom_call.1} parent=83 // pred_fallthru
          _
        // Predicated region
        $region113: #{tpu_custom_call.1} parent=83 // pred_check
          %p1641 = pneg %p446
        $region114: #{tpu_custom_call.1} parent=83 // pred_check_branch
          %1643 = sbr.rel (%p1641) target = $region116
        $region115: #{tpu_custom_call.1} parent=83 // pred_region
          %s1645 = ssub.s32 512, 512
          %1646 = vsyncadd %s1623, %s1645
          %s1647 = smul.addr %s42, 4
          %s1648 = sadd.s32 %s43, %s1647
          %s1649 = smul.addr %s1648, 128
          %s1650 = scalar_lea.hbm %s17, %s1649
          %s1651 = sshll.u32 %s1626, 4
          %s1652 = int_to_ptr.vmem [resolvable:$true] %s1651
          %1657 = dma.vmem_to_hbm [thread:$0]  %s1652, 512, %s1650, %s1623, 128, 128, 8
        $region116: #{tpu_custom_call.1} parent=83 // pred_fallthru
          _
      $region84: #{tpu_custom_call.1} parent=5 // pred_fallthru
        _
      %p1658 = scmp.le.s32.totalorder 2, %s33
      // Predicated region
      $region117: #{tpu_custom_call.1} parent=5 // pred_check
        %p1659 = pneg %p1658
      $region118: #{tpu_custom_call.1} parent=5 // pred_check_branch
        %1661 = sbr.rel (%p1659) target = $region120
      $region119: #{tpu_custom_call.1} parent=5 // pred_region
        %s1662 = ssub.s32 %s33, 2
        // Predicated region
        $region121: #{tpu_custom_call.1} parent=119 // pred_check
          %p1663 = pneg %p424
        $region122: #{tpu_custom_call.1} parent=119 // pred_check_branch
          %1665 = sbr.rel (%p1663) target = $region124
        $region123: #{tpu_custom_call.1} parent=119 // pred_region
          %s1666 = sand.u32 %s409, 1
          %s1667 = scalar_lea.sflag [#allocation6], %s1666
          %s1668 = sand.u32 %s409, 1
          %s1669 = smul.addr %s1668, 8
          %s1670 = scalar_lea.vmem [#allocation13], %s1669
          %1671 = dma.done %s1667, 128
        $region124: #{tpu_custom_call.1} parent=119 // pred_fallthru
          _
        // Predicated region
        $region125: #{tpu_custom_call.1} parent=119 // pred_check
          %p1672 = pneg %p452
        $region126: #{tpu_custom_call.1} parent=119 // pred_check_branch
          %1674 = sbr.rel (%p1672) target = $region128
        $region127: #{tpu_custom_call.1} parent=119 // pred_region
          %s1675 = sand.u32 %s437, 1
          %s1676 = scalar_lea.sflag [#allocation15], %s1675
          %s1677 = sand.u32 %s437, 1
          %s1678 = smul.addr %s1677, 32
          %s1679 = scalar_lea.vmem [#allocation14], %s1678
          %1680 = dma.done %s1676, 512
        $region128: #{tpu_custom_call.1} parent=119 // pred_fallthru
          _
      $region120: #{tpu_custom_call.1} parent=5 // pred_fallthru
        _
    $region6: #{tpu_custom_call.1} parent=1 // loop_footer
      %s37 = sadd.s32 1, %s33
    $region7: #{tpu_custom_call.1} parent=1 // loop_footer_branch
      %32 = sbr.rel target = $region3
    $region8: #{tpu_custom_call.1} parent=1 // loop_exit
      _
    %1681 = vsyncpa [#allocation5], 1
    %s1682 = scalar_lea.sflag [#allocation5], 1
    %1683 = vsyncpa %s1682, 1
    %1684 = vsyncpa [#allocation8], 1
    %1685 = vsyncpa [#allocation11], 1
    %1686 = vsyncpa [#allocation6], 1
    %s1687 = scalar_lea.sflag [#allocation6], 1
    %1688 = vsyncpa %s1687, 1
    %1689 = vsyncpa [#allocation15], 1
    %s1690 = scalar_lea.sflag [#allocation15], 1
    %1691 = vsyncpa %s1690, 1

// kernel: tpu_custom_call.1
$region0: #{tpu_custom_call.1}
  #allocation0 [shape = 'u32[]', space=smem, size = 0x4, offset = 0x4, fixed_abs, tag = 'smem constant byte address 0x4 - core index']
  #allocation1 [shape = 'u32[144,128]{1,0:T(1,128)}', space=vmem, size = 0x12000, scoped, tag = 'internal scratch']
  #allocation2 [shape = 'bf16[8,32]{1,0:T(8,128)(2,1)}', space=vmem, size = 0x800, scoped, tag = 'scratch operand']
  #allocation3 [shape = 'bf16[8,32]{1,0:T(8,128)(2,1)}', space=vmem, size = 0x800, scoped, tag = 'scratch operand']
  %s0 = inlined_call_operand.vmem [shape: f32[2,8,32], index: 0, kind: input, shape index: {}]
  %s1 = inlined_call_operand.vmem [shape: s8[2,4,8,8], index: 1, kind: input, shape index: {}]
  %s2 = inlined_call_operand.vmem [shape: bf16[32,32], index: 2, kind: input, shape index: {}]
  %s3 = inlined_call_operand.vmem [shape: f32[1,32], index: 3, kind: input, shape index: {}]
  %s4 = inlined_call_operand.hbm [shape: bf16[32,64], index: 4, kind: input, shape index: {}]
  %s5 = inlined_call_operand.vmem [shape: f32[1,64], index: 5, kind: input, shape index: {}]
  %s6 = inlined_call_operand.hbm [shape: bf16[32,32], index: 6, kind: input, shape index: {}]
  %s7 = inlined_call_operand.hbm [shape: f32[1,32], index: 7, kind: input, shape index: {}]
  %s8 = inlined_call_operand.hbm [shape: f32[1,32], index: 8, kind: input, shape index: {}]
  %s9 = inlined_call_operand.hbm [shape: f32[1,32], index: 9, kind: input, shape index: {}]
  %s10 = inlined_call_operand.vmem [shape: bf16[32,64], index: 10, kind: input, shape index: {}]
  %s11 = inlined_call_operand.vmem [shape: f32[1,64], index: 11, kind: input, shape index: {}]
  %s12 = inlined_call_operand.vmem [shape: bf16[64,32], index: 12, kind: input, shape index: {}]
  %s13 = inlined_call_operand.vmem [shape: f32[1,32], index: 13, kind: input, shape index: {}]
  %s14 = inlined_call_operand.vmem [shape: f32[1,32], index: 14, kind: input, shape index: {}]
  %s15 = inlined_call_operand.vmem [shape: f32[1,32], index: 15, kind: input, shape index: {}]
  %s16 = inlined_call_operand.hbm [shape: f32[2,8,32], index: 16, kind: output, shape index: {0}]
  %s17 = inlined_call_operand.hbm [shape: f32[2,4,8,8], index: 17, kind: output, shape index: {1}]
  %18 = xla_tuple %s16, %s17
  %s19 = sld [smem:[#allocation0]]
  $region129: #{tpu_custom_call.1} parent=0
    _
  %s21 = ssub.s32 1, %s19
  %s22 = scalar_select 0, %s21, %s19
  $region1: #{tpu_custom_call.1} parent=0
    #allocation4 [shape = 'u8[8192]{0}', space=vmem, size = 0x2000, scoped, tag = 'input window, operand 4, single buffered']
    #allocation5 [shape = 's32[2]{0}', space=sflag, size = 0x8, scoped, tag = 'scoped memory for tpu_custom_call.1']
    #allocation6 [shape = 's32[2]{0}', space=sflag, size = 0x8, scoped, tag = 'scoped memory for tpu_custom_call.1']
    #allocation7 [shape = 'u8[8192]{0}', space=vmem, size = 0x2000, scoped, tag = 'input window, operand 6, single buffered']
    #allocation8 [shape = 's32[1]{0}', space=sflag, size = 0x4, scoped, tag = 'scoped memory for tpu_custom_call.1']
    #allocation9 [shape = 'u8[512]{0}', space=vmem, size = 0x400, scoped, tag = 'input window, operand 7, single buffered']
    #allocation10 [shape = 'u8[512]{0}', space=vmem, size = 0x400, scoped, tag = 'input window, operand 8, single buffered']
    #allocation11 [shape = 's32[1]{0}', space=sflag, size = 0x4, scoped, tag = 'scoped memory for tpu_custom_call.1']
    #allocation12 [shape = 'u8[512]{0}', space=vmem, size = 0x400, scoped, tag = 'input window, operand 9, single buffered']
    #allocation13 [shape = 'u8[8192]{0}', space=vmem, size = 0x2000, scoped, tag = 'output window, operand 0']
    #allocation14 [shape = 'u8[32768]{0}', space=vmem, size = 0x8000, scoped, tag = 'output window, operand 1']
    #allocation15 [shape = 's32[2]{0}', space=sflag, size = 0x8, scoped, tag = 'scoped memory for tpu_custom_call.1']
    %23 = vsyncpa [#allocation5], 0
    %24 = vsyncpa [#allocation8], 0
    %25 = vsyncpa [#allocation11], 0
    %26 = vsyncpa [#allocation6], 0
    %s27 = scalar_lea.sflag [#allocation6], 1
    %28 = vsyncpa %s27, 0
    %29 = vsyncpa [#allocation15], 0
    %s30 = scalar_lea.sflag [#allocation15], 1
    %31 = vsyncpa %s30, 0
    loop: start=0, step=1, limit=4
    $region2: #{tpu_custom_call.1} parent=1 // loop_pre_header
      _
    $region3: #{tpu_custom_call.1} parent=1 // loop_header
      %s33 = sphi 0, %s37
      %p34 = scmp.ge.s32.totalorder %s33, 4
      %s40 = sphi 0, %s52
      %s41 = sphi 0, %s48
      %s42 = sphi 0, %s40
      %s43 = sphi 0, %s41
      %s44 = sphi 0, %s42
      %s45 = sphi 0, %s43
      %s55 = sphi 0, %s57
      %s58 = sphi 0, %s55
      %s59 = sphi 0, %s58
      %s75 = sphi 0, %s59
      %s83 = sphi 0, %s85
      %s86 = sphi 0, %s83
      %s87 = sphi 0, %s86
      %s103 = sphi 0, %s87
      %s107 = sphi 0, %s107
      %s109 = sphi 0, %s107
      %s110 = sphi 0, %s109
      %s124 = sphi 0, %s110
      %s128 = sphi 0, %s128
      %s130 = sphi 0, %s128
      %s131 = sphi 0, %s130
      %s145 = sphi 0, %s131
      %s149 = sphi 0, %s149
      %s151 = sphi 0, %s149
      %s152 = sphi 0, %s151
      %s166 = sphi 0, %s152
      %s170 = sphi 0, %s170
      %s172 = sphi 0, %s170
      %s173 = sphi 0, %s172
      %s187 = sphi 0, %s173
      %s191 = sphi 0, %s191
      %s193 = sphi 0, %s191
      %s194 = sphi 0, %s193
      %s208 = sphi 0, %s194
      %s212 = sphi 0, %s212
      %s214 = sphi 0, %s212
      %s215 = sphi 0, %s214
      %s229 = sphi 0, %s215
      %s233 = sphi 0, %s233
      %s235 = sphi 0, %s233
      %s236 = sphi 0, %s235
      %s250 = sphi 0, %s236
      %s254 = sphi 0, %s254
      %s256 = sphi 0, %s254
      %s257 = sphi 0, %s256
      %s271 = sphi 0, %s257
      %s275 = sphi 0, %s275
      %s277 = sphi 0, %s275
      %s278 = sphi 0, %s277
      %s292 = sphi 0, %s278
      %s296 = sphi 0, %s296
      %s298 = sphi 0, %s296
      %s299 = sphi 0, %s298
      %s313 = sphi 0, %s299
      %s317 = sphi 0, %s317
      %s319 = sphi 0, %s317
      %s320 = sphi 0, %s319
      %s334 = sphi 0, %s320
      %s338 = sphi 0, %s338
      %s340 = sphi 0, %s338
      %s341 = sphi 0, %s340
      %s355 = sphi 0, %s341
      %s359 = sphi 0, %s359
      %s361 = sphi 0, %s359
      %s362 = sphi 0, %s361
      %s376 = sphi 0, %s362
      %s380 = sphi 0, %s380
      %s382 = sphi 0, %s380
      %s383 = sphi 0, %s382
      %s397 = sphi 0, %s383
      %s405 = sphi 0, %s407
      %s408 = sphi 0, %s405
      %s409 = sphi 0, %s408
      %s425 = sphi 0, %s409
      %s433 = sphi 0, %s435
      %s436 = sphi 0, %s433
      %s437 = sphi 0, %s436
      %s453 = sphi 0, %s437
    $region4: #{tpu_custom_call.1} parent=1 // loop_header_branch
      %36 = sbr.rel (%p34) target = $region8
    $region5: #{tpu_custom_call.1} parent=1 // loop_body
      %s38 = ssub.s32 %s33, 1
      %s39 = ssub.s32 %s33, 2
      %s46 = sadd.s32 1, %s41
      %p47 = scmp.ge.s32.totalorder %s46, 1
      %s48 = scalar_select %p47, 0, %s46
      %s49 = sadd.s32 1, %s40
      %s50 = scalar_select %p47, %s49, %s40
      %p51 = scmp.ge.s32.totalorder %s50, 2
      %s52 = scalar_select %p51, 0, %s50
      %s53 = ssub.s32 %s40, %s52
      %p54 = scmp.eq.s32.totalorder %s53, 0
      %s56 = sadd.s32 %s55, 1
      %s57 = scalar_select %p54, %s55, %s56
      %p60 = pneg %p54
      %p61 = scmp.eq.s32.totalorder %s33, 1
      %p62 = por %p60, %p61
      %p63 = scmp.ne.s32.totalorder %s55, %s58
      %p64 = scmp.eq.s32.totalorder %s33, 0
      %p65 = por %p63, %p64
      %p66 = scmp.ne.s32.totalorder %s55, %s58
      %p67 = scmp.eq.s32.totalorder %s38, 1
      %p68 = por %p66, %p67
      %p69 = scmp.ne.s32.totalorder %s58, %s59
      %p70 = scmp.eq.s32.totalorder %s38, 0
      %p71 = por %p69, %p70
      %p72 = scmp.ne.s32.totalorder %s58, %s59
      %p73 = scmp.eq.s32.totalorder %s39, 1
      %p74 = por %p72, %p73
      %p76 = scmp.ne.s32.totalorder %s59, %s75
      %p77 = scmp.eq.s32.totalorder %s39, 0
      %p78 = por %p76, %p77
      %s79 = ssub.s32 %s40, %s52
      %s80 = ssub.s32 %s41, %s48
      %s81 = sor.u32 %s79, %s80
      %p82 = scmp.eq.s32.totalorder %s81, 0
      %s84 = sadd.s32 %s83, 1
      %s85 = scalar_select %p82, %s83, %s84
      %p88 = pneg %p82
      %p89 = scmp.eq.s32.totalorder %s33, 1
      %p90 = por %p88, %p89
      %p91 = scmp.ne.s32.totalorder %s83, %s86
      %p92 = scmp.eq.s32.totalorder %s33, 0
      %p93 = por %p91, %p92
      %p94 = scmp.ne.s32.totalorder %s83, %s86
      %p95 = scmp.eq.s32.totalorder %s38, 1
      %p96 = por %p94, %p95
      %p97 = scmp.ne.s32.totalorder %s86, %s87
      %p98 = scmp.eq.s32.totalorder %s38, 0
      %p99 = por %p97, %p98
      %p100 = scmp.ne.s32.totalorder %s86, %s87
      %p101 = scmp.eq.s32.totalorder %s39, 1
      %p102 = por %p100, %p101
      %p104 = scmp.ne.s32.totalorder %s87, %s103
      %p105 = scmp.eq.s32.totalorder %s39, 0
      %p106 = por %p104, %p105
      %s108 = sadd.s32 %s107, 1
      %p111 = scmp.eq.s32.totalorder %s33, 1
      %p112 = scmp.ne.s32.totalorder %s107, %s109
      %p113 = scmp.eq.s32.totalorder %s33, 0
      %p114 = por %p112, %p113
      %p115 = scmp.ne.s32.totalorder %s107, %s109
      %p116 = scmp.eq.s32.totalorder %s38, 1
      %p117 = por %p115, %p116
      %p118 = scmp.ne.s32.totalorder %s109, %s110
      %p119 = scmp.eq.s32.totalorder %s38, 0
      %p120 = por %p118, %p119
      %p121 = scmp.ne.s32.totalorder %s109, %s110
      %p122 = scmp.eq.s32.totalorder %s39, 1
      %p123 = por %p121, %p122
      %p125 = scmp.ne.s32.totalorder %s110, %s124
      %p126 = scmp.eq.s32.totalorder %s39, 0
      %p127 = por %p125, %p126
      %s129 = sadd.s32 %s128, 1
      %p132 = scmp.eq.s32.totalorder %s33, 1
      %p133 = scmp.ne.s32.totalorder %s128, %s130
      %p134 = scmp.eq.s32.totalorder %s33, 0
      %p135 = por %p133, %p134
      %p136 = scmp.ne.s32.totalorder %s128, %s130
      %p137 = scmp.eq.s32.totalorder %s38, 1
      %p138 = por %p136, %p137
      %p139 = scmp.ne.s32.totalorder %s130, %s131
      %p140 = scmp.eq.s32.totalorder %s38, 0
      %p141 = por %p139, %p140
      %p142 = scmp.ne.s32.totalorder %s130, %s131
      %p143 = scmp.eq.s32.totalorder %s39, 1
      %p144 = por %p142, %p143
      %p146 = scmp.ne.s32.totalorder %s131, %s145
      %p147 = scmp.eq.s32.totalorder %s39, 0
      %p148 = por %p146, %p147
      %s150 = sadd.s32 %s149, 1
      %p153 = scmp.eq.s32.totalorder %s33, 1
      %p154 = scmp.ne.s32.totalorder %s149, %s151
      %p155 = scmp.eq.s32.totalorder %s33, 0
      %p156 = por %p154, %p155
      %p157 = scmp.ne.s32.totalorder %s149, %s151
      %p158 = scmp.eq.s32.totalorder %s38, 1
      %p159 = por %p157, %p158
      %p160 = scmp.ne.s32.totalorder %s151, %s152
      %p161 = scmp.eq.s32.totalorder %s38, 0
      %p162 = por %p160, %p161
      %p163 = scmp.ne.s32.totalorder %s151, %s152
      %p164 = scmp.eq.s32.totalorder %s39, 1
      %p165 = por %p163, %p164
      %p167 = scmp.ne.s32.totalorder %s152, %s166
      %p168 = scmp.eq.s32.totalorder %s39, 0
      %p169 = por %p167, %p168
      %s171 = sadd.s32 %s170, 1
      %p174 = scmp.eq.s32.totalorder %s33, 1
      %p175 = scmp.ne.s32.totalorder %s170, %s172
      %p176 = scmp.eq.s32.totalorder %s33, 0
      %p177 = por %p175, %p176
      %p178 = scmp.ne.s32.totalorder %s170, %s172
      %p179 = scmp.eq.s32.totalorder %s38, 1
      %p180 = por %p178, %p179
      %p181 = scmp.ne.s32.totalorder %s172, %s173
      %p182 = scmp.eq.s32.totalorder %s38, 0
      %p183 = por %p181, %p182
      %p184 = scmp.ne.s32.totalorder %s172, %s173
      %p185 = scmp.eq.s32.totalorder %s39, 1
      %p186 = por %p184, %p185
      %p188 = scmp.ne.s32.totalorder %s173, %s187
      %p189 = scmp.eq.s32.totalorder %s39, 0
      %p190 = por %p188, %p189
      %s192 = sadd.s32 %s191, 1
      %p195 = scmp.eq.s32.totalorder %s33, 1
      %p196 = scmp.ne.s32.totalorder %s191, %s193
      %p197 = scmp.eq.s32.totalorder %s33, 0
      %p198 = por %p196, %p197
      %p199 = scmp.ne.s32.totalorder %s191, %s193
      %p200 = scmp.eq.s32.totalorder %s38, 1
      %p201 = por %p199, %p200
      %p202 = scmp.ne.s32.totalorder %s193, %s194
      %p203 = scmp.eq.s32.totalorder %s38, 0
      %p204 = por %p202, %p203
      %p205 = scmp.ne.s32.totalorder %s193, %s194
      %p206 = scmp.eq.s32.totalorder %s39, 1
      %p207 = por %p205, %p206
      %p209 = scmp.ne.s32.totalorder %s194, %s208
      %p210 = scmp.eq.s32.totalorder %s39, 0
      %p211 = por %p209, %p210
      %s213 = sadd.s32 %s212, 1
      %p216 = scmp.eq.s32.totalorder %s33, 1
      %p217 = scmp.ne.s32.totalorder %s212, %s214
      %p218 = scmp.eq.s32.totalorder %s33, 0
      %p219 = por %p217, %p218
      %p220 = scmp.ne.s32.totalorder %s212, %s214
      %p221 = scmp.eq.s32.totalorder %s38, 1
      %p222 = por %p220, %p221
      %p223 = scmp.ne.s32.totalorder %s214, %s215
      %p224 = scmp.eq.s32.totalorder %s38, 0
      %p225 = por %p223, %p224
      %p226 = scmp.ne.s32.totalorder %s214, %s215
      %p227 = scmp.eq.s32.totalorder %s39, 1
      %p228 = por %p226, %p227
      %p230 = scmp.ne.s32.totalorder %s215, %s229
      %p231 = scmp.eq.s32.totalorder %s39, 0
      %p232 = por %p230, %p231
      %s234 = sadd.s32 %s233, 1
      %p237 = scmp.eq.s32.totalorder %s33, 1
      %p238 = scmp.ne.s32.totalorder %s233, %s235
      %p239 = scmp.eq.s32.totalorder %s33, 0
      %p240 = por %p238, %p239
      %p241 = scmp.ne.s32.totalorder %s233, %s235
      %p242 = scmp.eq.s32.totalorder %s38, 1
      %p243 = por %p241, %p242
      %p244 = scmp.ne.s32.totalorder %s235, %s236
      %p245 = scmp.eq.s32.totalorder %s38, 0
      %p246 = por %p244, %p245
      %p247 = scmp.ne.s32.totalorder %s235, %s236
      %p248 = scmp.eq.s32.totalorder %s39, 1
      %p249 = por %p247, %p248
      %p251 = scmp.ne.s32.totalorder %s236, %s250
      %p252 = scmp.eq.s32.totalorder %s39, 0
      %p253 = por %p251, %p252
      %s255 = sadd.s32 %s254, 1
      %p258 = scmp.eq.s32.totalorder %s33, 1
      %p259 = scmp.ne.s32.totalorder %s254, %s256
      %p260 = scmp.eq.s32.totalorder %s33, 0
      %p261 = por %p259, %p260
      %p262 = scmp.ne.s32.totalorder %s254, %s256
      %p263 = scmp.eq.s32.totalorder %s38, 1
      %p264 = por %p262, %p263
      %p265 = scmp.ne.s32.totalorder %s256, %s257
      %p266 = scmp.eq.s32.totalorder %s38, 0
      %p267 = por %p265, %p266
      %p268 = scmp.ne.s32.totalorder %s256, %s257
      %p269 = scmp.eq.s32.totalorder %s39, 1
      %p270 = por %p268, %p269
      %p272 = scmp.ne.s32.totalorder %s257, %s271
      %p273 = scmp.eq.s32.totalorder %s39, 0
      %p274 = por %p272, %p273
      %s276 = sadd.s32 %s275, 1
      %p279 = scmp.eq.s32.totalorder %s33, 1
      %p280 = scmp.ne.s32.totalorder %s275, %s277
      %p281 = scmp.eq.s32.totalorder %s33, 0
      %p282 = por %p280, %p281
      %p283 = scmp.ne.s32.totalorder %s275, %s277
      %p284 = scmp.eq.s32.totalorder %s38, 1
      %p285 = por %p283, %p284
      %p286 = scmp.ne.s32.totalorder %s277, %s278
      %p287 = scmp.eq.s32.totalorder %s38, 0
      %p288 = por %p286, %p287
      %p289 = scmp.ne.s32.totalorder %s277, %s278
      %p290 = scmp.eq.s32.totalorder %s39, 1
      %p291 = por %p289, %p290
      %p293 = scmp.ne.s32.totalorder %s278, %s292
      %p294 = scmp.eq.s32.totalorder %s39, 0
      %p295 = por %p293, %p294
      %s297 = sadd.s32 %s296, 1
      %p300 = scmp.eq.s32.totalorder %s33, 1
      %p301 = scmp.ne.s32.totalorder %s296, %s298
      %p302 = scmp.eq.s32.totalorder %s33, 0
      %p303 = por %p301, %p302
      %p304 = scmp.ne.s32.totalorder %s296, %s298
      %p305 = scmp.eq.s32.totalorder %s38, 1
      %p306 = por %p304, %p305
      %p307 = scmp.ne.s32.totalorder %s298, %s299
      %p308 = scmp.eq.s32.totalorder %s38, 0
      %p309 = por %p307, %p308
      %p310 = scmp.ne.s32.totalorder %s298, %s299
      %p311 = scmp.eq.s32.totalorder %s39, 1
      %p312 = por %p310, %p311
      %p314 = scmp.ne.s32.totalorder %s299, %s313
      %p315 = scmp.eq.s32.totalorder %s39, 0
      %p316 = por %p314, %p315
      %s318 = sadd.s32 %s317, 1
      %p321 = scmp.eq.s32.totalorder %s33, 1
      %p322 = scmp.ne.s32.totalorder %s317, %s319
      %p323 = scmp.eq.s32.totalorder %s33, 0
      %p324 = por %p322, %p323
      %p325 = scmp.ne.s32.totalorder %s317, %s319
      %p326 = scmp.eq.s32.totalorder %s38, 1
      %p327 = por %p325, %p326
      %p328 = scmp.ne.s32.totalorder %s319, %s320
      %p329 = scmp.eq.s32.totalorder %s38, 0
      %p330 = por %p328, %p329
      %p331 = scmp.ne.s32.totalorder %s319, %s320
      %p332 = scmp.eq.s32.totalorder %s39, 1
      %p333 = por %p331, %p332
      %p335 = scmp.ne.s32.totalorder %s320, %s334
      %p336 = scmp.eq.s32.totalorder %s39, 0
      %p337 = por %p335, %p336
      %s339 = sadd.s32 %s338, 1
      %p342 = scmp.eq.s32.totalorder %s33, 1
      %p343 = scmp.ne.s32.totalorder %s338, %s340
      %p344 = scmp.eq.s32.totalorder %s33, 0
      %p345 = por %p343, %p344
      %p346 = scmp.ne.s32.totalorder %s338, %s340
      %p347 = scmp.eq.s32.totalorder %s38, 1
      %p348 = por %p346, %p347
      %p349 = scmp.ne.s32.totalorder %s340, %s341
      %p350 = scmp.eq.s32.totalorder %s38, 0
      %p351 = por %p349, %p350
      %p352 = scmp.ne.s32.totalorder %s340, %s341
      %p353 = scmp.eq.s32.totalorder %s39, 1
      %p354 = por %p352, %p353
      %p356 = scmp.ne.s32.totalorder %s341, %s355
      %p357 = scmp.eq.s32.totalorder %s39, 0
      %p358 = por %p356, %p357
      %s360 = sadd.s32 %s359, 1
      %p363 = scmp.eq.s32.totalorder %s33, 1
      %p364 = scmp.ne.s32.totalorder %s359, %s361
      %p365 = scmp.eq.s32.totalorder %s33, 0
      %p366 = por %p364, %p365
      %p367 = scmp.ne.s32.totalorder %s359, %s361
      %p368 = scmp.eq.s32.totalorder %s38, 1
      %p369 = por %p367, %p368
      %p370 = scmp.ne.s32.totalorder %s361, %s362
      %p371 = scmp.eq.s32.totalorder %s38, 0
      %p372 = por %p370, %p371
      %p373 = scmp.ne.s32.totalorder %s361, %s362
      %p374 = scmp.eq.s32.totalorder %s39, 1
      %p375 = por %p373, %p374
      %p377 = scmp.ne.s32.totalorder %s362, %s376
      %p378 = scmp.eq.s32.totalorder %s39, 0
      %p379 = por %p377, %p378
      %s381 = sadd.s32 %s380, 1
      %p384 = scmp.eq.s32.totalorder %s33, 1
      %p385 = scmp.ne.s32.totalorder %s380, %s382
      %p386 = scmp.eq.s32.totalorder %s33, 0
      %p387 = por %p385, %p386
      %p388 = scmp.ne.s32.totalorder %s380, %s382
      %p389 = scmp.eq.s32.totalorder %s38, 1
      %p390 = por %p388, %p389
      %p391 = scmp.ne.s32.totalorder %s382, %s383
      %p392 = scmp.eq.s32.totalorder %s38, 0
      %p393 = por %p391, %p392
      %p394 = scmp.ne.s32.totalorder %s382, %s383
      %p395 = scmp.eq.s32.totalorder %s39, 1
      %p396 = por %p394, %p395
      %p398 = scmp.ne.s32.totalorder %s383, %s397
      %p399 = scmp.eq.s32.totalorder %s39, 0
      %p400 = por %p398, %p399
      %s401 = ssub.s32 %s40, %s52
      %s402 = ssub.s32 %s41, %s48
      %s403 = sor.u32 %s401, %s402
      %p404 = scmp.eq.s32.totalorder %s403, 0
      %s406 = sadd.s32 %s405, 1
      %s407 = scalar_select %p404, %s405, %s406
      %p410 = pneg %p404
      %p411 = scmp.eq.s32.totalorder %s33, 1
      %p412 = por %p410, %p411
      %p413 = scmp.ne.s32.totalorder %s405, %s408
      %p414 = scmp.eq.s32.totalorder %s33, 0
      %p415 = por %p413, %p414
      %p416 = scmp.ne.s32.totalorder %s405, %s408
      %p417 = scmp.eq.s32.totalorder %s38, 1
      %p418 = por %p416, %p417
      %p419 = scmp.ne.s32.totalorder %s408, %s409
      %p420 = scmp.eq.s32.totalorder %s38, 0
      %p421 = por %p419, %p420
      %p422 = scmp.ne.s32.totalorder %s408, %s409
      %p423 = scmp.eq.s32.totalorder %s39, 1
      %p424 = por %p422, %p423
      %p426 = scmp.ne.s32.totalorder %s409, %s425
      %p427 = scmp.eq.s32.totalorder %s39, 0
      %p428 = por %p426, %p427
      %s429 = ssub.s32 %s40, %s52
      %s430 = ssub.s32 %s41, %s48
      %s431 = sor.u32 %s429, %s430
      %p432 = scmp.eq.s32.totalorder %s431, 0
      %s434 = sadd.s32 %s433, 1
      %s435 = scalar_select %p432, %s433, %s434
      %p438 = pneg %p432
      %p439 = scmp.eq.s32.totalorder %s33, 1
      %p440 = por %p438, %p439
      %p441 = scmp.ne.s32.totalorder %s433, %s436
      %p442 = scmp.eq.s32.totalorder %s33, 0
      %p443 = por %p441, %p442
      %p444 = scmp.ne.s32.totalorder %s433, %s436
      %p445 = scmp.eq.s32.totalorder %s38, 1
      %p446 = por %p444, %p445
      %p447 = scmp.ne.s32.totalorder %s436, %s437
      %p448 = scmp.eq.s32.totalorder %s38, 0
      %p449 = por %p447, %p448
      %p450 = scmp.ne.s32.totalorder %s436, %s437
      %p451 = scmp.eq.s32.totalorder %s39, 1
      %p452 = por %p450, %p451
      %p454 = scmp.ne.s32.totalorder %s437, %s453
      %p455 = scmp.eq.s32.totalorder %s39, 0
      %p456 = por %p454, %p455
      %p457 = scmp.le.s32.totalorder 1, %s33
      %p458 = scmp.lt.s32.totalorder %s33, 3
      %p459 = pnand %p457, %p458
      %p460 = pneg %p459
      // Predicated region
      $region9: #{tpu_custom_call.1} parent=5 // pred_check
        _
      $region10: #{tpu_custom_call.1} parent=5 // pred_check_branch
        %462 = sbr.rel (%p459) target = $region12
      $region11: #{tpu_custom_call.1} parent=5 // pred_region
        %s463 = ssub.s32 %s33, 1
        // Predicated region
        $region13: #{tpu_custom_call.1} parent=11 // pred_check
          %p464 = pneg %p120
        $region14: #{tpu_custom_call.1} parent=11 // pred_check_branch
          %466 = sbr.rel (%p464) target = $region16
        $region15: #{tpu_custom_call.1} parent=11 // pred_region
          _
        $region16: #{tpu_custom_call.1} parent=11 // pred_fallthru
          _
        // Predicated region
        $region17: #{tpu_custom_call.1} parent=11 // pred_check
          %p467 = pneg %p141
        $region18: #{tpu_custom_call.1} parent=11 // pred_check_branch
          %469 = sbr.rel (%p467) target = $region20
        $region19: #{tpu_custom_call.1} parent=11 // pred_region
          _
        $region20: #{tpu_custom_call.1} parent=11 // pred_fallthru
          _
        // Predicated region
        $region21: #{tpu_custom_call.1} parent=11 // pred_check
          %p470 = pneg %p162
        $region22: #{tpu_custom_call.1} parent=11 // pred_check_branch
          %472 = sbr.rel (%p470) target = $region24
        $region23: #{tpu_custom_call.1} parent=11 // pred_region
          %s474 = ssub.s32 256, 256
          %475 = vsyncadd [#allocation5], %s474
          %s476 = sshll.u32 [#allocation4], 4
          %s477 = int_to_ptr.vmem [resolvable:$true] %s476
          %482 = dma.hbm_to_vmem [thread:$0]  %s4, 256, %s477, [#allocation5], 64, 64, 4
        $region24: #{tpu_custom_call.1} parent=11 // pred_fallthru
          _
        // Predicated region
        $region25: #{tpu_custom_call.1} parent=11 // pred_check
          %p483 = pneg %p183
        $region26: #{tpu_custom_call.1} parent=11 // pred_check_branch
          %485 = sbr.rel (%p483) target = $region28
        $region27: #{tpu_custom_call.1} parent=11 // pred_region
          _
        $region28: #{tpu_custom_call.1} parent=11 // pred_fallthru
          _
        // Predicated region
        $region29: #{tpu_custom_call.1} parent=11 // pred_check
          %p486 = pneg %p204
        $region30: #{tpu_custom_call.1} parent=11 // pred_check_branch
          %488 = sbr.rel (%p486) target = $region32
        $region31: #{tpu_custom_call.1} parent=11 // pred_region
          %s490 = ssub.s32 256, 256
          %491 = vsyncadd [#allocation8], %s490
          %s492 = sshll.u32 [#allocation7], 4
          %s493 = int_to_ptr.vmem [resolvable:$true] %s492
          %498 = dma.hbm_to_vmem [thread:$0]  %s6, 256, %s493, [#allocation8], 64, 64, 4
        $region32: #{tpu_custom_call.1} parent=11 // pred_fallthru
          _
        // Predicated region
        $region33: #{tpu_custom_call.1} parent=11 // pred_check
          %p499 = pneg %p225
        $region34: #{tpu_custom_call.1} parent=11 // pred_check_branch
          %501 = sbr.rel (%p499) target = $region36
        $region35: #{tpu_custom_call.1} parent=11 // pred_region
          %s503 = ssub.s32 16, 16
          %504 = vsyncadd [#allocation8], %s503
          %s506 = sshll.u32 [#allocation9], 4
          %s507 = int_to_ptr.vmem [resolvable:$true] %s506
          %509 = dma.hbm_to_vmem [thread:$0]  %s7, 16, %s507, [#allocation8]
        $region36: #{tpu_custom_call.1} parent=11 // pred_fallthru
          _
        // Predicated region
        $region37: #{tpu_custom_call.1} parent=11 // pred_check
          %p510 = pneg %p246
        $region38: #{tpu_custom_call.1} parent=11 // pred_check_branch
          %512 = sbr.rel (%p510) target = $region40
        $region39: #{tpu_custom_call.1} parent=11 // pred_region
          %s514 = ssub.s32 16, 16
          %515 = vsyncadd [#allocation11], %s514
          %s517 = sshll.u32 [#allocation10], 4
          %s518 = int_to_ptr.vmem [resolvable:$true] %s517
          %520 = dma.hbm_to_vmem [thread:$0]  %s8, 16, %s518, [#allocation11]
        $region40: #{tpu_custom_call.1} parent=11 // pred_fallthru
          _
        // Predicated region
        $region41: #{tpu_custom_call.1} parent=11 // pred_check
          %p521 = pneg %p267
        $region42: #{tpu_custom_call.1} parent=11 // pred_check_branch
          %523 = sbr.rel (%p521) target = $region44
        $region43: #{tpu_custom_call.1} parent=11 // pred_region
          %s525 = ssub.s32 16, 16
          %526 = vsyncadd [#allocation11], %s525
          %s528 = sshll.u32 [#allocation12], 4
          %s529 = int_to_ptr.vmem [resolvable:$true] %s528
          %531 = dma.hbm_to_vmem [thread:$0]  %s9, 16, %s529, [#allocation11]
        $region44: #{tpu_custom_call.1} parent=11 // pred_fallthru
          _
        // Predicated region
        $region45: #{tpu_custom_call.1} parent=11 // pred_check
          %p532 = pneg %p288
        $region46: #{tpu_custom_call.1} parent=11 // pred_check_branch
          %534 = sbr.rel (%p532) target = $region48
        $region47: #{tpu_custom_call.1} parent=11 // pred_region
          _
        $region48: #{tpu_custom_call.1} parent=11 // pred_fallthru
          _
        // Predicated region
        $region49: #{tpu_custom_call.1} parent=11 // pred_check
          %p535 = pneg %p309
        $region50: #{tpu_custom_call.1} parent=11 // pred_check_branch
          %537 = sbr.rel (%p535) target = $region52
        $region51: #{tpu_custom_call.1} parent=11 // pred_region
          _
        $region52: #{tpu_custom_call.1} parent=11 // pred_fallthru
          _
        // Predicated region
        $region53: #{tpu_custom_call.1} parent=11 // pred_check
          %p538 = pneg %p330
        $region54: #{tpu_custom_call.1} parent=11 // pred_check_branch
          %540 = sbr.rel (%p538) target = $region56
        $region55: #{tpu_custom_call.1} parent=11 // pred_region
          _
        $region56: #{tpu_custom_call.1} parent=11 // pred_fallthru
          _
        // Predicated region
        $region57: #{tpu_custom_call.1} parent=11 // pred_check
          %p541 = pneg %p351
        $region58: #{tpu_custom_call.1} parent=11 // pred_check_branch
          %543 = sbr.rel (%p541) target = $region60
        $region59: #{tpu_custom_call.1} parent=11 // pred_region
          _
        $region60: #{tpu_custom_call.1} parent=11 // pred_fallthru
          _
        // Predicated region
        $region61: #{tpu_custom_call.1} parent=11 // pred_check
          %p544 = pneg %p372
        $region62: #{tpu_custom_call.1} parent=11 // pred_check_branch
          %546 = sbr.rel (%p544) target = $region64
        $region63: #{tpu_custom_call.1} parent=11 // pred_region
          _
        $region64: #{tpu_custom_call.1} parent=11 // pred_fallthru
          _
        // Predicated region
        $region65: #{tpu_custom_call.1} parent=11 // pred_check
          %p547 = pneg %p393
        $region66: #{tpu_custom_call.1} parent=11 // pred_check_branch
          %549 = sbr.rel (%p547) target = $region68
        $region67: #{tpu_custom_call.1} parent=11 // pred_region
          _
        $region68: #{tpu_custom_call.1} parent=11 // pred_fallthru
          _
      $region12: #{tpu_custom_call.1} parent=5 // pred_fallthru
        _
      %p550 = scmp.lt.s32.totalorder %s33, 2
      // Predicated region
      $region69: #{tpu_custom_call.1} parent=5 // pred_check
        %p551 = pneg %p550
      $region70: #{tpu_custom_call.1} parent=5 // pred_check_branch
        %553 = sbr.rel (%p551) target = $region72
      $region71: #{tpu_custom_call.1} parent=5 // pred_region
        // Predicated region
        $region73: #{tpu_custom_call.1} parent=71 // pred_check
          %p554 = pneg %p65
        $region74: #{tpu_custom_call.1} parent=71 // pred_check_branch
          %556 = sbr.rel (%p554) target = $region76
        $region75: #{tpu_custom_call.1} parent=71 // pred_region
          %p557 = scmp.lt.s32.totalorder %s40, 1
          %s558 = scalar_select %p557, %s40, 1
          %s559 = smul.addr %s558, 8
          %s560 = scalar_lea.vmem %s0, %s559
        $region76: #{tpu_custom_call.1} parent=71 // pred_fallthru
          _
        // Predicated region
        $region77: #{tpu_custom_call.1} parent=71 // pred_check
          %p561 = pneg %p93
        $region78: #{tpu_custom_call.1} parent=71 // pred_check_branch
          %563 = sbr.rel (%p561) target = $region80
        $region79: #{tpu_custom_call.1} parent=71 // pred_region
          %p564 = scmp.lt.s32.totalorder %s40, 1
          %s565 = scalar_select %p564, %s40, 1
          %p566 = scmp.lt.s32.totalorder %s41, 0
          %s567 = scalar_select %p566, %s41, 0
          %s568 = smul.addr %s565, 4
          %s569 = sadd.s32 %s567, %s568
          %s570 = smul.addr %s569, 2
          %s571 = scalar_lea.vmem %s1, %s570
        $region80: #{tpu_custom_call.1} parent=71 // pred_fallthru
          _
      $region72: #{tpu_custom_call.1} parent=5 // pred_fallthru
        _
      %p572 = scmp.le.s32.totalorder 1, %s33
      %p573 = scmp.lt.s32.totalorder %s33, 3
      %p574 = pnand %p572, %p573
      %p575 = pneg %p574
      // Predicated region
      $region81: #{tpu_custom_call.1} parent=5 // pred_check
        _
      $region82: #{tpu_custom_call.1} parent=5 // pred_check_branch
        %577 = sbr.rel (%p574) target = $region84
      $region83: #{tpu_custom_call.1} parent=5 // pred_region
        %s578 = ssub.s32 %s33, 1
        // Predicated region
        $region85: #{tpu_custom_call.1} parent=83 // pred_check
          %p579 = pneg %p162
        $region86: #{tpu_custom_call.1} parent=83 // pred_check_branch
          %581 = sbr.rel (%p579) target = $region88
        $region87: #{tpu_custom_call.1} parent=83 // pred_region
          %582 = dma.done [#allocation5], 256
        $region88: #{tpu_custom_call.1} parent=83 // pred_fallthru
          _
        // Predicated region
        $region89: #{tpu_custom_call.1} parent=83 // pred_check
          %p583 = pneg %p204
        $region90: #{tpu_custom_call.1} parent=83 // pred_check_branch
          %585 = sbr.rel (%p583) target = $region92
        $region91: #{tpu_custom_call.1} parent=83 // pred_region
          %586 = dma.done [#allocation8], 256
        $region92: #{tpu_custom_call.1} parent=83 // pred_fallthru
          _
        // Predicated region
        $region93: #{tpu_custom_call.1} parent=83 // pred_check
          %p587 = pneg %p225
        $region94: #{tpu_custom_call.1} parent=83 // pred_check_branch
          %589 = sbr.rel (%p587) target = $region96
        $region95: #{tpu_custom_call.1} parent=83 // pred_region
          %590 = dma.done [#allocation8], 16
        $region96: #{tpu_custom_call.1} parent=83 // pred_fallthru
          _
        // Predicated region
        $region97: #{tpu_custom_call.1} parent=83 // pred_check
          %p591 = pneg %p246
        $region98: #{tpu_custom_call.1} parent=83 // pred_check_branch
          %593 = sbr.rel (%p591) target = $region100
        $region99: #{tpu_custom_call.1} parent=83 // pred_region
          %594 = dma.done [#allocation11], 16
        $region100: #{tpu_custom_call.1} parent=83 // pred_fallthru
          _
        // Predicated region
        $region101: #{tpu_custom_call.1} parent=83 // pred_check
          %p595 = pneg %p267
        $region102: #{tpu_custom_call.1} parent=83 // pred_check_branch
          %597 = sbr.rel (%p595) target = $region104
        $region103: #{tpu_custom_call.1} parent=83 // pred_region
          %598 = dma.done [#allocation11], 16
        $region104: #{tpu_custom_call.1} parent=83 // pred_fallthru
          _
        %p599 = scmp.lt.s32.totalorder %s42, 1
        %s600 = scalar_select %p599, %s42, 1
        %s601 = smul.addr %s600, 8
        %s602 = scalar_lea.vmem %s0, %s601
        %p603 = pneg %p71
        %p604 = pneg %p68
        %p605 = scmp.lt.s32.totalorder %s42, 1
        %s606 = scalar_select %p605, %s42, 1
        %p607 = scmp.lt.s32.totalorder %s43, 0
        %s608 = scalar_select %p607, %s43, 0
        %s609 = smul.addr %s606, 4
        %s610 = sadd.s32 %s608, %s609
        %s611 = smul.addr %s610, 2
        %s612 = scalar_lea.vmem %s1, %s611
        %p613 = pneg %p99
        %p614 = pneg %p96
        %p615 = pneg %p120
        %p616 = pneg %p117
        %p617 = pneg %p141
        %p618 = pneg %p138
        %p619 = pneg %p162
        %p620 = pneg %p159
        %p621 = pneg %p183
        %p622 = pneg %p180
        %p623 = pneg %p204
        %p624 = pneg %p201
        %p625 = pneg %p225
        %p626 = pneg %p222
        %p627 = pneg %p246
        %p628 = pneg %p243
        %p629 = pneg %p267
        %p630 = pneg %p264
        %p631 = pneg %p288
        %p632 = pneg %p285
        %p633 = pneg %p309
        %p634 = pneg %p306
        %p635 = pneg %p330
        %p636 = pneg %p327
        %p637 = pneg %p351
        %p638 = pneg %p348
        %p639 = pneg %p372
        %p640 = pneg %p369
        %p641 = pneg %p393
        %p642 = pneg %p390
        %p643 = pneg %p421
        %p644 = pneg %p418
        %s645 = sand.u32 %s408, 1
        %s646 = scalar_lea.sflag [#allocation6], %s645
        %s647 = sand.u32 %s408, 1
        %s648 = smul.addr %s647, 8
        %s649 = scalar_lea.vmem [#allocation13], %s648
        %p650 = pneg %p449
        %p651 = pneg %p446
        %s652 = sand.u32 %s436, 1
        %s653 = scalar_lea.sflag [#allocation15], %s652
        %s654 = sand.u32 %s436, 1
        %s655 = smul.addr %s654, 32
        %s656 = scalar_lea.vmem [#allocation14], %s655
        %p657 = scmp.lt.s32.totalorder %s42, 1
        %s658 = scalar_select %p657, %s42, 1
        %s659 = smul.addr %s658, 8
        %s660 = scalar_lea.vmem %s0, %s659
        %p661 = scmp.lt.s32.totalorder %s42, 1
        %s662 = scalar_select %p661, %s42, 1
        %p663 = scmp.lt.s32.totalorder %s43, 0
        %s664 = scalar_select %p663, %s43, 0
        %s665 = smul.addr %s662, 4
        %s666 = sadd.s32 %s664, %s665
        %s667 = smul.addr %s666, 2
        %s668 = scalar_lea.vmem %s1, %s667
        %s672 = smul.u32 %s43, 8
        %p673 = scmp.eq.s32.totalorder %s43, 0
        // Predicated region
        $region105: #{tpu_custom_call.1} parent=83 // pred_check
          %p674 = pneg %p673
        $region106: #{tpu_custom_call.1} parent=83 // pred_check_branch
          %676 = sbr.rel (%p674) target = $region108
        $region107: #{tpu_custom_call.1} parent=83 // pred_region
          %v677 = vld [vmem:[%s660] sm:$0xff]
          %v678 = vpack.c.bf16 %v677, %v677
          %v679 = vld [vmem:[#allocation4] sm:$0xf]
          %v680 = vld [vmem:[#allocation4 + $0x4] sm:$0xf]
          %v681 = vld [vmem:[#allocation4 + $0x8] sm:$0xf]
          %v682 = vld [vmem:[#allocation4 + $0xc] sm:$0xf]
          %v683 = vld [vmem:[%s5] sm:$0x1]
          %v685 = vlaneseq
          %v686 = vshrl.u32 %v685, 7
          %v687 = vsub.s32 0, %v686
          %v688 = vrot.slane %v683, %v687
          %v694 = vunpack.c.l.b16 %v679
          %v695 = vunpack.c.l.b16 %v680
          %v696 = vunpack.c.l.b16 %v681
          %v697 = vunpack.c.l.b16 %v682
          %v698 = vpack.c.b16 %v695, %v694
          %v699 = vpack.c.b16 %v697, %v696
          %vm702 = vcmask 261120
          %v704 = vsel %vm702, %v678, 0
          %706 = vmatprep.subr.bf16.mxu0 0
          %707 = vmatpush1.bf16.msra.mxu0 %v698
          %708 = vmatprep.subr.bf16.mxu0 0
          %709 = vmatpush1.bf16.msra.mxu0 %v699
          %710 = vmatprep.subr.bf16.mxu0 0
          %711 = vmatpush1.bf16.msra.mxu0 0
          %712 = vmatprep.subr.bf16.mxu0 0
          %713 = vmatpush1.bf16.msra.mxu0 0
          %714 = vmatprep.subr.bf16.mxu0 0
          %715 = vmatpush1.bf16.msra.mxu0 0
          %716 = vmatprep.subr.bf16.mxu0 0
          %717 = vmatpush1.bf16.msra.mxu0 0
          %718 = vmatprep.subr.bf16.mxu0 0
          %719 = vmatpush1.bf16.msra.mxu0 0
          %720 = vmatprep.subr.bf16.mxu0 0
          %721 = vmatpush1.bf16.msra.mxu0 0
          %722 = vmatprep.subr.bf16.mxu0 0
          %723 = vmatpush1.bf16.msra.mxu0 0
          %724 = vmatprep.subr.bf16.mxu0 0
          %725 = vmatpush1.bf16.msra.mxu0 0
          %726 = vmatprep.subr.bf16.mxu0 0
          %727 = vmatpush1.bf16.msra.mxu0 0
          %728 = vmatprep.subr.bf16.mxu0 0
          %729 = vmatpush1.bf16.msra.mxu0 0
          %730 = vmatprep.subr.bf16.mxu0 0
          %731 = vmatpush1.bf16.msra.mxu0 0
          %732 = vmatprep.subr.bf16.mxu0 0
          %733 = vmatpush1.bf16.msra.mxu0 0
          %734 = vmatprep.subr.bf16.mxu0 0
          %735 = vmatpush1.bf16.msra.mxu0 0
          %736 = vmatprep.subr.bf16.mxu0 0
          %737 = vmatpush1.bf16.msra.mxu0 0
          %738 = vmatprep.mubr.bf16.mxu0 0
          %739 = vmatmul.mubr.bf16.gmra.mrb[0].mxu0 %v704
          %v740 = vpop.f32.mrb[0].mxu0
          %v741 = vadd.f32 %v688, %v740
          %v742 = vpop.f32.mrb[0].mxu0
          %v743 = vpop.f32.mrb[0].mxu0
          %v744 = vpop.f32.mrb[0].mxu0
          %745 = vdwg.mxu0
          %v746 = vpack.c.bf16 %v741, %v741
          %vm747 = vcmask 257024
          %748 = vst.msk [vmem:[#allocation2] sm:$0xf] %vm747, %v746
          %v750 = vunpack.c.l.b16 %v746
          %v751 = vpack.c.b16 %v750, %v750
          %752 = vrot.lane.b32.xlu0 %v751, 96
          %v753 = vpop.permute.xlu0 %752
          %755 = vst.msk [vmem:[#allocation3] sm:$0xf] %vm747, %v753
        $region108: #{tpu_custom_call.1} parent=83 // pred_fallthru
          _
        %s756 = scalar_lea.vmem %s660, %s672
        %v757 = vld [vmem:[%s756] sm:$0xff]
        %v758 = vpack.c.bf16 %v757, %v757
        %v759 = vld [vmem:[%s2] sm:$0xf]
        %v760 = vld [vmem:[%s2 + $0x4] sm:$0xf]
        %v761 = vld [vmem:[%s2 + $0x8] sm:$0xf]
        %v762 = vld [vmem:[%s2 + $0xc] sm:$0xf]
        %v763 = vld [vmem:[%s3] sm:$0x1]
        %v765 = vlaneseq
        %v766 = vshrl.u32 %v765, 7
        %v767 = vsub.s32 0, %v766
        %v768 = vrot.slane %v763, %v767
        %v774 = vunpack.c.l.b16 %v759
        %v775 = vunpack.c.l.b16 %v760
        %v776 = vunpack.c.l.b16 %v761
        %v777 = vunpack.c.l.b16 %v762
        %v778 = vpack.c.b16 %v775, %v774
        %v779 = vpack.c.b16 %v777, %v776
        %vm782 = vcmask 261120
        %v784 = vsel %vm782, %v758, 0
        %786 = vmatprep.subr.bf16.mxu0 0
        %787 = vmatpush1.bf16.msra.mxu0 %v778
        %788 = vmatprep.subr.bf16.mxu0 0
        %789 = vmatpush1.bf16.msra.mxu0 %v779
        %790 = vmatprep.subr.bf16.mxu0 0
        %791 = vmatpush1.bf16.msra.mxu0 0
        %792 = vmatprep.subr.bf16.mxu0 0
        %793 = vmatpush1.bf16.msra.mxu0 0
        %794 = vmatprep.subr.bf16.mxu0 0
        %795 = vmatpush1.bf16.msra.mxu0 0
        %796 = vmatprep.subr.bf16.mxu0 0
        %797 = vmatpush1.bf16.msra.mxu0 0
        %798 = vmatprep.subr.bf16.mxu0 0
        %799 = vmatpush1.bf16.msra.mxu0 0
        %800 = vmatprep.subr.bf16.mxu0 0
        %801 = vmatpush1.bf16.msra.mxu0 0
        %802 = vmatprep.subr.bf16.mxu0 0
        %803 = vmatpush1.bf16.msra.mxu0 0
        %804 = vmatprep.subr.bf16.mxu0 0
        %805 = vmatpush1.bf16.msra.mxu0 0
        %806 = vmatprep.subr.bf16.mxu0 0
        %807 = vmatpush1.bf16.msra.mxu0 0
        %808 = vmatprep.subr.bf16.mxu0 0
        %809 = vmatpush1.bf16.msra.mxu0 0
        %810 = vmatprep.subr.bf16.mxu0 0
        %811 = vmatpush1.bf16.msra.mxu0 0
        %812 = vmatprep.subr.bf16.mxu0 0
        %813 = vmatpush1.bf16.msra.mxu0 0
        %814 = vmatprep.subr.bf16.mxu0 0
        %815 = vmatpush1.bf16.msra.mxu0 0
        %816 = vmatprep.subr.bf16.mxu0 0
        %817 = vmatpush1.bf16.msra.mxu0 0
        %818 = vmatprep.mubr.bf16.mxu0 0
        %819 = vmatmul.mubr.bf16.gmra.mrb[0].mxu0 %v784
        %v820 = vpop.f32.mrb[0].mxu0
        %v821 = vadd.f32 %v768, %v820
        %v822 = vpop.f32.mrb[0].mxu0
        %v823 = vpop.f32.mrb[0].mxu0
        %v824 = vpop.f32.mrb[0].mxu0
        %825 = vdwg.mxu0
        %v826 = vmul.f32 %v821, 0.35355338
        %v827 = vpack.c.bf16 %v826, %v826
        %v828 = vld [vmem:[#allocation2] sm:$0xf]
        %v829 = vld [vmem:[#allocation3] sm:$0xf]
        %v830 = vld [vmem:[%s668] sm:$0x3]
        %v831 = vld [vmem:[%s668 + $0x2] sm:$0x3]
        %v832 = vld [vmem:[%s668 + $0x4] sm:$0x3]
        %v833 = vld [vmem:[%s668 + $0x6] sm:$0x3]
        %vm834 = vcmask 64512
        %v836 = vsel %vm834, %v827, 0
        %v839 = vsel %vm834, %v828, 0
        %841 = vmatprep.subr.bf16.mxu0 0
        %842 = vmatpush1.bf16.xpose.msra.mxu0 %v839
        %843 = vmatprep.subr.bf16.mxu0 0
        %844 = vmatpush1.bf16.xpose.msra.mxu0 0
        %845 = vmatprep.subr.bf16.mxu0 0
        %846 = vmatpush1.bf16.xpose.msra.mxu0 0
        %847 = vmatprep.subr.bf16.mxu0 0
        %848 = vmatpush1.bf16.xpose.msra.mxu0 0
        %849 = vmatprep.subr.bf16.mxu0 0
        %850 = vmatpush1.bf16.xpose.msra.mxu0 0
        %851 = vmatprep.subr.bf16.mxu0 0
        %852 = vmatpush1.bf16.xpose.msra.mxu0 0
        %853 = vmatprep.subr.bf16.mxu0 0
        %854 = vmatpush1.bf16.xpose.msra.mxu0 0
        %855 = vmatprep.subr.bf16.mxu0 0
        %856 = vmatpush1.bf16.xpose.msra.mxu0 0
        %857 = vmatprep.subr.bf16.mxu0 0
        %858 = vmatpush1.bf16.xpose.msra.mxu0 0
        %859 = vmatprep.subr.bf16.mxu0 0
        %860 = vmatpush1.bf16.xpose.msra.mxu0 0
        %861 = vmatprep.subr.bf16.mxu0 0
        %862 = vmatpush1.bf16.xpose.msra.mxu0 0
        %863 = vmatprep.subr.bf16.mxu0 0
        %864 = vmatpush1.bf16.xpose.msra.mxu0 0
        %865 = vmatprep.subr.bf16.mxu0 0
        %866 = vmatpush1.bf16.xpose.msra.mxu0 0
        %867 = vmatprep.subr.bf16.mxu0 0
        %868 = vmatpush1.bf16.xpose.msra.mxu0 0
        %869 = vmatprep.subr.bf16.mxu0 0
        %870 = vmatpush1.bf16.xpose.msra.mxu0 0
        %871 = vmatprep.subr.bf16.mxu0 0
        %872 = vmatpush1.bf16.xpose.msra.mxu0 0
        %873 = vmatprep.mubr.bf16.mxu0 0
        %874 = vmatmul.mubr.bf16.gmra.mrb[0].mxu0 %v836
        %v875 = vpop.f32.mrb[0].mxu0
        %v876 = vadd.f32 0.0, %v875
        %v877 = vpop.f32.mrb[0].mxu0
        %v878 = vpop.f32.mrb[0].mxu0
        %v879 = vpop.f32.mrb[0].mxu0
        %880 = vdwg.mxu0
        %vm881 = vnez %v830
        %v882 = vsel %vm881, 16843009, 0
        %v883 = vunpack.c.0.s8 %v882
        %vm884 = vcmp.ne.s32.totalorder %v883, 0
        %v885 = vsel %vm884, -1e+18, %v876
        %v886 = vsel %vm834, %v885, -inf
        %887 = vmax.xlane.f32.xlu0 %v886
        %v888 = vpop.xlane.xlu0 %887
        %v889 = vsub.f32 %v885, %v888
        %v890 = vmul.f32 %v889, 1.442695
        %v891 = vpow.pop %v890
        %v892 = vsel %vm834, %v891, 0.0
        %893 = vadd.xlane.f32.xlu0 %v892
        %v894 = vpop.xlane.xlu0 %893
        %v895 = vrcp.pop %v894
        %v896 = vmul.f32 %v891, %v895
        %897 = vst.msk [vmem:[%s656] sm:$0xff] %vm834, %v896
        %v898 = vpack.c.bf16 %v896, %v896
        %v900 = vsel %vm834, %v898, 0
        %vm902 = vcmask 1043456
        %v904 = vsel %vm902, %v829, 0
        %906 = vmatprep.subr.bf16.mxu0 0
        %907 = vmatpush1.bf16.msra.mxu0 %v904
        %908 = vmatprep.subr.bf16.mxu0 0
        %909 = vmatpush1.bf16.msra.mxu0 0
        %910 = vmatprep.subr.bf16.mxu0 0
        %911 = vmatpush1.bf16.msra.mxu0 0
        %912 = vmatprep.subr.bf16.mxu0 0
        %913 = vmatpush1.bf16.msra.mxu0 0
        %914 = vmatprep.subr.bf16.mxu0 0
        %915 = vmatpush1.bf16.msra.mxu0 0
        %916 = vmatprep.subr.bf16.mxu0 0
        %917 = vmatpush1.bf16.msra.mxu0 0
        %918 = vmatprep.subr.bf16.mxu0 0
        %919 = vmatpush1.bf16.msra.mxu0 0
        %920 = vmatprep.subr.bf16.mxu0 0
        %921 = vmatpush1.bf16.msra.mxu0 0
        %922 = vmatprep.subr.bf16.mxu0 0
        %923 = vmatpush1.bf16.msra.mxu0 0
        %924 = vmatprep.subr.bf16.mxu0 0
        %925 = vmatpush1.bf16.msra.mxu0 0
        %926 = vmatprep.subr.bf16.mxu0 0
        %927 = vmatpush1.bf16.msra.mxu0 0
        %928 = vmatprep.subr.bf16.mxu0 0
        %929 = vmatpush1.bf16.msra.mxu0 0
        %930 = vmatprep.subr.bf16.mxu0 0
        %931 = vmatpush1.bf16.msra.mxu0 0
        %932 = vmatprep.subr.bf16.mxu0 0
        %933 = vmatpush1.bf16.msra.mxu0 0
        %934 = vmatprep.subr.bf16.mxu0 0
        %935 = vmatpush1.bf16.msra.mxu0 0
        %936 = vmatprep.subr.bf16.mxu0 0
        %937 = vmatpush1.bf16.msra.mxu0 0
        %938 = vmatprep.mubr.bf16.mxu0 0
        %939 = vmatmul.mubr.bf16.gmra.mrb[0].mxu0 %v900
        %v940 = vpop.f32.mrb[0].mxu0
        %v941 = vadd.f32 0.0, %v940
        %v942 = vpop.f32.mrb[0].mxu0
        %v943 = vpop.f32.mrb[0].mxu0
        %v944 = vpop.f32.mrb[0].mxu0
        %945 = vdwg.mxu0
        %947 = vrot.lane.b32.xlu0 %v827, 120
        %v948 = vpop.permute.xlu0 %947
        %v950 = vunpack.c.l.b16 %v828
        %v951 = vpack.c.b16 %v950, %v950
        %952 = vrot.lane.b32.xlu0 %v951, 120
        %v953 = vpop.permute.xlu0 %952
        %v955 = vsel %vm834, %v948, 0
        %v958 = vsel %vm834, %v953, 0
        %960 = vmatprep.subr.bf16.mxu0 0
        %961 = vmatpush1.bf16.xpose.msra.mxu0 %v958
        %962 = vmatprep.subr.bf16.mxu0 0
        %963 = vmatpush1.bf16.xpose.msra.mxu0 0
        %964 = vmatprep.subr.bf16.mxu0 0
        %965 = vmatpush1.bf16.xpose.msra.mxu0 0
        %966 = vmatprep.subr.bf16.mxu0 0
        %967 = vmatpush1.bf16.xpose.msra.mxu0 0
        %968 = vmatprep.subr.bf16.mxu0 0
        %969 = vmatpush1.bf16.xpose.msra.mxu0 0
        %970 = vmatprep.subr.bf16.mxu0 0
        %971 = vmatpush1.bf16.xpose.msra.mxu0 0
        %972 = vmatprep.subr.bf16.mxu0 0
        %973 = vmatpush1.bf16.xpose.msra.mxu0 0
        %974 = vmatprep.subr.bf16.mxu0 0
        %975 = vmatpush1.bf16.xpose.msra.mxu0 0
        %976 = vmatprep.subr.bf16.mxu0 0
        %977 = vmatpush1.bf16.xpose.msra.mxu0 0
        %978 = vmatprep.subr.bf16.mxu0 0
        %979 = vmatpush1.bf16.xpose.msra.mxu0 0
        %980 = vmatprep.subr.bf16.mxu0 0
        %981 = vmatpush1.bf16.xpose.msra.mxu0 0
        %982 = vmatprep.subr.bf16.mxu0 0
        %983 = vmatpush1.bf16.xpose.msra.mxu0 0
        %984 = vmatprep.subr.bf16.mxu0 0
        %985 = vmatpush1.bf16.xpose.msra.mxu0 0
        %986 = vmatprep.subr.bf16.mxu0 0
        %987 = vmatpush1.bf16.xpose.msra.mxu0 0
        %988 = vmatprep.subr.bf16.mxu0 0
        %989 = vmatpush1.bf16.xpose.msra.mxu0 0
        %990 = vmatprep.subr.bf16.mxu0 0
        %991 = vmatpush1.bf16.xpose.msra.mxu0 0
        %992 = vmatprep.mubr.bf16.mxu0 0
        %993 = vmatmul.mubr.bf16.gmra.mrb[0].mxu0 %v955
        %v994 = vpop.f32.mrb[0].mxu0
        %v995 = vadd.f32 0.0, %v994
        %v996 = vpop.f32.mrb[0].mxu0
        %v997 = vpop.f32.mrb[0].mxu0
        %v998 = vpop.f32.mrb[0].mxu0
        %999 = vdwg.mxu0
        %vm1000 = vnez %v831
        %v1001 = vsel %vm1000, 16843009, 0
        %v1002 = vunpack.c.0.s8 %v1001
        %vm1003 = vcmp.ne.s32.totalorder %v1002, 0
        %v1004 = vsel %vm1003, -1e+18, %v995
        %v1005 = vsel %vm834, %v1004, -inf
        %1006 = vmax.xlane.f32.xlu0 %v1005
        %v1007 = vpop.xlane.xlu0 %1006
        %v1008 = vsub.f32 %v1004, %v1007
        %v1009 = vmul.f32 %v1008, 1.442695
        %v1010 = vpow.pop %v1009
        %v1011 = vsel %vm834, %v1010, 0.0
        %1012 = vadd.xlane.f32.xlu0 %v1011
        %v1013 = vpop.xlane.xlu0 %1012
        %v1014 = vrcp.pop %v1013
        %v1015 = vmul.f32 %v1010, %v1014
        %s1016 = scalar_lea.vmem %s656, 8 [#allocation14]
        %1017 = vst.msk [vmem:[%s1016] sm:$0xff] %vm834, %v1015
        %v1018 = vpack.c.bf16 %v1015, %v1015
        %v1020 = vunpack.c.l.b16 %v829
        %v1021 = vpack.c.b16 %v1020, %v1020
        %1022 = vrot.lane.b32.xlu0 %v1021, 120
        %v1023 = vpop.permute.xlu0 %1022
        %v1025 = vsel %vm834, %v1018, 0
        %v1028 = vsel %vm902, %v1023, 0
        %1030 = vmatprep.subr.bf16.mxu0 0
        %1031 = vmatpush1.bf16.msra.mxu0 %v1028
        %1032 = vmatprep.subr.bf16.mxu0 0
        %1033 = vmatpush1.bf16.msra.mxu0 0
        %1034 = vmatprep.subr.bf16.mxu0 0
        %1035 = vmatpush1.bf16.msra.mxu0 0
        %1036 = vmatprep.subr.bf16.mxu0 0
        %1037 = vmatpush1.bf16.msra.mxu0 0
        %1038 = vmatprep.subr.bf16.mxu0 0
        %1039 = vmatpush1.bf16.msra.mxu0 0
        %1040 = vmatprep.subr.bf16.mxu0 0
        %1041 = vmatpush1.bf16.msra.mxu0 0
        %1042 = vmatprep.subr.bf16.mxu0 0
        %1043 = vmatpush1.bf16.msra.mxu0 0
        %1044 = vmatprep.subr.bf16.mxu0 0
        %1045 = vmatpush1.bf16.msra.mxu0 0
        %1046 = vmatprep.subr.bf16.mxu0 0
        %1047 = vmatpush1.bf16.msra.mxu0 0
        %1048 = vmatprep.subr.bf16.mxu0 0
        %1049 = vmatpush1.bf16.msra.mxu0 0
        %1050 = vmatprep.subr.bf16.mxu0 0
        %1051 = vmatpush1.bf16.msra.mxu0 0
        %1052 = vmatprep.subr.bf16.mxu0 0
        %1053 = vmatpush1.bf16.msra.mxu0 0
        %1054 = vmatprep.subr.bf16.mxu0 0
        %1055 = vmatpush1.bf16.msra.mxu0 0
        %1056 = vmatprep.subr.bf16.mxu0 0
        %1057 = vmatpush1.bf16.msra.mxu0 0
        %1058 = vmatprep.subr.bf16.mxu0 0
        %1059 = vmatpush1.bf16.msra.mxu0 0
        %1060 = vmatprep.subr.bf16.mxu0 0
        %1061 = vmatpush1.bf16.msra.mxu0 0
        %1062 = vmatprep.mubr.bf16.mxu0 0
        %1063 = vmatmul.mubr.bf16.gmra.mrb[0].mxu0 %v1025
        %v1064 = vpop.f32.mrb[0].mxu0
        %v1065 = vadd.f32 0.0, %v1064
        %v1066 = vpop.f32.mrb[0].mxu0
        %v1067 = vpop.f32.mrb[0].mxu0
        %v1068 = vpop.f32.mrb[0].mxu0
        %1069 = vdwg.mxu0
        %1070 = vrot.lane.b32.xlu0 %v827, 112
        %v1071 = vpop.permute.xlu0 %1070
        %1072 = vrot.lane.b32.xlu0 %v951, 112
        %v1073 = vpop.permute.xlu0 %1072
        %v1075 = vsel %vm834, %v1071, 0
        %v1078 = vsel %vm834, %v1073, 0
        %1080 = vmatprep.subr.bf16.mxu0 0
        %1081 = vmatpush1.bf16.xpose.msra.mxu0 %v1078
        %1082 = vmatprep.subr.bf16.mxu0 0
        %1083 = vmatpush1.bf16.xpose.msra.mxu0 0
        %1084 = vmatprep.subr.bf16.mxu0 0
        %1085 = vmatpush1.bf16.xpose.msra.mxu0 0
        %1086 = vmatprep.subr.bf16.mxu0 0
        %1087 = vmatpush1.bf16.xpose.msra.mxu0 0
        %1088 = vmatprep.subr.bf16.mxu0 0
        %1089 = vmatpush1.bf16.xpose.msra.mxu0 0
        %1090 = vmatprep.subr.bf16.mxu0 0
        %1091 = vmatpush1.bf16.xpose.msra.mxu0 0
        %1092 = vmatprep.subr.bf16.mxu0 0
        %1093 = vmatpush1.bf16.xpose.msra.mxu0 0
        %1094 = vmatprep.subr.bf16.mxu0 0
        %1095 = vmatpush1.bf16.xpose.msra.mxu0 0
        %1096 = vmatprep.subr.bf16.mxu0 0
        %1097 = vmatpush1.bf16.xpose.msra.mxu0 0
        %1098 = vmatprep.subr.bf16.mxu0 0
        %1099 = vmatpush1.bf16.xpose.msra.mxu0 0
        %1100 = vmatprep.subr.bf16.mxu0 0
        %1101 = vmatpush1.bf16.xpose.msra.mxu0 0
        %1102 = vmatprep.subr.bf16.mxu0 0
        %1103 = vmatpush1.bf16.xpose.msra.mxu0 0
        %1104 = vmatprep.subr.bf16.mxu0 0
        %1105 = vmatpush1.bf16.xpose.msra.mxu0 0
        %1106 = vmatprep.subr.bf16.mxu0 0
        %1107 = vmatpush1.bf16.xpose.msra.mxu0 0
        %1108 = vmatprep.subr.bf16.mxu0 0
        %1109 = vmatpush1.bf16.xpose.msra.mxu0 0
        %1110 = vmatprep.subr.bf16.mxu0 0
        %1111 = vmatpush1.bf16.xpose.msra.mxu0 0
        %1112 = vmatprep.mubr.bf16.mxu0 0
        %1113 = vmatmul.mubr.bf16.gmra.mrb[0].mxu0 %v1075
        %v1114 = vpop.f32.mrb[0].mxu0
        %v1115 = vadd.f32 0.0, %v1114
        %v1116 = vpop.f32.mrb[0].mxu0
        %v1117 = vpop.f32.mrb[0].mxu0
        %v1118 = vpop.f32.mrb[0].mxu0
        %1119 = vdwg.mxu0
        %vm1120 = vnez %v832
        %v1121 = vsel %vm1120, 16843009, 0
        %v1122 = vunpack.c.0.s8 %v1121
        %vm1123 = vcmp.ne.s32.totalorder %v1122, 0
        %v1124 = vsel %vm1123, -1e+18, %v1115
        %v1125 = vsel %vm834, %v1124, -inf
        %1126 = vmax.xlane.f32.xlu0 %v1125
        %v1127 = vpop.xlane.xlu0 %1126
        %v1128 = vsub.f32 %v1124, %v1127
        %v1129 = vmul.f32 %v1128, 1.442695
        %v1130 = vpow.pop %v1129
        %v1131 = vsel %vm834, %v1130, 0.0
        %1132 = vadd.xlane.f32.xlu0 %v1131
        %v1133 = vpop.xlane.xlu0 %1132
        %v1134 = vrcp.pop %v1133
        %v1135 = vmul.f32 %v1130, %v1134
        %s1136 = scalar_lea.vmem %s656, 16 [#allocation14]
        %1137 = vst.msk [vmem:[%s1136] sm:$0xff] %vm834, %v1135
        %v1138 = vpack.c.bf16 %v1135, %v1135
        %1139 = vrot.lane.b32.xlu0 %v1021, 112
        %v1140 = vpop.permute.xlu0 %1139
        %v1142 = vsel %vm834, %v1138, 0
        %v1145 = vsel %vm902, %v1140, 0
        %1147 = vmatprep.subr.bf16.mxu0 0
        %1148 = vmatpush1.bf16.msra.mxu0 %v1145
        %1149 = vmatprep.subr.bf16.mxu0 0
        %1150 = vmatpush1.bf16.msra.mxu0 0
        %1151 = vmatprep.subr.bf16.mxu0 0
        %1152 = vmatpush1.bf16.msra.mxu0 0
        %1153 = vmatprep.subr.bf16.mxu0 0
        %1154 = vmatpush1.bf16.msra.mxu0 0
        %1155 = vmatprep.subr.bf16.mxu0 0
        %1156 = vmatpush1.bf16.msra.mxu0 0
        %1157 = vmatprep.subr.bf16.mxu0 0
        %1158 = vmatpush1.bf16.msra.mxu0 0
        %1159 = vmatprep.subr.bf16.mxu0 0
        %1160 = vmatpush1.bf16.msra.mxu0 0
        %1161 = vmatprep.subr.bf16.mxu0 0
        %1162 = vmatpush1.bf16.msra.mxu0 0
        %1163 = vmatprep.subr.bf16.mxu0 0
        %1164 = vmatpush1.bf16.msra.mxu0 0
        %1165 = vmatprep.subr.bf16.mxu0 0
        %1166 = vmatpush1.bf16.msra.mxu0 0
        %1167 = vmatprep.subr.bf16.mxu0 0
        %1168 = vmatpush1.bf16.msra.mxu0 0
        %1169 = vmatprep.subr.bf16.mxu0 0
        %1170 = vmatpush1.bf16.msra.mxu0 0
        %1171 = vmatprep.subr.bf16.mxu0 0
        %1172 = vmatpush1.bf16.msra.mxu0 0
        %1173 = vmatprep.subr.bf16.mxu0 0
        %1174 = vmatpush1.bf16.msra.mxu0 0
        %1175 = vmatprep.subr.bf16.mxu0 0
        %1176 = vmatpush1.bf16.msra.mxu0 0
        %1177 = vmatprep.subr.bf16.mxu0 0
        %1178 = vmatpush1.bf16.msra.mxu0 0
        %1179 = vmatprep.mubr.bf16.mxu0 0
        %1180 = vmatmul.mubr.bf16.gmra.mrb[0].mxu0 %v1142
        %v1181 = vpop.f32.mrb[0].mxu0
        %v1182 = vadd.f32 0.0, %v1181
        %v1183 = vpop.f32.mrb[0].mxu0
        %v1184 = vpop.f32.mrb[0].mxu0
        %v1185 = vpop.f32.mrb[0].mxu0
        %1186 = vdwg.mxu0
        %1187 = vrot.lane.b32.xlu0 %v827, 104
        %v1188 = vpop.permute.xlu0 %1187
        %1189 = vrot.lane.b32.xlu0 %v951, 104
        %v1190 = vpop.permute.xlu0 %1189
        %v1192 = vsel %vm834, %v1188, 0
        %v1195 = vsel %vm834, %v1190, 0
        %1197 = vmatprep.subr.bf16.mxu0 0
        %1198 = vmatpush1.bf16.xpose.msra.mxu0 %v1195
        %1199 = vmatprep.subr.bf16.mxu0 0
        %1200 = vmatpush1.bf16.xpose.msra.mxu0 0
        %1201 = vmatprep.subr.bf16.mxu0 0
        %1202 = vmatpush1.bf16.xpose.msra.mxu0 0
        %1203 = vmatprep.subr.bf16.mxu0 0
        %1204 = vmatpush1.bf16.xpose.msra.mxu0 0
        %1205 = vmatprep.subr.bf16.mxu0 0
        %1206 = vmatpush1.bf16.xpose.msra.mxu0 0
        %1207 = vmatprep.subr.bf16.mxu0 0
        %1208 = vmatpush1.bf16.xpose.msra.mxu0 0
        %1209 = vmatprep.subr.bf16.mxu0 0
        %1210 = vmatpush1.bf16.xpose.msra.mxu0 0
        %1211 = vmatprep.subr.bf16.mxu0 0
        %1212 = vmatpush1.bf16.xpose.msra.mxu0 0
        %1213 = vmatprep.subr.bf16.mxu0 0
        %1214 = vmatpush1.bf16.xpose.msra.mxu0 0
        %1215 = vmatprep.subr.bf16.mxu0 0
        %1216 = vmatpush1.bf16.xpose.msra.mxu0 0
        %1217 = vmatprep.subr.bf16.mxu0 0
        %1218 = vmatpush1.bf16.xpose.msra.mxu0 0
        %1219 = vmatprep.subr.bf16.mxu0 0
        %1220 = vmatpush1.bf16.xpose.msra.mxu0 0
        %1221 = vmatprep.subr.bf16.mxu0 0
        %1222 = vmatpush1.bf16.xpose.msra.mxu0 0
        %1223 = vmatprep.subr.bf16.mxu0 0
        %1224 = vmatpush1.bf16.xpose.msra.mxu0 0
        %1225 = vmatprep.subr.bf16.mxu0 0
        %1226 = vmatpush1.bf16.xpose.msra.mxu0 0
        %1227 = vmatprep.subr.bf16.mxu0 0
        %1228 = vmatpush1.bf16.xpose.msra.mxu0 0
        %1229 = vmatprep.mubr.bf16.mxu0 0
        %1230 = vmatmul.mubr.bf16.gmra.mrb[0].mxu0 %v1192
        %v1231 = vpop.f32.mrb[0].mxu0
        %v1232 = vadd.f32 0.0, %v1231
        %v1233 = vpop.f32.mrb[0].mxu0
        %v1234 = vpop.f32.mrb[0].mxu0
        %v1235 = vpop.f32.mrb[0].mxu0
        %1236 = vdwg.mxu0
        %vm1237 = vnez %v833
        %v1238 = vsel %vm1237, 16843009, 0
        %v1239 = vunpack.c.0.s8 %v1238
        %vm1240 = vcmp.ne.s32.totalorder %v1239, 0
        %v1241 = vsel %vm1240, -1e+18, %v1232
        %v1242 = vsel %vm834, %v1241, -inf
        %1243 = vmax.xlane.f32.xlu0 %v1242
        %v1244 = vpop.xlane.xlu0 %1243
        %v1245 = vsub.f32 %v1241, %v1244
        %v1246 = vmul.f32 %v1245, 1.442695
        %v1247 = vpow.pop %v1246
        %v1248 = vsel %vm834, %v1247, 0.0
        %1249 = vadd.xlane.f32.xlu0 %v1248
        %v1250 = vpop.xlane.xlu0 %1249
        %v1251 = vrcp.pop %v1250
        %v1252 = vmul.f32 %v1247, %v1251
        %s1253 = scalar_lea.vmem %s656, 24 [#allocation14]
        %1254 = vst.msk [vmem:[%s1253] sm:$0xff] %vm834, %v1252
        %v1255 = vpack.c.bf16 %v1252, %v1252
        %1256 = vrot.lane.b32.xlu0 %v1021, 104
        %v1257 = vpop.permute.xlu0 %1256
        %v1259 = vsel %vm834, %v1255, 0
        %v1262 = vsel %vm902, %v1257, 0
        %1264 = vmatprep.subr.bf16.mxu0 0
        %1265 = vmatpush1.bf16.msra.mxu0 %v1262
        %1266 = vmatprep.subr.bf16.mxu0 0
        %1267 = vmatpush1.bf16.msra.mxu0 0
        %1268 = vmatprep.subr.bf16.mxu0 0
        %1269 = vmatpush1.bf16.msra.mxu0 0
        %1270 = vmatprep.subr.bf16.mxu0 0
        %1271 = vmatpush1.bf16.msra.mxu0 0
        %1272 = vmatprep.subr.bf16.mxu0 0
        %1273 = vmatpush1.bf16.msra.mxu0 0
        %1274 = vmatprep.subr.bf16.mxu0 0
        %1275 = vmatpush1.bf16.msra.mxu0 0
        %1276 = vmatprep.subr.bf16.mxu0 0
        %1277 = vmatpush1.bf16.msra.mxu0 0
        %1278 = vmatprep.subr.bf16.mxu0 0
        %1279 = vmatpush1.bf16.msra.mxu0 0
        %1280 = vmatprep.subr.bf16.mxu0 0
        %1281 = vmatpush1.bf16.msra.mxu0 0
        %1282 = vmatprep.subr.bf16.mxu0 0
        %1283 = vmatpush1.bf16.msra.mxu0 0
        %1284 = vmatprep.subr.bf16.mxu0 0
        %1285 = vmatpush1.bf16.msra.mxu0 0
        %1286 = vmatprep.subr.bf16.mxu0 0
        %1287 = vmatpush1.bf16.msra.mxu0 0
        %1288 = vmatprep.subr.bf16.mxu0 0
        %1289 = vmatpush1.bf16.msra.mxu0 0
        %1290 = vmatprep.subr.bf16.mxu0 0
        %1291 = vmatpush1.bf16.msra.mxu0 0
        %1292 = vmatprep.subr.bf16.mxu0 0
        %1293 = vmatpush1.bf16.msra.mxu0 0
        %1294 = vmatprep.subr.bf16.mxu0 0
        %1295 = vmatpush1.bf16.msra.mxu0 0
        %1296 = vmatprep.mubr.bf16.mxu0 0
        %1297 = vmatmul.mubr.bf16.gmra.mrb[0].mxu0 %v1259
        %v1298 = vpop.f32.mrb[0].mxu0
        %v1299 = vadd.f32 0.0, %v1298
        %v1300 = vpop.f32.mrb[0].mxu0
        %v1301 = vpop.f32.mrb[0].mxu0
        %v1302 = vpop.f32.mrb[0].mxu0
        %1303 = vdwg.mxu0
        %1305 = vrot.lane.b32.xlu0 %v1065, 8
        %v1306 = vpop.permute.xlu0 %1305
        %1309 = vrot.lane.b32.xlu0 %v1182, 16
        %v1310 = vpop.permute.xlu0 %1309
        %1313 = vrot.lane.b32.xlu0 %v1299, 24
        %v1314 = vpop.permute.xlu0 %1313
        %v1316 = vsel %vm834, %v941, %v1306
        %vm1317 = vcmask 130048
        %v1318 = vsel %vm1317, %v1316, %v1310
        %vm1319 = vcmask 195584
        %v1320 = vsel %vm1319, %v1318, %v1314
        %v1321 = vpack.c.bf16 %v1320, %v1320
        %v1322 = vld [vmem:[#allocation7] sm:$0xf]
        %v1323 = vld [vmem:[#allocation7 + $0x4] sm:$0xf]
        %v1324 = vld [vmem:[#allocation7 + $0x8] sm:$0xf]
        %v1325 = vld [vmem:[#allocation7 + $0xc] sm:$0xf]
        %v1326 = vld [vmem:[#allocation9] sm:$0x1]
        %v1328 = vlaneseq
        %v1329 = vshrl.u32 %v1328, 7
        %v1330 = vsub.s32 0, %v1329
        %v1331 = vrot.slane %v1326, %v1330
        %v1337 = vunpack.c.l.b16 %v1322
        %v1338 = vunpack.c.l.b16 %v1323
        %v1339 = vunpack.c.l.b16 %v1324
        %v1340 = vunpack.c.l.b16 %v1325
        %v1341 = vpack.c.b16 %v1338, %v1337
        %v1342 = vpack.c.b16 %v1340, %v1339
        %v1346 = vsel %vm782, %v1321, 0
        %1348 = vmatprep.subr.bf16.mxu0 0
        %1349 = vmatpush1.bf16.msra.mxu0 %v1341
        %1350 = vmatprep.subr.bf16.mxu0 0
        %1351 = vmatpush1.bf16.msra.mxu0 %v1342
        %1352 = vmatprep.subr.bf16.mxu0 0
        %1353 = vmatpush1.bf16.msra.mxu0 0
        %1354 = vmatprep.subr.bf16.mxu0 0
        %1355 = vmatpush1.bf16.msra.mxu0 0
        %1356 = vmatprep.subr.bf16.mxu0 0
        %1357 = vmatpush1.bf16.msra.mxu0 0
        %1358 = vmatprep.subr.bf16.mxu0 0
        %1359 = vmatpush1.bf16.msra.mxu0 0
        %1360 = vmatprep.subr.bf16.mxu0 0
        %1361 = vmatpush1.bf16.msra.mxu0 0
        %1362 = vmatprep.subr.bf16.mxu0 0
        %1363 = vmatpush1.bf16.msra.mxu0 0
        %1364 = vmatprep.subr.bf16.mxu0 0
        %1365 = vmatpush1.bf16.msra.mxu0 0
        %1366 = vmatprep.subr.bf16.mxu0 0
        %1367 = vmatpush1.bf16.msra.mxu0 0
        %1368 = vmatprep.subr.bf16.mxu0 0
        %1369 = vmatpush1.bf16.msra.mxu0 0
        %1370 = vmatprep.subr.bf16.mxu0 0
        %1371 = vmatpush1.bf16.msra.mxu0 0
        %1372 = vmatprep.subr.bf16.mxu0 0
        %1373 = vmatpush1.bf16.msra.mxu0 0
        %1374 = vmatprep.subr.bf16.mxu0 0
        %1375 = vmatpush1.bf16.msra.mxu0 0
        %1376 = vmatprep.subr.bf16.mxu0 0
        %1377 = vmatpush1.bf16.msra.mxu0 0
        %1378 = vmatprep.subr.bf16.mxu0 0
        %1379 = vmatpush1.bf16.msra.mxu0 0
        %1380 = vmatprep.mubr.bf16.mxu0 0
        %1381 = vmatmul.mubr.bf16.gmra.mrb[0].mxu0 %v1346
        %v1382 = vpop.f32.mrb[0].mxu0
        %v1383 = vadd.f32 %v1331, %v1382
        %v1384 = vpop.f32.mrb[0].mxu0
        %v1385 = vpop.f32.mrb[0].mxu0
        %v1386 = vpop.f32.mrb[0].mxu0
        %1387 = vdwg.mxu0
        %v1388 = vadd.f32 %v1383, %v757
        %v1389 = vld [vmem:[#allocation10] sm:$0x1]
        %v1390 = vld [vmem:[#allocation12] sm:$0x1]
        %v1391 = vsel %vm782, %v1388, 0.0
        %1392 = vadd.xlane.f32.xlu0 %v1391
        %v1393 = vpop.xlane.xlu0 %1392
        %v1394 = vrcp.pop 32.0
        %v1395 = vmul.f32 %v1393, %v1394
        %v1396 = vsub.f32 %v1388, %v1395
        %v1397 = vmul.f32 %v1396, %v1396
        %v1398 = vsel %vm782, %v1397, 0.0
        %1399 = vadd.xlane.f32.xlu0 %v1398
        %v1400 = vpop.xlane.xlu0 %1399
        %v1401 = vrcp.pop 31.0
        %v1402 = vmul.f32 %v1400, %v1401
        %v1403 = vrsqrt.pop %v1402
        %v1404 = vmul.f32 %v1402, %v1403
        %vm1405 = vcmp.eq.f32.partialorder %v1402, inf
        %v1406 = vsel %vm1405, %v1402, %v1404
        %vm1407 = vcmp.eq.f32.partialorder %v1402, 0.0
        %v1408 = vand.u32 %v1402, 2147483648
        %v1409 = vsel %vm1407, %v1408, %v1406
        %v1411 = vlaneseq
        %v1412 = vshrl.u32 %v1411, 7
        %v1413 = vsub.s32 0, %v1412
        %v1414 = vrot.slane %v1389, %v1413
        %v1416 = vmul.f32 %v1414, %v1396
        %v1417 = vadd.f32 %v1409, 1e-06
        %v1418 = vrcp.pop %v1417
        %v1419 = vmul.f32 %v1416, %v1418
        %v1421 = vlaneseq
        %v1422 = vshrl.u32 %v1421, 7
        %v1423 = vsub.s32 0, %v1422
        %v1424 = vrot.slane %v1390, %v1423
        %v1426 = vadd.f32 %v1419, %v1424
        %v1427 = vld [vmem:[%s14] sm:$0x1]
        %v1428 = vld [vmem:[%s15] sm:$0x1]
        %v1429 = vsel %vm782, %v1426, 0.0
        %1430 = vadd.xlane.f32.xlu0 %v1429
        %v1431 = vpop.xlane.xlu0 %1430
        %v1432 = vmul.f32 %v1431, %v1394
        %v1433 = vsub.f32 %v1426, %v1432
        %v1434 = vmul.f32 %v1433, %v1433
        %v1435 = vsel %vm782, %v1434, 0.0
        %1436 = vadd.xlane.f32.xlu0 %v1435
        %v1437 = vpop.xlane.xlu0 %1436
        %v1438 = vmul.f32 %v1437, %v1401
        %v1439 = vrsqrt.pop %v1438
        %v1440 = vmul.f32 %v1438, %v1439
        %vm1441 = vcmp.eq.f32.partialorder %v1438, inf
        %v1442 = vsel %vm1441, %v1438, %v1440
        %vm1443 = vcmp.eq.f32.partialorder %v1438, 0.0
        %v1444 = vand.u32 %v1438, 2147483648
        %v1445 = vsel %vm1443, %v1444, %v1442
        %v1447 = vlaneseq
        %v1448 = vshrl.u32 %v1447, 7
        %v1449 = vsub.s32 0, %v1448
        %v1450 = vrot.slane %v1427, %v1449
        %v1452 = vmul.f32 %v1450, %v1433
        %v1453 = vadd.f32 %v1445, 1e-06
        %v1454 = vrcp.pop %v1453
        %v1455 = vmul.f32 %v1452, %v1454
        %v1457 = vlaneseq
        %v1458 = vshrl.u32 %v1457, 7
        %v1459 = vsub.s32 0, %v1458
        %v1460 = vrot.slane %v1428, %v1459
        %v1462 = vadd.f32 %v1455, %v1460
        %v1463 = vpack.c.bf16 %v1462, %v1462
        %v1464 = vld [vmem:[%s10] sm:$0xf]
        %v1465 = vld [vmem:[%s10 + $0x4] sm:$0xf]
        %v1466 = vld [vmem:[%s10 + $0x8] sm:$0xf]
        %v1467 = vld [vmem:[%s10 + $0xc] sm:$0xf]
        %v1468 = vld [vmem:[%s11] sm:$0x1]
        %v1470 = vlaneseq
        %v1471 = vshrl.u32 %v1470, 7
        %v1472 = vsub.s32 0, %v1471
        %v1473 = vrot.slane %v1468, %v1472
        %v1479 = vunpack.c.l.b16 %v1464
        %v1480 = vunpack.c.l.b16 %v1465
        %v1481 = vunpack.c.l.b16 %v1466
        %v1482 = vunpack.c.l.b16 %v1467
        %v1483 = vpack.c.b16 %v1480, %v1479
        %v1484 = vpack.c.b16 %v1482, %v1481
        %v1488 = vsel %vm782, %v1463, 0
        %1490 = vmatprep.subr.bf16.mxu0 0
        %1491 = vmatpush1.bf16.msra.mxu0 %v1483
        %1492 = vmatprep.subr.bf16.mxu0 0
        %1493 = vmatpush1.bf16.msra.mxu0 %v1484
        %1494 = vmatprep.subr.bf16.mxu0 0
        %1495 = vmatpush1.bf16.msra.mxu0 0
        %1496 = vmatprep.subr.bf16.mxu0 0
        %1497 = vmatpush1.bf16.msra.mxu0 0
        %1498 = vmatprep.subr.bf16.mxu0 0
        %1499 = vmatpush1.bf16.msra.mxu0 0
        %1500 = vmatprep.subr.bf16.mxu0 0
        %1501 = vmatpush1.bf16.msra.mxu0 0
        %1502 = vmatprep.subr.bf16.mxu0 0
        %1503 = vmatpush1.bf16.msra.mxu0 0
        %1504 = vmatprep.subr.bf16.mxu0 0
        %1505 = vmatpush1.bf16.msra.mxu0 0
        %1506 = vmatprep.subr.bf16.mxu0 0
        %1507 = vmatpush1.bf16.msra.mxu0 0
        %1508 = vmatprep.subr.bf16.mxu0 0
        %1509 = vmatpush1.bf16.msra.mxu0 0
        %1510 = vmatprep.subr.bf16.mxu0 0
        %1511 = vmatpush1.bf16.msra.mxu0 0
        %1512 = vmatprep.subr.bf16.mxu0 0
        %1513 = vmatpush1.bf16.msra.mxu0 0
        %1514 = vmatprep.subr.bf16.mxu0 0
        %1515 = vmatpush1.bf16.msra.mxu0 0
        %1516 = vmatprep.subr.bf16.mxu0 0
        %1517 = vmatpush1.bf16.msra.mxu0 0
        %1518 = vmatprep.subr.bf16.mxu0 0
        %1519 = vmatpush1.bf16.msra.mxu0 0
        %1520 = vmatprep.subr.bf16.mxu0 0
        %1521 = vmatpush1.bf16.msra.mxu0 0
        %1522 = vmatprep.mubr.bf16.mxu0 0
        %1523 = vmatmul.mubr.bf16.gmra.mrb[0].mxu0 %v1488
        %v1524 = vpop.f32.mrb[0].mxu0
        %v1525 = vadd.f32 %v1473, %v1524
        %v1526 = vpop.f32.mrb[0].mxu0
        %v1527 = vpop.f32.mrb[0].mxu0
        %v1528 = vpop.f32.mrb[0].mxu0
        %1529 = vdwg.mxu0
        %v1530 = vmax.f32 %v1525, 0.0
        %v1531 = vpack.c.bf16 %v1530, %v1530
        %v1532 = vld [vmem:[%s12] sm:$0xf]
        %v1533 = vld [vmem:[%s12 + $0x4] sm:$0xf]
        %v1534 = vld [vmem:[%s12 + $0x8] sm:$0xf]
        %v1535 = vld [vmem:[%s12 + $0xc] sm:$0xf]
        %v1536 = vld [vmem:[%s12 + $0x10] sm:$0xf]
        %v1537 = vld [vmem:[%s12 + $0x14] sm:$0xf]
        %v1538 = vld [vmem:[%s12 + $0x18] sm:$0xf]
        %v1539 = vld [vmem:[%s12 + $0x1c] sm:$0xf]
        %v1540 = vld [vmem:[%s13] sm:$0x1]
        %v1542 = vlaneseq
        %v1543 = vshrl.u32 %v1542, 7
        %v1544 = vsub.s32 0, %v1543
        %v1545 = vrot.slane %v1540, %v1544
        %v1555 = vunpack.c.l.b16 %v1532
        %v1556 = vunpack.c.l.b16 %v1533
        %v1557 = vunpack.c.l.b16 %v1534
        %v1558 = vunpack.c.l.b16 %v1535
        %v1559 = vunpack.c.l.b16 %v1536
        %v1560 = vunpack.c.l.b16 %v1537
        %v1561 = vunpack.c.l.b16 %v1538
        %v1562 = vunpack.c.l.b16 %v1539
        %v1563 = vpack.c.b16 %v1556, %v1555
        %v1564 = vpack.c.b16 %v1558, %v1557
        %v1565 = vpack.c.b16 %v1560, %v1559
        %v1566 = vpack.c.b16 %v1562, %v1561
        %vm1571 = vcmask 523264
        %v1573 = vsel %vm1571, %v1531, 0
        %1575 = vmatprep.subr.bf16.mxu0 0
        %1576 = vmatpush1.bf16.msra.mxu0 %v1563
        %1577 = vmatprep.subr.bf16.mxu0 0
        %1578 = vmatpush1.bf16.msra.mxu0 %v1564
        %1579 = vmatprep.subr.bf16.mxu0 0
        %1580 = vmatpush1.bf16.msra.mxu0 %v1565
        %1581 = vmatprep.subr.bf16.mxu0 0
        %1582 = vmatpush1.bf16.msra.mxu0 %v1566
        %1583 = vmatprep.subr.bf16.mxu0 0
        %1584 = vmatpush1.bf16.msra.mxu0 0
        %1585 = vmatprep.subr.bf16.mxu0 0
        %1586 = vmatpush1.bf16.msra.mxu0 0
        %1587 = vmatprep.subr.bf16.mxu0 0
        %1588 = vmatpush1.bf16.msra.mxu0 0
        %1589 = vmatprep.subr.bf16.mxu0 0
        %1590 = vmatpush1.bf16.msra.mxu0 0
        %1591 = vmatprep.subr.bf16.mxu0 0
        %1592 = vmatpush1.bf16.msra.mxu0 0
        %1593 = vmatprep.subr.bf16.mxu0 0
        %1594 = vmatpush1.bf16.msra.mxu0 0
        %1595 = vmatprep.subr.bf16.mxu0 0
        %1596 = vmatpush1.bf16.msra.mxu0 0
        %1597 = vmatprep.subr.bf16.mxu0 0
        %1598 = vmatpush1.bf16.msra.mxu0 0
        %1599 = vmatprep.subr.bf16.mxu0 0
        %1600 = vmatpush1.bf16.msra.mxu0 0
        %1601 = vmatprep.subr.bf16.mxu0 0
        %1602 = vmatpush1.bf16.msra.mxu0 0
        %1603 = vmatprep.subr.bf16.mxu0 0
        %1604 = vmatpush1.bf16.msra.mxu0 0
        %1605 = vmatprep.subr.bf16.mxu0 0
        %1606 = vmatpush1.bf16.msra.mxu0 0
        %1607 = vmatprep.mubr.bf16.mxu0 0
        %1608 = vmatmul.mubr.bf16.gmra.mrb[0].mxu0 %v1573
        %v1609 = vpop.f32.mrb[0].mxu0
        %v1610 = vadd.f32 %v1545, %v1609
        %v1611 = vpop.f32.mrb[0].mxu0
        %v1612 = vpop.f32.mrb[0].mxu0
        %v1613 = vpop.f32.mrb[0].mxu0
        %1614 = vdwg.mxu0
        %v1615 = vadd.f32 %v1610, %v1426
        %1616 = vst.msk [vmem:[%s649] sm:$0xff] %vm782, %v1615
        %s1617 = sand.u32 %s408, 1
        %s1618 = scalar_lea.sflag [#allocation6], %s1617
        %s1619 = sand.u32 %s408, 1
        %s1620 = smul.addr %s1619, 8
        %s1621 = scalar_lea.vmem [#allocation13], %s1620
        %s1622 = sand.u32 %s436, 1
        %s1623 = scalar_lea.sflag [#allocation15], %s1622
        %s1624 = sand.u32 %s436, 1
        %s1625 = smul.addr %s1624, 32
        %s1626 = scalar_lea.vmem [#allocation14], %s1625
        // Predicated region
        $region109: #{tpu_custom_call.1} parent=83 // pred_check
          %p1627 = pneg %p418
        $region110: #{tpu_custom_call.1} parent=83 // pred_check_branch
          %1629 = sbr.rel (%p1627) target = $region112
        $region111: #{tpu_custom_call.1} parent=83 // pred_region
          %s1631 = ssub.s32 128, 128
          %1632 = vsyncadd %s1618, %s1631
          %s1633 = sadd.s32 %s43, %s42
          %s1634 = smul.addr %s1633, 128
          %s1635 = scalar_lea.hbm %s16, %s1634
          %s1637 = sshll.u32 %s1621, 4
          %s1638 = int_to_ptr.vmem [resolvable:$true] %s1637
          %1640 = dma.vmem_to_hbm [thread:$0]  %s1638, 128, %s1635, %s1618
        $region112: #{tpu_custom_call.1} parent=83 // pred_fallthru
          _
        // Predicated region
        $region113: #{tpu_custom_call.1} parent=83 // pred_check
          %p1641 = pneg %p446
        $region114: #{tpu_custom_call.1} parent=83 // pred_check_branch
          %1643 = sbr.rel (%p1641) target = $region116
        $region115: #{tpu_custom_call.1} parent=83 // pred_region
          %s1645 = ssub.s32 512, 512
          %1646 = vsyncadd %s1623, %s1645
          %s1647 = smul.addr %s42, 4
          %s1648 = sadd.s32 %s43, %s1647
          %s1649 = smul.addr %s1648, 128
          %s1650 = scalar_lea.hbm %s17, %s1649
          %s1651 = sshll.u32 %s1626, 4
          %s1652 = int_to_ptr.vmem [resolvable:$true] %s1651
          %1657 = dma.vmem_to_hbm [thread:$0]  %s1652, 512, %s1650, %s1623, 128, 128, 8
        $region116: #{tpu_custom_call.1} parent=83 // pred_fallthru
          _
      $region84: #{tpu_custom_call.1} parent=5 // pred_fallthru
        _
      %p1658 = scmp.le.s32.totalorder 2, %s33
      // Predicated region
      $region117: #{tpu_custom_call.1} parent=5 // pred_check
        %p1659 = pneg %p1658
      $region118: #{tpu_custom_call.1} parent=5 // pred_check_branch
        %1661 = sbr.rel (%p1659) target = $region120
      $region119: #{tpu_custom_call.1} parent=5 // pred_region
        %s1662 = ssub.s32 %s33, 2
        // Predicated region
        $region121: #{tpu_custom_call.1} parent=119 // pred_check
          %p1663 = pneg %p424
        $region122: #{tpu_custom_call.1} parent=119 // pred_check_branch
          %1665 = sbr.rel (%p1663) target = $region124
        $region123: #{tpu_custom_call.1} parent=119 // pred_region
          %s1666 = sand.u32 %s409, 1
          %s1667 = scalar_lea.sflag [#allocation6], %s1666
          %s1668 = sand.u32 %s409, 1
          %s1669 = smul.addr %s1668, 8
          %s1670 = scalar_lea.vmem [#allocation13], %s1669
          %1671 = dma.done %s1667, 128
        $region124: #{tpu_custom_call.1} parent=119 // pred_fallthru
          _
        // Predicated region
        $region125: #{tpu_custom_call.1} parent=119 // pred_check
          %p1672 = pneg %p452
        $region126: #{tpu_custom_call.1} parent=119 // pred_check_branch
          %1674 = sbr.rel (%p1672) target = $region128
        $region127: #{tpu_custom_call.1} parent=119 // pred_region
          %s1675 = sand.u32 %s437, 1
          %s1676 = scalar_lea.sflag [#allocation15], %s1675
          %s1677 = sand.u32 %s437, 1
          %s1678 = smul.addr %s1677, 32
          %s1679 = scalar_lea.vmem [#allocation14], %s1678
          %1680 = dma.done %s1676, 512
        $region128: #{tpu_custom_call.1} parent=119 // pred_fallthru
          _
      $region120: #{tpu_custom_call.1} parent=5 // pred_fallthru
        _
    $region6: #{tpu_custom_call.1} parent=1 // loop_footer
      %s37 = sadd.s32 1, %s33
    $region7: #{tpu_custom_call.1} parent=1 // loop_footer_branch
      %32 = sbr.rel target = $region3
    $region8: #{tpu_custom_call.1} parent=1 // loop_exit
      _
    %1681 = vsyncpa [#allocation5], 1
    %s1682 = scalar_lea.sflag [#allocation5], 1
    %1683 = vsyncpa %s1682, 1
    %1684 = vsyncpa [#allocation8], 1
    %1685 = vsyncpa [#allocation11], 1
    %1686 = vsyncpa [#allocation6], 1
    %s1687 = scalar_lea.sflag [#allocation6], 1
    %1688 = vsyncpa %s1687, 1
    %1689 = vsyncpa [#allocation15], 1
    %s1690 = scalar_lea.sflag [#allocation15], 1
    %1691 = vsyncpa %s1690, 1

</llo_original>
